<compile_context>
chip_gen: v7x
topology: tpu7x:2x2x1
jax: 0.10.0
libtpu: 0.0.40
codegen_flags: <defaults>
</compile_context>

<pallas_src>
import jax
import jax.numpy as jnp
from jax import lax
from jax.experimental import pallas as pl
from jax.experimental.pallas import tpu as pltpu

HIDDEN = 32      # hidden_size
VOCAB = 64       # output_size (target vocab)
MAX_LENGTH = 8   # max_length
OUT_W = 128      # packed output row: [logp(V) | h_new(H) | attn_w(ML) | pad]


def attn_decoder_kernel(
    tok_ref,                                            # SMEM (T,) int32 (scalar prefetch)
    emb_proj_ref, h0_ref, enc_ref,                      # (V,ML+H), (1,H), (ML,H)
    w_hid_ref, w_ca_ref, w_x_ref, w_out_ref,            # packed weights
    b_hid_ref, b_x_ref, b_out_ref,                      # loop-invariant biases
    out_ref,                                            # (T, OUT_W) packed output block
):
    f32 = jnp.float32
    H, ML, V = HIDDEN, MAX_LENGTH, VOCAB
    T = out_ref.shape[0]

    # ---- loop-invariant prologue (runs once per call) ----
    # encoder_outputs @ w_comb_a folded out of the per-step chain.
    enc_ca = jnp.dot(enc_ref[...], w_ca_ref[...], preferred_element_type=f32)   # (ML, H)
    w_hid = w_hid_ref[...]        # (H, 3H+ML)  [w_hr | w_hz | w_hn | w_attn_h]
    w_x = w_x_ref[...]            # (H, 3H)     [w_ir | w_iz | w_in]
    w_out = w_out_ref[...]        # (H, V)
    b_hid = b_hid_ref[...]        # (1, 3H+ML)  [0 | 0 | b_hn | 0]
    b_x = b_x_ref[...]            # (1, 3H)     [b_ir+b_hr | b_iz+b_hz | b_in]
    b_out = b_out_ref[...]        # (1, V)
    pad = jnp.zeros((1, OUT_W - V - H - ML), f32)

    def step(t, hid):
        # In-kernel embedding lookup: one dynamic row read of the pre-projected
        # table (embedding @ [w_attn_e|w_comb_e] + [b_attn|b_comb]).
        tok = tok_ref[t]
        emb_pack = emb_proj_ref[pl.ds(tok, 1), :]                 # (1, ML+H) = [attn | comb]
        # TODO(synk): dropout is identity here (eval mode); training-mode dropout not implemented.

        # One fused MXU pass for all hidden-side projections.
        hid_pack = jnp.dot(hid, w_hid, preferred_element_type=f32) + b_hid       # (1, 3H+ML)

        # attn_weights = softmax(attn(cat(emb, hid)))  (exact divide)
        logits = emb_pack[:, :ML] + hid_pack[:, 3 * H:]                           # (1, ML)
        m = jnp.max(logits, axis=1, keepdims=True)
        e = jnp.exp(logits - m)
        attn_w = e / jnp.sum(e, axis=1, keepdims=True)

        # attn_combine(cat(emb, attn_applied)) with the w_comb_a matmul folded:
        # (attn_w @ enc) @ w_ca == attn_w @ (enc @ w_ca) == attn_w @ enc_ca
        comb = emb_pack[:, ML:] + jnp.dot(attn_w, enc_ca, preferred_element_type=f32)  # (1, H)
        x = jnp.maximum(comb, 0.0)                                                 # ReLU

        # Single-step GRU cell, PyTorch gate order (r, z, n); one fused matmul
        # for the input side; gate blocks of hid_pack are lane-aligned with x_pack.
        x_pack = jnp.dot(x, w_x, preferred_element_type=f32) + b_x                # (1, 3H)
        rz = jax.nn.sigmoid(x_pack[:, :2 * H] + hid_pack[:, :2 * H])              # (1, 2H)
        r = rz[:, :H]
        z = rz[:, H:]
        n = jnp.tanh(x_pack[:, 2 * H:] + r * hid_pack[:, 2 * H:3 * H])
        h_new = (1.0 - z) * n + z * hid

        # output = log_softmax(out(h_new))
        out_logits = jnp.dot(h_new, w_out, preferred_element_type=f32) + b_out    # (1, V)
        om = jnp.max(out_logits, axis=1, keepdims=True)
        sh = out_logits - om
        logp = sh - jnp.log(jnp.sum(jnp.exp(sh), axis=1, keepdims=True))

        # Lane-dense packed row; the (T, OUT_W) block is written back to HBM once.
        out_ref[pl.ds(t, 1), :] = jnp.concatenate([logp, h_new, attn_w, pad], axis=1)
        return h_new

    lax.fori_loop(0, T, step, h0_ref[...], unroll=True)


def init_params(key, hidden=HIDDEN, vocab=VOCAB, max_len=MAX_LENGTH):
    ks = jax.random.split(key, 22)
    s = 0.1
    g = lambda k, shape: (s * jax.random.normal(k, shape)).astype(jnp.float32)
    p = {
        "embedding": g(ks[0], (vocab, hidden)),
        # attn: Linear(2H -> ML), split into embedded-part / hidden-part
        "w_attn_e": g(ks[1], (hidden, max_len)),
        "w_attn_h": g(ks[2], (hidden, max_len)),
        "b_attn": g(ks[3], (1, max_len)),
        # attn_combine: Linear(2H -> H), split into embedded-part / attn-applied-part
        "w_comb_e": g(ks[4], (hidden, hidden)),
        "w_comb_a": g(ks[5], (hidden, hidden)),
        "b_comb": g(ks[6], (1, hidden)),
        # GRU(H -> H): input/hidden weights per gate (r, z, n), pre-transposed
        "w_ir": g(ks[7], (hidden, hidden)),
        "w_iz": g(ks[8], (hidden, hidden)),
        "w_in": g(ks[9], (hidden, hidden)),
        "w_hr": g(ks[10], (hidden, hidden)),
        "w_hz": g(ks[11], (hidden, hidden)),
        "w_hn": g(ks[12], (hidden, hidden)),
        "b_ir": g(ks[13], (1, hidden)),
        "b_iz": g(ks[14], (1, hidden)),
        "b_in": g(ks[15], (1, hidden)),
        "b_hr": g(ks[16], (1, hidden)),
        "b_hz": g(ks[17], (1, hidden)),
        "b_hn": g(ks[18], (1, hidden)),
        # out: Linear(H -> V)
        "w_out": g(ks[19], (hidden, vocab)),
        "b_out": g(ks[20], (1, vocab)),
    }
    return p


def pack_params(p):
    """Host-side packing / algebraic folding of logical params for the kernel."""
    f32 = jnp.float32
    H, ML = HIDDEN, MAX_LENGTH
    # Pre-projected embedding table: row v = emb[v] @ [w_attn_e|w_comb_e] + [b_attn|b_comb]
    w_emb = jnp.concatenate([p["w_attn_e"], p["w_comb_e"]], axis=1)               # (H, ML+H)
    b_emb = jnp.concatenate([p["b_attn"], p["b_comb"]], axis=1)                   # (1, ML+H)
    emb_proj = (p["embedding"].astype(f32) @ w_emb + b_emb).astype(f32)           # (V, ML+H)
    return {
        "emb_proj": emb_proj,
        # hidden slab ordered [r|z|n|attn] so GRU gates align with w_x at lanes 0/H/2H
        "w_hid": jnp.concatenate([p["w_hr"], p["w_hz"], p["w_hn"], p["w_attn_h"]],
                                 axis=1),                                          # (H, 3H+ML)
        "b_hid": jnp.concatenate([jnp.zeros((1, 2 * H), f32), p["b_hn"],
                                  jnp.zeros((1, ML), f32)], axis=1),               # (1, 3H+ML)
        "w_ca": p["w_comb_a"],                                                     # (H, H)
        "w_x": jnp.concatenate([p["w_ir"], p["w_iz"], p["w_in"]], axis=1),         # (H, 3H)
        "b_x": jnp.concatenate([p["b_ir"] + p["b_hr"], p["b_iz"] + p["b_hz"],
                                p["b_in"]], axis=1),                               # (1, 3H)
        "w_out": p["w_out"],                                                       # (H, V)
        "b_out": p["b_out"],                                                       # (1, V)
    }


def attn_decoder_decode(tokens, hidden0, encoder_outputs, packed):
    """Run T decode steps (teacher-forced token ids) inside one single-program pallas_call.

    tokens: (T,) int32; hidden0: (1,1,H); encoder_outputs: (MAX_LENGTH, H).
    Returns (logp (T,V), hidden_final (1,1,H), attn_w (T,ML), h_all (T,H)).
    """
    H, V, ML = HIDDEN, VOCAB, MAX_LENGTH
    T = int(tokens.shape[0])
    h0 = hidden0.reshape(1, H).astype(jnp.float32)

    ins = [packed["emb_proj"], h0, encoder_outputs.astype(jnp.float32),
           packed["w_hid"], packed["w_ca"], packed["w_x"], packed["w_out"],
           packed["b_hid"], packed["b_x"], packed["b_out"]]

    def resident(a):
        nd = a.ndim
        # Full-array block, constant index => one DMA total, resident in VMEM.
        return pl.BlockSpec(a.shape, lambda i, tok, _nd=nd: (0,) * _nd)

    # TODO(synk): for batched decoding (v7x dual-TC), add a leading 'parallel'
    # grid axis over sequences; the single-sequence module needs only grid=(1,).
    grid_spec = pltpu.PrefetchScalarGridSpec(
        num_scalar_prefetch=1,                      # tokens -> SMEM
        grid=(1,),                                  # single program; loop is in-kernel
        in_specs=[resident(a) for a in ins],
        out_specs=pl.BlockSpec((T, OUT_W), lambda i, tok: (0, 0)),
    )

    packed_out = pl.pallas_call(
        attn_decoder_kernel,
        grid_spec=grid_spec,
        out_shape=jax.ShapeDtypeStruct((T, OUT_W), jnp.float32),
        compiler_params=pltpu.CompilerParams(dimension_semantics=("arbitrary",)),
    )(tokens.astype(jnp.int32), *ins)

    logp = packed_out[:, :V]
    h_all = packed_out[:, V:V + H]
    attn_w = packed_out[:, V + H:V + H + ML]
    hidden_final = h_all[-1].reshape(1, 1, H)
    return logp, hidden_final, attn_w, h_all


def attn_decoder_forward(token_id, hidden, encoder_outputs, packed):
    """Single-step interface matching the PyTorch module's forward()."""
    logp, h_fin, attn_w, _ = attn_decoder_decode(
        jnp.reshape(token_id, (1,)).astype(jnp.int32), hidden, encoder_outputs, packed)
    return logp, h_fin, attn_w


# ----------------------------- pure-JAX reference -----------------------------
def reference_step(token_id, hid, encoder_outputs, p):
    H = HIDDEN
    emb = p["embedding"][token_id].reshape(1, H)
    W_attn = jnp.concatenate([p["w_attn_e"], p["w_attn_h"]], axis=0)
    attn_w = jax.nn.softmax(jnp.concatenate([emb, hid], 1) @ W_attn + p["b_attn"], axis=1)
    attn_applied = attn_w @ encoder_outputs
    W_comb = jnp.concatenate([p["w_comb_e"], p["w_comb_a"]], axis=0)
    x = jnp.maximum(jnp.concatenate([emb, attn_applied], 1) @ W_comb + p["b_comb"], 0.0)
    r = jax.nn.sigmoid(x @ p["w_ir"] + p["b_ir"] + hid @ p["w_hr"] + p["b_hr"])
    z = jax.nn.sigmoid(x @ p["w_iz"] + p["b_iz"] + hid @ p["w_hz"] + p["b_hz"])
    n = jnp.tanh(x @ p["w_in"] + p["b_in"] + r * (hid @ p["w_hn"] + p["b_hn"]))
    h_new = (1.0 - z) * n + z * hid
    logp = jax.nn.log_softmax(h_new @ p["w_out"] + p["b_out"], axis=1)
    return logp, h_new, attn_w


def reference_decode(tokens, hidden0, encoder_outputs, p):
    hid = hidden0.reshape(1, HIDDEN)
    logps, attns, hs = [], [], []
    for t in range(tokens.shape[0]):
        logp, hid, attn_w = reference_step(int(tokens[t]), hid, encoder_outputs, p)
        logps.append(logp)
        attns.append(attn_w)
        hs.append(hid)
    return (jnp.concatenate(logps, 0), hid.reshape(1, 1, HIDDEN),
            jnp.concatenate(attns, 0), jnp.concatenate(hs, 0))


if __name__ == "__main__":
    key = jax.random.PRNGKey(0)
    pkey, ekey, tkey = jax.random.split(key, 3)

    params = init_params(pkey)
    packed = pack_params(params)

    T = MAX_LENGTH
    tokens = jax.random.randint(tkey, (T,), 0, VOCAB, dtype=jnp.int32)
    hidden0 = jnp.zeros((1, 1, HIDDEN), dtype=jnp.float32)                 # initHidden()
    encoder_outputs = (0.1 * jax.random.normal(ekey, (MAX_LENGTH, HIDDEN))).astype(jnp.float32)

    logp, h_fin, attn_w, h_all = attn_decoder_decode(tokens, hidden0, encoder_outputs, packed)
    jax.block_until_ready((logp, h_fin, attn_w, h_all))

    ref_logp, ref_hfin, ref_attn, ref_hall = reference_decode(tokens, hidden0,
                                                              encoder_outputs, params)

    assert logp.shape == (T, VOCAB)
    assert attn_w.shape == (T, MAX_LENGTH)
    assert h_fin.shape == (1, 1, HIDDEN)
    # Exact softmax divide now; residual tolerance covers f32 MXU accumulation
    # order / transcendental implementation differences over the 8-step recurrence.
    tol = dict(rtol=1e-3, atol=1e-3)
    assert jnp.allclose(logp, ref_logp, **tol)
    assert jnp.allclose(attn_w, ref_attn, **tol)
    assert jnp.allclose(h_all, ref_hall, **tol)
    assert jnp.allclose(h_fin, ref_hfin, **tol)

    # Single-step interface (mirrors the PyTorch module's forward signature).
    l1, h1, a1 = attn_decoder_forward(tokens[0], hidden0, encoder_outputs, packed)
    rl1, rh1, ra1 = reference_step(int(tokens[0]), hidden0.reshape(1, HIDDEN),
                                   encoder_outputs, params)
    assert jnp.allclose(l1, rl1, **tol)
    assert jnp.allclose(h1.reshape(1, HIDDEN), rh1, **tol)
    assert jnp.allclose(a1, ra1, **tol)

    print("KERNEL_OK")
</pallas_src>

<mosaic_0001>
module attributes {stable_mosaic.version = 11 : i64} {
  func.func @attn_decoder_kernel(%arg0: i32, %arg1: memref<8xi32, #tpu.memory_space<smem>>, %arg2: memref<64x40xf32, #tpu.memory_space<vmem>>, %arg3: memref<1x32xf32, #tpu.memory_space<vmem>>, %arg4: memref<8x32xf32, #tpu.memory_space<vmem>>, %arg5: memref<32x104xf32, #tpu.memory_space<vmem>>, %arg6: memref<32x32xf32, #tpu.memory_space<vmem>>, %arg7: memref<32x96xf32, #tpu.memory_space<vmem>>, %arg8: memref<32x64xf32, #tpu.memory_space<vmem>>, %arg9: memref<1x104xf32, #tpu.memory_space<vmem>>, %arg10: memref<1x96xf32, #tpu.memory_space<vmem>>, %arg11: memref<1x64xf32, #tpu.memory_space<vmem>>, %arg12: memref<8x128xf32, #tpu.memory_space<vmem>>) attributes {dimension_semantics = [#tpu.dimension_semantics<arbitrary>], iteration_bounds = array<i64: 1>, scalar_prefetch = 1 : i64, scratch_operands = 0 : i64, tpu.core_type = #tpu.core_type<tc>, window_params = [{pipeline_mode = #tpu.pipeline_mode<synchronous>, transform_indices = @transform_0, window_bounds = array<i64: 64, 40>}, {pipeline_mode = #tpu.pipeline_mode<synchronous>, transform_indices = @transform_1, window_bounds = array<i64: 1, 32>}, {pipeline_mode = #tpu.pipeline_mode<synchronous>, transform_indices = @transform_2, window_bounds = array<i64: 8, 32>}, {pipeline_mode = #tpu.pipeline_mode<synchronous>, transform_indices = @transform_3, window_bounds = array<i64: 32, 104>}, {pipeline_mode = #tpu.pipeline_mode<synchronous>, transform_indices = @transform_4, window_bounds = array<i64: 32, 32>}, {pipeline_mode = #tpu.pipeline_mode<synchronous>, transform_indices = @transform_5, window_bounds = array<i64: 32, 96>}, {pipeline_mode = #tpu.pipeline_mode<synchronous>, transform_indices = @transform_6, window_bounds = array<i64: 32, 64>}, {pipeline_mode = #tpu.pipeline_mode<synchronous>, transform_indices = @transform_7, window_bounds = array<i64: 1, 104>}, {pipeline_mode = #tpu.pipeline_mode<synchronous>, transform_indices = @transform_8, window_bounds = array<i64: 1, 96>}, {pipeline_mode = #tpu.pipeline_mode<synchronous>, transform_indices = @transform_9, window_bounds = array<i64: 1, 64>}, {pipeline_mode = #tpu.pipeline_mode<synchronous>, transform_indices = @transform_10, window_bounds = array<i64: 8, 128>}]} {
    %c0 = arith.constant 0 : index
    %c0_0 = arith.constant 0 : index
    %0 = vector.load %arg4[%c0, %c0_0] : memref<8x32xf32, #tpu.memory_space<vmem>>, vector<8x32xf32>
    %c0_1 = arith.constant 0 : index
    %c0_2 = arith.constant 0 : index
    %1 = vector.load %arg6[%c0_1, %c0_2] : memref<32x32xf32, #tpu.memory_space<vmem>>, vector<32x32xf32>
    %cst = arith.constant dense<0.000000e+00> : vector<8x32xf32>
    %2 = tpu.matmul %0, %1, %cst {dimension_numbers = #tpu.dot_dimension_numbers<[1], [0], [0], [1], [0, 0, 1, 1], [], []>} : vector<8x32xf32>, vector<32x32xf32>, vector<8x32xf32> -> vector<8x32xf32>
    %c0_3 = arith.constant 0 : index
    %c0_4 = arith.constant 0 : index
    %3 = vector.load %arg5[%c0_3, %c0_4] : memref<32x104xf32, #tpu.memory_space<vmem>>, vector<32x104xf32>
    %c0_5 = arith.constant 0 : index
    %c0_6 = arith.constant 0 : index
    %4 = vector.load %arg7[%c0_5, %c0_6] : memref<32x96xf32, #tpu.memory_space<vmem>>, vector<32x96xf32>
    %c0_7 = arith.constant 0 : index
    %c0_8 = arith.constant 0 : index
    %5 = vector.load %arg8[%c0_7, %c0_8] : memref<32x64xf32, #tpu.memory_space<vmem>>, vector<32x64xf32>
    %c0_9 = arith.constant 0 : index
    %c0_10 = arith.constant 0 : index
    %6 = vector.load %arg9[%c0_9, %c0_10] : memref<1x104xf32, #tpu.memory_space<vmem>>, vector<1x104xf32>
    %c0_11 = arith.constant 0 : index
    %c0_12 = arith.constant 0 : index
    %7 = vector.load %arg10[%c0_11, %c0_12] : memref<1x96xf32, #tpu.memory_space<vmem>>, vector<1x96xf32>
    %c0_13 = arith.constant 0 : index
    %c0_14 = arith.constant 0 : index
    %8 = vector.load %arg11[%c0_13, %c0_14] : memref<1x64xf32, #tpu.memory_space<vmem>>, vector<1x64xf32>
    %cst_15 = arith.constant 0.000000e+00 : f32
    %9 = vector.broadcast %cst_15 : f32 to vector<1x24xf32>
    %c0_16 = arith.constant 0 : index
    %c0_17 = arith.constant 0 : index
    %10 = vector.load %arg3[%c0_16, %c0_17] : memref<1x32xf32, #tpu.memory_space<vmem>>, vector<1x32xf32>
    %c0_i32 = arith.constant 0 : i32
    %11 = arith.index_cast %c0_i32 : i32 to index
    %12 = memref.load %arg1[%11] : memref<8xi32, #tpu.memory_space<smem>>
    %13 = arith.index_cast %12 : i32 to index
    %c0_18 = arith.constant 0 : index
    %14 = vector.load %arg2[%13, %c0_18] : memref<64x40xf32, #tpu.memory_space<vmem>>, vector<1x40xf32>
    %cst_19 = arith.constant dense<0.000000e+00> : vector<1x104xf32>
    %15 = tpu.matmul %10, %3, %cst_19 {dimension_numbers = #tpu.dot_dimension_numbers<[1], [0], [0], [1], [0, 0, 1, 1], [], []>} : vector<1x32xf32>, vector<32x104xf32>, vector<1x104xf32> -> vector<1x104xf32>
    %16 = arith.addf %15, %6 : vector<1x104xf32>
    %17 = vector.extract_strided_slice %14 {offsets = [0, 0], sizes = [1, 8], strides = [1, 1]} : vector<1x40xf32> to vector<1x8xf32>
    %18 = vector.extract_strided_slice %16 {offsets = [0, 96], sizes = [1, 8], strides = [1, 1]} : vector<1x104xf32> to vector<1x8xf32>
    %19 = arith.addf %17, %18 : vector<1x8xf32>
    %cst_20 = arith.constant dense<0xFF800000> : vector<1xf32>
    %20 = vector.multi_reduction <maximumf>, %19, %cst_20 [1] : vector<1x8xf32> to vector<1xf32>
    %21 = vector.shape_cast %20 : vector<1xf32> to vector<1x1xf32>
    %22 = vector.broadcast %21 : vector<1x1xf32> to vector<1x8xf32>
    %23 = arith.subf %19, %22 : vector<1x8xf32>
    %24 = math.exp %23 : vector<1x8xf32>
    %cst_21 = arith.constant dense<0.000000e+00> : vector<1xf32>
    %25 = vector.multi_reduction <add>, %24, %cst_21 [1] : vector<1x8xf32> to vector<1xf32>
    %26 = vector.shape_cast %25 : vector<1xf32> to vector<1x1xf32>
    %27 = vector.broadcast %26 : vector<1x1xf32> to vector<1x8xf32>
    %28 = arith.divf %24, %27 : vector<1x8xf32>
    %29 = vector.extract_strided_slice %14 {offsets = [0, 8], sizes = [1, 32], strides = [1, 1]} : vector<1x40xf32> to vector<1x32xf32>
    %cst_22 = arith.constant dense<0.000000e+00> : vector<1x32xf32>
    %30 = tpu.matmul %28, %2, %cst_22 {dimension_numbers = #tpu.dot_dimension_numbers<[1], [0], [0], [1], [0, 0, 1, 1], [], []>} : vector<1x8xf32>, vector<8x32xf32>, vector<1x32xf32> -> vector<1x32xf32>
    %31 = arith.addf %29, %30 : vector<1x32xf32>
    %cst_23 = arith.constant 0.000000e+00 : f32
    %32 = vector.broadcast %cst_23 : f32 to vector<1x32xf32>
    %33 = arith.maximumf %31, %32 : vector<1x32xf32>
    %cst_24 = arith.constant dense<0.000000e+00> : vector<1x96xf32>
    %34 = tpu.matmul %33, %4, %cst_24 {dimension_numbers = #tpu.dot_dimension_numbers<[1], [0], [0], [1], [0, 0, 1, 1], [], []>} : vector<1x32xf32>, vector<32x96xf32>, vector<1x96xf32> -> vector<1x96xf32>
    %35 = arith.addf %34, %7 : vector<1x96xf32>
    %36 = vector.extract_strided_slice %35 {offsets = [0, 0], sizes = [1, 64], strides = [1, 1]} : vector<1x96xf32> to vector<1x64xf32>
    %37 = vector.extract_strided_slice %16 {offsets = [0, 0], sizes = [1, 64], strides = [1, 1]} : vector<1x104xf32> to vector<1x64xf32>
    %38 = arith.addf %36, %37 : vector<1x64xf32>
    %39 = arith.negf %38 : vector<1x64xf32>
    %40 = math.exp %39 : vector<1x64xf32>
    %cst_25 = arith.constant 1.000000e+00 : f32
    %41 = vector.broadcast %cst_25 : f32 to vector<1x64xf32>
    %42 = arith.addf %41, %40 : vector<1x64xf32>
    %43 = arith.divf %41, %42 : vector<1x64xf32>
    %44 = vector.extract_strided_slice %43 {offsets = [0, 0], sizes = [1, 32], strides = [1, 1]} : vector<1x64xf32> to vector<1x32xf32>
    %45 = vector.extract_strided_slice %43 {offsets = [0, 32], sizes = [1, 32], strides = [1, 1]} : vector<1x64xf32> to vector<1x32xf32>
    %46 = vector.extract_strided_slice %35 {offsets = [0, 64], sizes = [1, 32], strides = [1, 1]} : vector<1x96xf32> to vector<1x32xf32>
    %47 = vector.extract_strided_slice %16 {offsets = [0, 64], sizes = [1, 32], strides = [1, 1]} : vector<1x104xf32> to vector<1x32xf32>
    %48 = arith.mulf %44, %47 : vector<1x32xf32>
    %49 = arith.addf %46, %48 : vector<1x32xf32>
    %50 = math.tanh %49 : vector<1x32xf32>
    %cst_26 = arith.constant 1.000000e+00 : f32
    %51 = vector.broadcast %cst_26 : f32 to vector<1x32xf32>
    %52 = arith.subf %51, %45 : vector<1x32xf32>
    %53 = arith.mulf %52, %50 : vector<1x32xf32>
    %54 = arith.mulf %45, %10 : vector<1x32xf32>
    %55 = arith.addf %53, %54 : vector<1x32xf32>
    %cst_27 = arith.constant dense<0.000000e+00> : vector<1x64xf32>
    %56 = tpu.matmul %55, %5, %cst_27 {dimension_numbers = #tpu.dot_dimension_numbers<[1], [0], [0], [1], [0, 0, 1, 1], [], []>} : vector<1x32xf32>, vector<32x64xf32>, vector<1x64xf32> -> vector<1x64xf32>
    %57 = arith.addf %56, %8 : vector<1x64xf32>
    %cst_28 = arith.constant dense<0xFF800000> : vector<1xf32>
    %58 = vector.multi_reduction <maximumf>, %57, %cst_28 [1] : vector<1x64xf32> to vector<1xf32>
    %59 = vector.shape_cast %58 : vector<1xf32> to vector<1x1xf32>
    %60 = vector.broadcast %59 : vector<1x1xf32> to vector<1x64xf32>
    %61 = arith.subf %57, %60 : vector<1x64xf32>
    %62 = math.exp %61 : vector<1x64xf32>
    %cst_29 = arith.constant dense<0.000000e+00> : vector<1xf32>
    %63 = vector.multi_reduction <add>, %62, %cst_29 [1] : vector<1x64xf32> to vector<1xf32>
    %64 = vector.shape_cast %63 : vector<1xf32> to vector<1x1xf32>
    %65 = math.log %64 : vector<1x1xf32>
    %66 = vector.broadcast %65 : vector<1x1xf32> to vector<1x64xf32>
    %67 = arith.subf %61, %66 : vector<1x64xf32>
    %68 = tpu.concatenate %67, %55, %28, %9 in 1 : vector<1x64xf32>, vector<1x32xf32>, vector<1x8xf32>, vector<1x24xf32> -> vector<1x128xf32>
    %69 = arith.index_cast %c0_i32 : i32 to index
    %c0_30 = arith.constant 0 : index
    %70 = vector.load %arg12[%69, %c0_30] : memref<8x128xf32, #tpu.memory_space<vmem>>, vector<1x128xf32>
    tpu.vector_store %arg12[%69, %c0_30], %68 {strides = array<i32>} : memref<8x128xf32, #tpu.memory_space<vmem>>, vector<1x128xf32>,
    %c1_i32 = arith.constant 1 : i32
    %71 = arith.index_cast %c1_i32 : i32 to index
    %72 = memref.load %arg1[%71] : memref<8xi32, #tpu.memory_space<smem>>
    %73 = arith.index_cast %72 : i32 to index
    %c0_31 = arith.constant 0 : index
    %74 = vector.load %arg2[%73, %c0_31] : memref<64x40xf32, #tpu.memory_space<vmem>>, vector<1x40xf32>
    %cst_32 = arith.constant dense<0.000000e+00> : vector<1x104xf32>
    %75 = tpu.matmul %55, %3, %cst_32 {dimension_numbers = #tpu.dot_dimension_numbers<[1], [0], [0], [1], [0, 0, 1, 1], [], []>} : vector<1x32xf32>, vector<32x104xf32>, vector<1x104xf32> -> vector<1x104xf32>
    %76 = arith.addf %75, %6 : vector<1x104xf32>
    %77 = vector.extract_strided_slice %74 {offsets = [0, 0], sizes = [1, 8], strides = [1, 1]} : vector<1x40xf32> to vector<1x8xf32>
    %78 = vector.extract_strided_slice %76 {offsets = [0, 96], sizes = [1, 8], strides = [1, 1]} : vector<1x104xf32> to vector<1x8xf32>
    %79 = arith.addf %77, %78 : vector<1x8xf32>
    %cst_33 = arith.constant dense<0xFF800000> : vector<1xf32>
    %80 = vector.multi_reduction <maximumf>, %79, %cst_33 [1] : vector<1x8xf32> to vector<1xf32>
    %81 = vector.shape_cast %80 : vector<1xf32> to vector<1x1xf32>
    %82 = vector.broadcast %81 : vector<1x1xf32> to vector<1x8xf32>
    %83 = arith.subf %79, %82 : vector<1x8xf32>
    %84 = math.exp %83 : vector<1x8xf32>
    %cst_34 = arith.constant dense<0.000000e+00> : vector<1xf32>
    %85 = vector.multi_reduction <add>, %84, %cst_34 [1] : vector<1x8xf32> to vector<1xf32>
    %86 = vector.shape_cast %85 : vector<1xf32> to vector<1x1xf32>
    %87 = vector.broadcast %86 : vector<1x1xf32> to vector<1x8xf32>
    %88 = arith.divf %84, %87 : vector<1x8xf32>
    %89 = vector.extract_strided_slice %74 {offsets = [0, 8], sizes = [1, 32], strides = [1, 1]} : vector<1x40xf32> to vector<1x32xf32>
    %cst_35 = arith.constant dense<0.000000e+00> : vector<1x32xf32>
    %90 = tpu.matmul %88, %2, %cst_35 {dimension_numbers = #tpu.dot_dimension_numbers<[1], [0], [0], [1], [0, 0, 1, 1], [], []>} : vector<1x8xf32>, vector<8x32xf32>, vector<1x32xf32> -> vector<1x32xf32>
    %91 = arith.addf %89, %90 : vector<1x32xf32>
    %cst_36 = arith.constant 0.000000e+00 : f32
    %92 = vector.broadcast %cst_36 : f32 to vector<1x32xf32>
    %93 = arith.maximumf %91, %92 : vector<1x32xf32>
    %cst_37 = arith.constant dense<0.000000e+00> : vector<1x96xf32>
    %94 = tpu.matmul %93, %4, %cst_37 {dimension_numbers = #tpu.dot_dimension_numbers<[1], [0], [0], [1], [0, 0, 1, 1], [], []>} : vector<1x32xf32>, vector<32x96xf32>, vector<1x96xf32> -> vector<1x96xf32>
    %95 = arith.addf %94, %7 : vector<1x96xf32>
    %96 = vector.extract_strided_slice %95 {offsets = [0, 0], sizes = [1, 64], strides = [1, 1]} : vector<1x96xf32> to vector<1x64xf32>
    %97 = vector.extract_strided_slice %76 {offsets = [0, 0], sizes = [1, 64], strides = [1, 1]} : vector<1x104xf32> to vector<1x64xf32>
    %98 = arith.addf %96, %97 : vector<1x64xf32>
    %99 = arith.negf %98 : vector<1x64xf32>
    %100 = math.exp %99 : vector<1x64xf32>
    %cst_38 = arith.constant 1.000000e+00 : f32
    %101 = vector.broadcast %cst_38 : f32 to vector<1x64xf32>
    %102 = arith.addf %101, %100 : vector<1x64xf32>
    %103 = arith.divf %101, %102 : vector<1x64xf32>
    %104 = vector.extract_strided_slice %103 {offsets = [0, 0], sizes = [1, 32], strides = [1, 1]} : vector<1x64xf32> to vector<1x32xf32>
    %105 = vector.extract_strided_slice %103 {offsets = [0, 32], sizes = [1, 32], strides = [1, 1]} : vector<1x64xf32> to vector<1x32xf32>
    %106 = vector.extract_strided_slice %95 {offsets = [0, 64], sizes = [1, 32], strides = [1, 1]} : vector<1x96xf32> to vector<1x32xf32>
    %107 = vector.extract_strided_slice %76 {offsets = [0, 64], sizes = [1, 32], strides = [1, 1]} : vector<1x104xf32> to vector<1x32xf32>
    %108 = arith.mulf %104, %107 : vector<1x32xf32>
    %109 = arith.addf %106, %108 : vector<1x32xf32>
    %110 = math.tanh %109 : vector<1x32xf32>
    %cst_39 = arith.constant 1.000000e+00 : f32
    %111 = vector.broadcast %cst_39 : f32 to vector<1x32xf32>
    %112 = arith.subf %111, %105 : vector<1x32xf32>
    %113 = arith.mulf %112, %110 : vector<1x32xf32>
    %114 = arith.mulf %105, %55 : vector<1x32xf32>
    %115 = arith.addf %113, %114 : vector<1x32xf32>
    %cst_40 = arith.constant dense<0.000000e+00> : vector<1x64xf32>
    %116 = tpu.matmul %115, %5, %cst_40 {dimension_numbers = #tpu.dot_dimension_numbers<[1], [0], [0], [1], [0, 0, 1, 1], [], []>} : vector<1x32xf32>, vector<32x64xf32>, vector<1x64xf32> -> vector<1x64xf32>
    %117 = arith.addf %116, %8 : vector<1x64xf32>
    %cst_41 = arith.constant dense<0xFF800000> : vector<1xf32>
    %118 = vector.multi_reduction <maximumf>, %117, %cst_41 [1] : vector<1x64xf32> to vector<1xf32>
    %119 = vector.shape_cast %118 : vector<1xf32> to vector<1x1xf32>
    %120 = vector.broadcast %119 : vector<1x1xf32> to vector<1x64xf32>
    %121 = arith.subf %117, %120 : vector<1x64xf32>
    %122 = math.exp %121 : vector<1x64xf32>
    %cst_42 = arith.constant dense<0.000000e+00> : vector<1xf32>
    %123 = vector.multi_reduction <add>, %122, %cst_42 [1] : vector<1x64xf32> to vector<1xf32>
    %124 = vector.shape_cast %123 : vector<1xf32> to vector<1x1xf32>
    %125 = math.log %124 : vector<1x1xf32>
    %126 = vector.broadcast %125 : vector<1x1xf32> to vector<1x64xf32>
    %127 = arith.subf %121, %126 : vector<1x64xf32>
    %128 = tpu.concatenate %127, %115, %88, %9 in 1 : vector<1x64xf32>, vector<1x32xf32>, vector<1x8xf32>, vector<1x24xf32> -> vector<1x128xf32>
    %129 = arith.index_cast %c1_i32 : i32 to index
    %c0_43 = arith.constant 0 : index
    %130 = vector.load %arg12[%129, %c0_43] : memref<8x128xf32, #tpu.memory_space<vmem>>, vector<1x128xf32>
    tpu.vector_store %arg12[%129, %c0_43], %128 {strides = array<i32>} : memref<8x128xf32, #tpu.memory_space<vmem>>, vector<1x128xf32>,
    %c2_i32 = arith.constant 2 : i32
    %131 = arith.index_cast %c2_i32 : i32 to index
    %132 = memref.load %arg1[%131] : memref<8xi32, #tpu.memory_space<smem>>
    %133 = arith.index_cast %132 : i32 to index
    %c0_44 = arith.constant 0 : index
    %134 = vector.load %arg2[%133, %c0_44] : memref<64x40xf32, #tpu.memory_space<vmem>>, vector<1x40xf32>
    %cst_45 = arith.constant dense<0.000000e+00> : vector<1x104xf32>
    %135 = tpu.matmul %115, %3, %cst_45 {dimension_numbers = #tpu.dot_dimension_numbers<[1], [0], [0], [1], [0, 0, 1, 1], [], []>} : vector<1x32xf32>, vector<32x104xf32>, vector<1x104xf32> -> vector<1x104xf32>
    %136 = arith.addf %135, %6 : vector<1x104xf32>
    %137 = vector.extract_strided_slice %134 {offsets = [0, 0], sizes = [1, 8], strides = [1, 1]} : vector<1x40xf32> to vector<1x8xf32>
    %138 = vector.extract_strided_slice %136 {offsets = [0, 96], sizes = [1, 8], strides = [1, 1]} : vector<1x104xf32> to vector<1x8xf32>
    %139 = arith.addf %137, %138 : vector<1x8xf32>
    %cst_46 = arith.constant dense<0xFF800000> : vector<1xf32>
    %140 = vector.multi_reduction <maximumf>, %139, %cst_46 [1] : vector<1x8xf32> to vector<1xf32>
    %141 = vector.shape_cast %140 : vector<1xf32> to vector<1x1xf32>
    %142 = vector.broadcast %141 : vector<1x1xf32> to vector<1x8xf32>
    %143 = arith.subf %139, %142 : vector<1x8xf32>
    %144 = math.exp %143 : vector<1x8xf32>
    %cst_47 = arith.constant dense<0.000000e+00> : vector<1xf32>
    %145 = vector.multi_reduction <add>, %144, %cst_47 [1] : vector<1x8xf32> to vector<1xf32>
    %146 = vector.shape_cast %145 : vector<1xf32> to vector<1x1xf32>
    %147 = vector.broadcast %146 : vector<1x1xf32> to vector<1x8xf32>
    %148 = arith.divf %144, %147 : vector<1x8xf32>
    %149 = vector.extract_strided_slice %134 {offsets = [0, 8], sizes = [1, 32], strides = [1, 1]} : vector<1x40xf32> to vector<1x32xf32>
    %cst_48 = arith.constant dense<0.000000e+00> : vector<1x32xf32>
    %150 = tpu.matmul %148, %2, %cst_48 {dimension_numbers = #tpu.dot_dimension_numbers<[1], [0], [0], [1], [0, 0, 1, 1], [], []>} : vector<1x8xf32>, vector<8x32xf32>, vector<1x32xf32> -> vector<1x32xf32>
    %151 = arith.addf %149, %150 : vector<1x32xf32>
    %cst_49 = arith.constant 0.000000e+00 : f32
    %152 = vector.broadcast %cst_49 : f32 to vector<1x32xf32>
    %153 = arith.maximumf %151, %152 : vector<1x32xf32>
    %cst_50 = arith.constant dense<0.000000e+00> : vector<1x96xf32>
    %154 = tpu.matmul %153, %4, %cst_50 {dimension_numbers = #tpu.dot_dimension_numbers<[1], [0], [0], [1], [0, 0, 1, 1], [], []>} : vector<1x32xf32>, vector<32x96xf32>, vector<1x96xf32> -> vector<1x96xf32>
    %155 = arith.addf %154, %7 : vector<1x96xf32>
    %156 = vector.extract_strided_slice %155 {offsets = [0, 0], sizes = [1, 64], strides = [1, 1]} : vector<1x96xf32> to vector<1x64xf32>
    %157 = vector.extract_strided_slice %136 {offsets = [0, 0], sizes = [1, 64], strides = [1, 1]} : vector<1x104xf32> to vector<1x64xf32>
    %158 = arith.addf %156, %157 : vector<1x64xf32>
    %159 = arith.negf %158 : vector<1x64xf32>
    %160 = math.exp %159 : vector<1x64xf32>
    %cst_51 = arith.constant 1.000000e+00 : f32
    %161 = vector.broadcast %cst_51 : f32 to vector<1x64xf32>
    %162 = arith.addf %161, %160 : vector<1x64xf32>
    %163 = arith.divf %161, %162 : vector<1x64xf32>
    %164 = vector.extract_strided_slice %163 {offsets = [0, 0], sizes = [1, 32], strides = [1, 1]} : vector<1x64xf32> to vector<1x32xf32>
    %165 = vector.extract_strided_slice %163 {offsets = [0, 32], sizes = [1, 32], strides = [1, 1]} : vector<1x64xf32> to vector<1x32xf32>
    %166 = vector.extract_strided_slice %155 {offsets = [0, 64], sizes = [1, 32], strides = [1, 1]} : vector<1x96xf32> to vector<1x32xf32>
    %167 = vector.extract_strided_slice %136 {offsets = [0, 64], sizes = [1, 32], strides = [1, 1]} : vector<1x104xf32> to vector<1x32xf32>
    %168 = arith.mulf %164, %167 : vector<1x32xf32>
    %169 = arith.addf %166, %168 : vector<1x32xf32>
    %170 = math.tanh %169 : vector<1x32xf32>
    %cst_52 = arith.constant 1.000000e+00 : f32
    %171 = vector.broadcast %cst_52 : f32 to vector<1x32xf32>
    %172 = arith.subf %171, %165 : vector<1x32xf32>
    %173 = arith.mulf %172, %170 : vector<1x32xf32>
    %174 = arith.mulf %165, %115 : vector<1x32xf32>
    %175 = arith.addf %173, %174 : vector<1x32xf32>
    %cst_53 = arith.constant dense<0.000000e+00> : vector<1x64xf32>
    %176 = tpu.matmul %175, %5, %cst_53 {dimension_numbers = #tpu.dot_dimension_numbers<[1], [0], [0], [1], [0, 0, 1, 1], [], []>} : vector<1x32xf32>, vector<32x64xf32>, vector<1x64xf32> -> vector<1x64xf32>
    %177 = arith.addf %176, %8 : vector<1x64xf32>
    %cst_54 = arith.constant dense<0xFF800000> : vector<1xf32>
    %178 = vector.multi_reduction <maximumf>, %177, %cst_54 [1] : vector<1x64xf32> to vector<1xf32>
    %179 = vector.shape_cast %178 : vector<1xf32> to vector<1x1xf32>
    %180 = vector.broadcast %179 : vector<1x1xf32> to vector<1x64xf32>
    %181 = arith.subf %177, %180 : vector<1x64xf32>
    %182 = math.exp %181 : vector<1x64xf32>
    %cst_55 = arith.constant dense<0.000000e+00> : vector<1xf32>
    %183 = vector.multi_reduction <add>, %182, %cst_55 [1] : vector<1x64xf32> to vector<1xf32>
    %184 = vector.shape_cast %183 : vector<1xf32> to vector<1x1xf32>
    %185 = math.log %184 : vector<1x1xf32>
    %186 = vector.broadcast %185 : vector<1x1xf32> to vector<1x64xf32>
    %187 = arith.subf %181, %186 : vector<1x64xf32>
    %188 = tpu.concatenate %187, %175, %148, %9 in 1 : vector<1x64xf32>, vector<1x32xf32>, vector<1x8xf32>, vector<1x24xf32> -> vector<1x128xf32>
    %189 = arith.index_cast %c2_i32 : i32 to index
    %c0_56 = arith.constant 0 : index
    %190 = vector.load %arg12[%189, %c0_56] : memref<8x128xf32, #tpu.memory_space<vmem>>, vector<1x128xf32>
    tpu.vector_store %arg12[%189, %c0_56], %188 {strides = array<i32>} : memref<8x128xf32, #tpu.memory_space<vmem>>, vector<1x128xf32>,
    %c3_i32 = arith.constant 3 : i32
    %191 = arith.index_cast %c3_i32 : i32 to index
    %192 = memref.load %arg1[%191] : memref<8xi32, #tpu.memory_space<smem>>
    %193 = arith.index_cast %192 : i32 to index
    %c0_57 = arith.constant 0 : index
    %194 = vector.load %arg2[%193, %c0_57] : memref<64x40xf32, #tpu.memory_space<vmem>>, vector<1x40xf32>
    %cst_58 = arith.constant dense<0.000000e+00> : vector<1x104xf32>
    %195 = tpu.matmul %175, %3, %cst_58 {dimension_numbers = #tpu.dot_dimension_numbers<[1], [0], [0], [1], [0, 0, 1, 1], [], []>} : vector<1x32xf32>, vector<32x104xf32>, vector<1x104xf32> -> vector<1x104xf32>
    %196 = arith.addf %195, %6 : vector<1x104xf32>
    %197 = vector.extract_strided_slice %194 {offsets = [0, 0], sizes = [1, 8], strides = [1, 1]} : vector<1x40xf32> to vector<1x8xf32>
    %198 = vector.extract_strided_slice %196 {offsets = [0, 96], sizes = [1, 8], strides = [1, 1]} : vector<1x104xf32> to vector<1x8xf32>
    %199 = arith.addf %197, %198 : vector<1x8xf32>
    %cst_59 = arith.constant dense<0xFF800000> : vector<1xf32>
    %200 = vector.multi_reduction <maximumf>, %199, %cst_59 [1] : vector<1x8xf32> to vector<1xf32>
    %201 = vector.shape_cast %200 : vector<1xf32> to vector<1x1xf32>
    %202 = vector.broadcast %201 : vector<1x1xf32> to vector<1x8xf32>
    %203 = arith.subf %199, %202 : vector<1x8xf32>
    %204 = math.exp %203 : vector<1x8xf32>
    %cst_60 = arith.constant dense<0.000000e+00> : vector<1xf32>
    %205 = vector.multi_reduction <add>, %204, %cst_60 [1] : vector<1x8xf32> to vector<1xf32>
    %206 = vector.shape_cast %205 : vector<1xf32> to vector<1x1xf32>
    %207 = vector.broadcast %206 : vector<1x1xf32> to vector<1x8xf32>
    %208 = arith.divf %204, %207 : vector<1x8xf32>
    %209 = vector.extract_strided_slice %194 {offsets = [0, 8], sizes = [1, 32], strides = [1, 1]} : vector<1x40xf32> to vector<1x32xf32>
    %cst_61 = arith.constant dense<0.000000e+00> : vector<1x32xf32>
    %210 = tpu.matmul %208, %2, %cst_61 {dimension_numbers = #tpu.dot_dimension_numbers<[1], [0], [0], [1], [0, 0, 1, 1], [], []>} : vector<1x8xf32>, vector<8x32xf32>, vector<1x32xf32> -> vector<1x32xf32>
    %211 = arith.addf %209, %210 : vector<1x32xf32>
    %cst_62 = arith.constant 0.000000e+00 : f32
    %212 = vector.broadcast %cst_62 : f32 to vector<1x32xf32>
    %213 = arith.maximumf %211, %212 : vector<1x32xf32>
    %cst_63 = arith.constant dense<0.000000e+00> : vector<1x96xf32>
    %214 = tpu.matmul %213, %4, %cst_63 {dimension_numbers = #tpu.dot_dimension_numbers<[1], [0], [0], [1], [0, 0, 1, 1], [], []>} : vector<1x32xf32>, vector<32x96xf32>, vector<1x96xf32> -> vector<1x96xf32>
    %215 = arith.addf %214, %7 : vector<1x96xf32>
    %216 = vector.extract_strided_slice %215 {offsets = [0, 0], sizes = [1, 64], strides = [1, 1]} : vector<1x96xf32> to vector<1x64xf32>
    %217 = vector.extract_strided_slice %196 {offsets = [0, 0], sizes = [1, 64], strides = [1, 1]} : vector<1x104xf32> to vector<1x64xf32>
    %218 = arith.addf %216, %217 : vector<1x64xf32>
    %219 = arith.negf %218 : vector<1x64xf32>
    %220 = math.exp %219 : vector<1x64xf32>
    %cst_64 = arith.constant 1.000000e+00 : f32
    %221 = vector.broadcast %cst_64 : f32 to vector<1x64xf32>
    %222 = arith.addf %221, %220 : vector<1x64xf32>
    %223 = arith.divf %221, %222 : vector<1x64xf32>
    %224 = vector.extract_strided_slice %223 {offsets = [0, 0], sizes = [1, 32], strides = [1, 1]} : vector<1x64xf32> to vector<1x32xf32>
    %225 = vector.extract_strided_slice %223 {offsets = [0, 32], sizes = [1, 32], strides = [1, 1]} : vector<1x64xf32> to vector<1x32xf32>
    %226 = vector.extract_strided_slice %215 {offsets = [0, 64], sizes = [1, 32], strides = [1, 1]} : vector<1x96xf32> to vector<1x32xf32>
    %227 = vector.extract_strided_slice %196 {offsets = [0, 64], sizes = [1, 32], strides = [1, 1]} : vector<1x104xf32> to vector<1x32xf32>
    %228 = arith.mulf %224, %227 : vector<1x32xf32>
    %229 = arith.addf %226, %228 : vector<1x32xf32>
    %230 = math.tanh %229 : vector<1x32xf32>
    %cst_65 = arith.constant 1.000000e+00 : f32
    %231 = vector.broadcast %cst_65 : f32 to vector<1x32xf32>
    %232 = arith.subf %231, %225 : vector<1x32xf32>
    %233 = arith.mulf %232, %230 : vector<1x32xf32>
    %234 = arith.mulf %225, %175 : vector<1x32xf32>
    %235 = arith.addf %233, %234 : vector<1x32xf32>
    %cst_66 = arith.constant dense<0.000000e+00> : vector<1x64xf32>
    %236 = tpu.matmul %235, %5, %cst_66 {dimension_numbers = #tpu.dot_dimension_numbers<[1], [0], [0], [1], [0, 0, 1, 1], [], []>} : vector<1x32xf32>, vector<32x64xf32>, vector<1x64xf32> -> vector<1x64xf32>
    %237 = arith.addf %236, %8 : vector<1x64xf32>
    %cst_67 = arith.constant dense<0xFF800000> : vector<1xf32>
    %238 = vector.multi_reduction <maximumf>, %237, %cst_67 [1] : vector<1x64xf32> to vector<1xf32>
    %239 = vector.shape_cast %238 : vector<1xf32> to vector<1x1xf32>
    %240 = vector.broadcast %239 : vector<1x1xf32> to vector<1x64xf32>
    %241 = arith.subf %237, %240 : vector<1x64xf32>
    %242 = math.exp %241 : vector<1x64xf32>
    %cst_68 = arith.constant dense<0.000000e+00> : vector<1xf32>
    %243 = vector.multi_reduction <add>, %242, %cst_68 [1] : vector<1x64xf32> to vector<1xf32>
    %244 = vector.shape_cast %243 : vector<1xf32> to vector<1x1xf32>
    %245 = math.log %244 : vector<1x1xf32>
    %246 = vector.broadcast %245 : vector<1x1xf32> to vector<1x64xf32>
    %247 = arith.subf %241, %246 : vector<1x64xf32>
    %248 = tpu.concatenate %247, %235, %208, %9 in 1 : vector<1x64xf32>, vector<1x32xf32>, vector<1x8xf32>, vector<1x24xf32> -> vector<1x128xf32>
    %249 = arith.index_cast %c3_i32 : i32 to index
    %c0_69 = arith.constant 0 : index
    %250 = vector.load %arg12[%249, %c0_69] : memref<8x128xf32, #tpu.memory_space<vmem>>, vector<1x128xf32>
    tpu.vector_store %arg12[%249, %c0_69], %248 {strides = array<i32>} : memref<8x128xf32, #tpu.memory_space<vmem>>, vector<1x128xf32>,
    %c4_i32 = arith.constant 4 : i32
    %251 = arith.index_cast %c4_i32 : i32 to index
    %252 = memref.load %arg1[%251] : memref<8xi32, #tpu.memory_space<smem>>
    %253 = arith.index_cast %252 : i32 to index
    %c0_70 = arith.constant 0 : index
    %254 = vector.load %arg2[%253, %c0_70] : memref<64x40xf32, #tpu.memory_space<vmem>>, vector<1x40xf32>
    %cst_71 = arith.constant dense<0.000000e+00> : vector<1x104xf32>
    %255 = tpu.matmul %235, %3, %cst_71 {dimension_numbers = #tpu.dot_dimension_numbers<[1], [0], [0], [1], [0, 0, 1, 1], [], []>} : vector<1x32xf32>, vector<32x104xf32>, vector<1x104xf32> -> vector<1x104xf32>
    %256 = arith.addf %255, %6 : vector<1x104xf32>
    %257 = vector.extract_strided_slice %254 {offsets = [0, 0], sizes = [1, 8], strides = [1, 1]} : vector<1x40xf32> to vector<1x8xf32>
    %258 = vector.extract_strided_slice %256 {offsets = [0, 96], sizes = [1, 8], strides = [1, 1]} : vector<1x104xf32> to vector<1x8xf32>
    %259 = arith.addf %257, %258 : vector<1x8xf32>
    %cst_72 = arith.constant dense<0xFF800000> : vector<1xf32>
    %260 = vector.multi_reduction <maximumf>, %259, %cst_72 [1] : vector<1x8xf32> to vector<1xf32>
    %261 = vector.shape_cast %260 : vector<1xf32> to vector<1x1xf32>
    %262 = vector.broadcast %261 : vector<1x1xf32> to vector<1x8xf32>
    %263 = arith.subf %259, %262 : vector<1x8xf32>
    %264 = math.exp %263 : vector<1x8xf32>
    %cst_73 = arith.constant dense<0.000000e+00> : vector<1xf32>
    %265 = vector.multi_reduction <add>, %264, %cst_73 [1] : vector<1x8xf32> to vector<1xf32>
    %266 = vector.shape_cast %265 : vector<1xf32> to vector<1x1xf32>
    %267 = vector.broadcast %266 : vector<1x1xf32> to vector<1x8xf32>
    %268 = arith.divf %264, %267 : vector<1x8xf32>
    %269 = vector.extract_strided_slice %254 {offsets = [0, 8], sizes = [1, 32], strides = [1, 1]} : vector<1x40xf32> to vector<1x32xf32>
    %cst_74 = arith.constant dense<0.000000e+00> : vector<1x32xf32>
    %270 = tpu.matmul %268, %2, %cst_74 {dimension_numbers = #tpu.dot_dimension_numbers<[1], [0], [0], [1], [0, 0, 1, 1], [], []>} : vector<1x8xf32>, vector<8x32xf32>, vector<1x32xf32> -> vector<1x32xf32>
    %271 = arith.addf %269, %270 : vector<1x32xf32>
    %cst_75 = arith.constant 0.000000e+00 : f32
    %272 = vector.broadcast %cst_75 : f32 to vector<1x32xf32>
    %273 = arith.maximumf %271, %272 : vector<1x32xf32>
    %cst_76 = arith.constant dense<0.000000e+00> : vector<1x96xf32>
    %274 = tpu.matmul %273, %4, %cst_76 {dimension_numbers = #tpu.dot_dimension_numbers<[1], [0], [0], [1], [0, 0, 1, 1], [], []>} : vector<1x32xf32>, vector<32x96xf32>, vector<1x96xf32> -> vector<1x96xf32>
    %275 = arith.addf %274, %7 : vector<1x96xf32>
    %276 = vector.extract_strided_slice %275 {offsets = [0, 0], sizes = [1, 64], strides = [1, 1]} : vector<1x96xf32> to vector<1x64xf32>
    %277 = vector.extract_strided_slice %256 {offsets = [0, 0], sizes = [1, 64], strides = [1, 1]} : vector<1x104xf32> to vector<1x64xf32>
    %278 = arith.addf %276, %277 : vector<1x64xf32>
    %279 = arith.negf %278 : vector<1x64xf32>
    %280 = math.exp %279 : vector<1x64xf32>
    %cst_77 = arith.constant 1.000000e+00 : f32
    %281 = vector.broadcast %cst_77 : f32 to vector<1x64xf32>
    %282 = arith.addf %281, %280 : vector<1x64xf32>
    %283 = arith.divf %281, %282 : vector<1x64xf32>
    %284 = vector.extract_strided_slice %283 {offsets = [0, 0], sizes = [1, 32], strides = [1, 1]} : vector<1x64xf32> to vector<1x32xf32>
    %285 = vector.extract_strided_slice %283 {offsets = [0, 32], sizes = [1, 32], strides = [1, 1]} : vector<1x64xf32> to vector<1x32xf32>
    %286 = vector.extract_strided_slice %275 {offsets = [0, 64], sizes = [1, 32], strides = [1, 1]} : vector<1x96xf32> to vector<1x32xf32>
    %287 = vector.extract_strided_slice %256 {offsets = [0, 64], sizes = [1, 32], strides = [1, 1]} : vector<1x104xf32> to vector<1x32xf32>
    %288 = arith.mulf %284, %287 : vector<1x32xf32>
    %289 = arith.addf %286, %288 : vector<1x32xf32>
    %290 = math.tanh %289 : vector<1x32xf32>
    %cst_78 = arith.constant 1.000000e+00 : f32
    %291 = vector.broadcast %cst_78 : f32 to vector<1x32xf32>
    %292 = arith.subf %291, %285 : vector<1x32xf32>
    %293 = arith.mulf %292, %290 : vector<1x32xf32>
    %294 = arith.mulf %285, %235 : vector<1x32xf32>
    %295 = arith.addf %293, %294 : vector<1x32xf32>
    %cst_79 = arith.constant dense<0.000000e+00> : vector<1x64xf32>
    %296 = tpu.matmul %295, %5, %cst_79 {dimension_numbers = #tpu.dot_dimension_numbers<[1], [0], [0], [1], [0, 0, 1, 1], [], []>} : vector<1x32xf32>, vector<32x64xf32>, vector<1x64xf32> -> vector<1x64xf32>
    %297 = arith.addf %296, %8 : vector<1x64xf32>
    %cst_80 = arith.constant dense<0xFF800000> : vector<1xf32>
    %298 = vector.multi_reduction <maximumf>, %297, %cst_80 [1] : vector<1x64xf32> to vector<1xf32>
    %299 = vector.shape_cast %298 : vector<1xf32> to vector<1x1xf32>
    %300 = vector.broadcast %299 : vector<1x1xf32> to vector<1x64xf32>
    %301 = arith.subf %297, %300 : vector<1x64xf32>
    %302 = math.exp %301 : vector<1x64xf32>
    %cst_81 = arith.constant dense<0.000000e+00> : vector<1xf32>
    %303 = vector.multi_reduction <add>, %302, %cst_81 [1] : vector<1x64xf32> to vector<1xf32>
    %304 = vector.shape_cast %303 : vector<1xf32> to vector<1x1xf32>
    %305 = math.log %304 : vector<1x1xf32>
    %306 = vector.broadcast %305 : vector<1x1xf32> to vector<1x64xf32>
    %307 = arith.subf %301, %306 : vector<1x64xf32>
    %308 = tpu.concatenate %307, %295, %268, %9 in 1 : vector<1x64xf32>, vector<1x32xf32>, vector<1x8xf32>, vector<1x24xf32> -> vector<1x128xf32>
    %309 = arith.index_cast %c4_i32 : i32 to index
    %c0_82 = arith.constant 0 : index
    %310 = vector.load %arg12[%309, %c0_82] : memref<8x128xf32, #tpu.memory_space<vmem>>, vector<1x128xf32>
    tpu.vector_store %arg12[%309, %c0_82], %308 {strides = array<i32>} : memref<8x128xf32, #tpu.memory_space<vmem>>, vector<1x128xf32>,
    %c5_i32 = arith.constant 5 : i32
    %311 = arith.index_cast %c5_i32 : i32 to index
    %312 = memref.load %arg1[%311] : memref<8xi32, #tpu.memory_space<smem>>
    %313 = arith.index_cast %312 : i32 to index
    %c0_83 = arith.constant 0 : index
    %314 = vector.load %arg2[%313, %c0_83] : memref<64x40xf32, #tpu.memory_space<vmem>>, vector<1x40xf32>
    %cst_84 = arith.constant dense<0.000000e+00> : vector<1x104xf32>
    %315 = tpu.matmul %295, %3, %cst_84 {dimension_numbers = #tpu.dot_dimension_numbers<[1], [0], [0], [1], [0, 0, 1, 1], [], []>} : vector<1x32xf32>, vector<32x104xf32>, vector<1x104xf32> -> vector<1x104xf32>
    %316 = arith.addf %315, %6 : vector<1x104xf32>
    %317 = vector.extract_strided_slice %314 {offsets = [0, 0], sizes = [1, 8], strides = [1, 1]} : vector<1x40xf32> to vector<1x8xf32>
    %318 = vector.extract_strided_slice %316 {offsets = [0, 96], sizes = [1, 8], strides = [1, 1]} : vector<1x104xf32> to vector<1x8xf32>
    %319 = arith.addf %317, %318 : vector<1x8xf32>
    %cst_85 = arith.constant dense<0xFF800000> : vector<1xf32>
    %320 = vector.multi_reduction <maximumf>, %319, %cst_85 [1] : vector<1x8xf32> to vector<1xf32>
    %321 = vector.shape_cast %320 : vector<1xf32> to vector<1x1xf32>
    %322 = vector.broadcast %321 : vector<1x1xf32> to vector<1x8xf32>
    %323 = arith.subf %319, %322 : vector<1x8xf32>
    %324 = math.exp %323 : vector<1x8xf32>
    %cst_86 = arith.constant dense<0.000000e+00> : vector<1xf32>
    %325 = vector.multi_reduction <add>, %324, %cst_86 [1] : vector<1x8xf32> to vector<1xf32>
    %326 = vector.shape_cast %325 : vector<1xf32> to vector<1x1xf32>
    %327 = vector.broadcast %326 : vector<1x1xf32> to vector<1x8xf32>
    %328 = arith.divf %324, %327 : vector<1x8xf32>
    %329 = vector.extract_strided_slice %314 {offsets = [0, 8], sizes = [1, 32], strides = [1, 1]} : vector<1x40xf32> to vector<1x32xf32>
    %cst_87 = arith.constant dense<0.000000e+00> : vector<1x32xf32>
    %330 = tpu.matmul %328, %2, %cst_87 {dimension_numbers = #tpu.dot_dimension_numbers<[1], [0], [0], [1], [0, 0, 1, 1], [], []>} : vector<1x8xf32>, vector<8x32xf32>, vector<1x32xf32> -> vector<1x32xf32>
    %331 = arith.addf %329, %330 : vector<1x32xf32>
    %cst_88 = arith.constant 0.000000e+00 : f32
    %332 = vector.broadcast %cst_88 : f32 to vector<1x32xf32>
    %333 = arith.maximumf %331, %332 : vector<1x32xf32>
    %cst_89 = arith.constant dense<0.000000e+00> : vector<1x96xf32>
    %334 = tpu.matmul %333, %4, %cst_89 {dimension_numbers = #tpu.dot_dimension_numbers<[1], [0], [0], [1], [0, 0, 1, 1], [], []>} : vector<1x32xf32>, vector<32x96xf32>, vector<1x96xf32> -> vector<1x96xf32>
    %335 = arith.addf %334, %7 : vector<1x96xf32>
    %336 = vector.extract_strided_slice %335 {offsets = [0, 0], sizes = [1, 64], strides = [1, 1]} : vector<1x96xf32> to vector<1x64xf32>
    %337 = vector.extract_strided_slice %316 {offsets = [0, 0], sizes = [1, 64], strides = [1, 1]} : vector<1x104xf32> to vector<1x64xf32>
    %338 = arith.addf %336, %337 : vector<1x64xf32>
    %339 = arith.negf %338 : vector<1x64xf32>
    %340 = math.exp %339 : vector<1x64xf32>
    %cst_90 = arith.constant 1.000000e+00 : f32
    %341 = vector.broadcast %cst_90 : f32 to vector<1x64xf32>
    %342 = arith.addf %341, %340 : vector<1x64xf32>
    %343 = arith.divf %341, %342 : vector<1x64xf32>
    %344 = vector.extract_strided_slice %343 {offsets = [0, 0], sizes = [1, 32], strides = [1, 1]} : vector<1x64xf32> to vector<1x32xf32>
    %345 = vector.extract_strided_slice %343 {offsets = [0, 32], sizes = [1, 32], strides = [1, 1]} : vector<1x64xf32> to vector<1x32xf32>
    %346 = vector.extract_strided_slice %335 {offsets = [0, 64], sizes = [1, 32], strides = [1, 1]} : vector<1x96xf32> to vector<1x32xf32>
    %347 = vector.extract_strided_slice %316 {offsets = [0, 64], sizes = [1, 32], strides = [1, 1]} : vector<1x104xf32> to vector<1x32xf32>
    %348 = arith.mulf %344, %347 : vector<1x32xf32>
    %349 = arith.addf %346, %348 : vector<1x32xf32>
    %350 = math.tanh %349 : vector<1x32xf32>
    %cst_91 = arith.constant 1.000000e+00 : f32
    %351 = vector.broadcast %cst_91 : f32 to vector<1x32xf32>
    %352 = arith.subf %351, %345 : vector<1x32xf32>
    %353 = arith.mulf %352, %350 : vector<1x32xf32>
    %354 = arith.mulf %345, %295 : vector<1x32xf32>
    %355 = arith.addf %353, %354 : vector<1x32xf32>
    %cst_92 = arith.constant dense<0.000000e+00> : vector<1x64xf32>
    %356 = tpu.matmul %355, %5, %cst_92 {dimension_numbers = #tpu.dot_dimension_numbers<[1], [0], [0], [1], [0, 0, 1, 1], [], []>} : vector<1x32xf32>, vector<32x64xf32>, vector<1x64xf32> -> vector<1x64xf32>
    %357 = arith.addf %356, %8 : vector<1x64xf32>
    %cst_93 = arith.constant dense<0xFF800000> : vector<1xf32>
    %358 = vector.multi_reduction <maximumf>, %357, %cst_93 [1] : vector<1x64xf32> to vector<1xf32>
    %359 = vector.shape_cast %358 : vector<1xf32> to vector<1x1xf32>
    %360 = vector.broadcast %359 : vector<1x1xf32> to vector<1x64xf32>
    %361 = arith.subf %357, %360 : vector<1x64xf32>
    %362 = math.exp %361 : vector<1x64xf32>
    %cst_94 = arith.constant dense<0.000000e+00> : vector<1xf32>
    %363 = vector.multi_reduction <add>, %362, %cst_94 [1] : vector<1x64xf32> to vector<1xf32>
    %364 = vector.shape_cast %363 : vector<1xf32> to vector<1x1xf32>
    %365 = math.log %364 : vector<1x1xf32>
    %366 = vector.broadcast %365 : vector<1x1xf32> to vector<1x64xf32>
    %367 = arith.subf %361, %366 : vector<1x64xf32>
    %368 = tpu.concatenate %367, %355, %328, %9 in 1 : vector<1x64xf32>, vector<1x32xf32>, vector<1x8xf32>, vector<1x24xf32> -> vector<1x128xf32>
    %369 = arith.index_cast %c5_i32 : i32 to index
    %c0_95 = arith.constant 0 : index
    %370 = vector.load %arg12[%369, %c0_95] : memref<8x128xf32, #tpu.memory_space<vmem>>, vector<1x128xf32>
    tpu.vector_store %arg12[%369, %c0_95], %368 {strides = array<i32>} : memref<8x128xf32, #tpu.memory_space<vmem>>, vector<1x128xf32>,
    %c6_i32 = arith.constant 6 : i32
    %371 = arith.index_cast %c6_i32 : i32 to index
    %372 = memref.load %arg1[%371] : memref<8xi32, #tpu.memory_space<smem>>
    %373 = arith.index_cast %372 : i32 to index
    %c0_96 = arith.constant 0 : index
    %374 = vector.load %arg2[%373, %c0_96] : memref<64x40xf32, #tpu.memory_space<vmem>>, vector<1x40xf32>
    %cst_97 = arith.constant dense<0.000000e+00> : vector<1x104xf32>
    %375 = tpu.matmul %355, %3, %cst_97 {dimension_numbers = #tpu.dot_dimension_numbers<[1], [0], [0], [1], [0, 0, 1, 1], [], []>} : vector<1x32xf32>, vector<32x104xf32>, vector<1x104xf32> -> vector<1x104xf32>
    %376 = arith.addf %375, %6 : vector<1x104xf32>
    %377 = vector.extract_strided_slice %374 {offsets = [0, 0], sizes = [1, 8], strides = [1, 1]} : vector<1x40xf32> to vector<1x8xf32>
    %378 = vector.extract_strided_slice %376 {offsets = [0, 96], sizes = [1, 8], strides = [1, 1]} : vector<1x104xf32> to vector<1x8xf32>
    %379 = arith.addf %377, %378 : vector<1x8xf32>
    %cst_98 = arith.constant dense<0xFF800000> : vector<1xf32>
    %380 = vector.multi_reduction <maximumf>, %379, %cst_98 [1] : vector<1x8xf32> to vector<1xf32>
    %381 = vector.shape_cast %380 : vector<1xf32> to vector<1x1xf32>
    %382 = vector.broadcast %381 : vector<1x1xf32> to vector<1x8xf32>
    %383 = arith.subf %379, %382 : vector<1x8xf32>
    %384 = math.exp %383 : vector<1x8xf32>
    %cst_99 = arith.constant dense<0.000000e+00> : vector<1xf32>
    %385 = vector.multi_reduction <add>, %384, %cst_99 [1] : vector<1x8xf32> to vector<1xf32>
    %386 = vector.shape_cast %385 : vector<1xf32> to vector<1x1xf32>
    %387 = vector.broadcast %386 : vector<1x1xf32> to vector<1x8xf32>
    %388 = arith.divf %384, %387 : vector<1x8xf32>
    %389 = vector.extract_strided_slice %374 {offsets = [0, 8], sizes = [1, 32], strides = [1, 1]} : vector<1x40xf32> to vector<1x32xf32>
    %cst_100 = arith.constant dense<0.000000e+00> : vector<1x32xf32>
    %390 = tpu.matmul %388, %2, %cst_100 {dimension_numbers = #tpu.dot_dimension_numbers<[1], [0], [0], [1], [0, 0, 1, 1], [], []>} : vector<1x8xf32>, vector<8x32xf32>, vector<1x32xf32> -> vector<1x32xf32>
    %391 = arith.addf %389, %390 : vector<1x32xf32>
    %cst_101 = arith.constant 0.000000e+00 : f32
    %392 = vector.broadcast %cst_101 : f32 to vector<1x32xf32>
    %393 = arith.maximumf %391, %392 : vector<1x32xf32>
    %cst_102 = arith.constant dense<0.000000e+00> : vector<1x96xf32>
    %394 = tpu.matmul %393, %4, %cst_102 {dimension_numbers = #tpu.dot_dimension_numbers<[1], [0], [0], [1], [0, 0, 1, 1], [], []>} : vector<1x32xf32>, vector<32x96xf32>, vector<1x96xf32> -> vector<1x96xf32>
    %395 = arith.addf %394, %7 : vector<1x96xf32>
    %396 = vector.extract_strided_slice %395 {offsets = [0, 0], sizes = [1, 64], strides = [1, 1]} : vector<1x96xf32> to vector<1x64xf32>
    %397 = vector.extract_strided_slice %376 {offsets = [0, 0], sizes = [1, 64], strides = [1, 1]} : vector<1x104xf32> to vector<1x64xf32>
    %398 = arith.addf %396, %397 : vector<1x64xf32>
    %399 = arith.negf %398 : vector<1x64xf32>
    %400 = math.exp %399 : vector<1x64xf32>
    %cst_103 = arith.constant 1.000000e+00 : f32
    %401 = vector.broadcast %cst_103 : f32 to vector<1x64xf32>
    %402 = arith.addf %401, %400 : vector<1x64xf32>
    %403 = arith.divf %401, %402 : vector<1x64xf32>
    %404 = vector.extract_strided_slice %403 {offsets = [0, 0], sizes = [1, 32], strides = [1, 1]} : vector<1x64xf32> to vector<1x32xf32>
    %405 = vector.extract_strided_slice %403 {offsets = [0, 32], sizes = [1, 32], strides = [1, 1]} : vector<1x64xf32> to vector<1x32xf32>
    %406 = vector.extract_strided_slice %395 {offsets = [0, 64], sizes = [1, 32], strides = [1, 1]} : vector<1x96xf32> to vector<1x32xf32>
    %407 = vector.extract_strided_slice %376 {offsets = [0, 64], sizes = [1, 32], strides = [1, 1]} : vector<1x104xf32> to vector<1x32xf32>
    %408 = arith.mulf %404, %407 : vector<1x32xf32>
    %409 = arith.addf %406, %408 : vector<1x32xf32>
    %410 = math.tanh %409 : vector<1x32xf32>
    %cst_104 = arith.constant 1.000000e+00 : f32
    %411 = vector.broadcast %cst_104 : f32 to vector<1x32xf32>
    %412 = arith.subf %411, %405 : vector<1x32xf32>
    %413 = arith.mulf %412, %410 : vector<1x32xf32>
    %414 = arith.mulf %405, %355 : vector<1x32xf32>
    %415 = arith.addf %413, %414 : vector<1x32xf32>
    %cst_105 = arith.constant dense<0.000000e+00> : vector<1x64xf32>
    %416 = tpu.matmul %415, %5, %cst_105 {dimension_numbers = #tpu.dot_dimension_numbers<[1], [0], [0], [1], [0, 0, 1, 1], [], []>} : vector<1x32xf32>, vector<32x64xf32>, vector<1x64xf32> -> vector<1x64xf32>
    %417 = arith.addf %416, %8 : vector<1x64xf32>
    %cst_106 = arith.constant dense<0xFF800000> : vector<1xf32>
    %418 = vector.multi_reduction <maximumf>, %417, %cst_106 [1] : vector<1x64xf32> to vector<1xf32>
    %419 = vector.shape_cast %418 : vector<1xf32> to vector<1x1xf32>
    %420 = vector.broadcast %419 : vector<1x1xf32> to vector<1x64xf32>
    %421 = arith.subf %417, %420 : vector<1x64xf32>
    %422 = math.exp %421 : vector<1x64xf32>
    %cst_107 = arith.constant dense<0.000000e+00> : vector<1xf32>
    %423 = vector.multi_reduction <add>, %422, %cst_107 [1] : vector<1x64xf32> to vector<1xf32>
    %424 = vector.shape_cast %423 : vector<1xf32> to vector<1x1xf32>
    %425 = math.log %424 : vector<1x1xf32>
    %426 = vector.broadcast %425 : vector<1x1xf32> to vector<1x64xf32>
    %427 = arith.subf %421, %426 : vector<1x64xf32>
    %428 = tpu.concatenate %427, %415, %388, %9 in 1 : vector<1x64xf32>, vector<1x32xf32>, vector<1x8xf32>, vector<1x24xf32> -> vector<1x128xf32>
    %429 = arith.index_cast %c6_i32 : i32 to index
    %c0_108 = arith.constant 0 : index
    %430 = vector.load %arg12[%429, %c0_108] : memref<8x128xf32, #tpu.memory_space<vmem>>, vector<1x128xf32>
    tpu.vector_store %arg12[%429, %c0_108], %428 {strides = array<i32>} : memref<8x128xf32, #tpu.memory_space<vmem>>, vector<1x128xf32>,
    %c7_i32 = arith.constant 7 : i32
    %431 = arith.index_cast %c7_i32 : i32 to index
    %432 = memref.load %arg1[%431] : memref<8xi32, #tpu.memory_space<smem>>
    %433 = arith.index_cast %432 : i32 to index
    %c0_109 = arith.constant 0 : index
    %434 = vector.load %arg2[%433, %c0_109] : memref<64x40xf32, #tpu.memory_space<vmem>>, vector<1x40xf32>
    %cst_110 = arith.constant dense<0.000000e+00> : vector<1x104xf32>
    %435 = tpu.matmul %415, %3, %cst_110 {dimension_numbers = #tpu.dot_dimension_numbers<[1], [0], [0], [1], [0, 0, 1, 1], [], []>} : vector<1x32xf32>, vector<32x104xf32>, vector<1x104xf32> -> vector<1x104xf32>
    %436 = arith.addf %435, %6 : vector<1x104xf32>
    %437 = vector.extract_strided_slice %434 {offsets = [0, 0], sizes = [1, 8], strides = [1, 1]} : vector<1x40xf32> to vector<1x8xf32>
    %438 = vector.extract_strided_slice %436 {offsets = [0, 96], sizes = [1, 8], strides = [1, 1]} : vector<1x104xf32> to vector<1x8xf32>
    %439 = arith.addf %437, %438 : vector<1x8xf32>
    %cst_111 = arith.constant dense<0xFF800000> : vector<1xf32>
    %440 = vector.multi_reduction <maximumf>, %439, %cst_111 [1] : vector<1x8xf32> to vector<1xf32>
    %441 = vector.shape_cast %440 : vector<1xf32> to vector<1x1xf32>
    %442 = vector.broadcast %441 : vector<1x1xf32> to vector<1x8xf32>
    %443 = arith.subf %439, %442 : vector<1x8xf32>
    %444 = math.exp %443 : vector<1x8xf32>
    %cst_112 = arith.constant dense<0.000000e+00> : vector<1xf32>
    %445 = vector.multi_reduction <add>, %444, %cst_112 [1] : vector<1x8xf32> to vector<1xf32>
    %446 = vector.shape_cast %445 : vector<1xf32> to vector<1x1xf32>
    %447 = vector.broadcast %446 : vector<1x1xf32> to vector<1x8xf32>
    %448 = arith.divf %444, %447 : vector<1x8xf32>
    %449 = vector.extract_strided_slice %434 {offsets = [0, 8], sizes = [1, 32], strides = [1, 1]} : vector<1x40xf32> to vector<1x32xf32>
    %cst_113 = arith.constant dense<0.000000e+00> : vector<1x32xf32>
    %450 = tpu.matmul %448, %2, %cst_113 {dimension_numbers = #tpu.dot_dimension_numbers<[1], [0], [0], [1], [0, 0, 1, 1], [], []>} : vector<1x8xf32>, vector<8x32xf32>, vector<1x32xf32> -> vector<1x32xf32>
    %451 = arith.addf %449, %450 : vector<1x32xf32>
    %cst_114 = arith.constant 0.000000e+00 : f32
    %452 = vector.broadcast %cst_114 : f32 to vector<1x32xf32>
    %453 = arith.maximumf %451, %452 : vector<1x32xf32>
    %cst_115 = arith.constant dense<0.000000e+00> : vector<1x96xf32>
    %454 = tpu.matmul %453, %4, %cst_115 {dimension_numbers = #tpu.dot_dimension_numbers<[1], [0], [0], [1], [0, 0, 1, 1], [], []>} : vector<1x32xf32>, vector<32x96xf32>, vector<1x96xf32> -> vector<1x96xf32>
    %455 = arith.addf %454, %7 : vector<1x96xf32>
    %456 = vector.extract_strided_slice %455 {offsets = [0, 0], sizes = [1, 64], strides = [1, 1]} : vector<1x96xf32> to vector<1x64xf32>
    %457 = vector.extract_strided_slice %436 {offsets = [0, 0], sizes = [1, 64], strides = [1, 1]} : vector<1x104xf32> to vector<1x64xf32>
    %458 = arith.addf %456, %457 : vector<1x64xf32>
    %459 = arith.negf %458 : vector<1x64xf32>
    %460 = math.exp %459 : vector<1x64xf32>
    %cst_116 = arith.constant 1.000000e+00 : f32
    %461 = vector.broadcast %cst_116 : f32 to vector<1x64xf32>
    %462 = arith.addf %461, %460 : vector<1x64xf32>
    %463 = arith.divf %461, %462 : vector<1x64xf32>
    %464 = vector.extract_strided_slice %463 {offsets = [0, 0], sizes = [1, 32], strides = [1, 1]} : vector<1x64xf32> to vector<1x32xf32>
    %465 = vector.extract_strided_slice %463 {offsets = [0, 32], sizes = [1, 32], strides = [1, 1]} : vector<1x64xf32> to vector<1x32xf32>
    %466 = vector.extract_strided_slice %455 {offsets = [0, 64], sizes = [1, 32], strides = [1, 1]} : vector<1x96xf32> to vector<1x32xf32>
    %467 = vector.extract_strided_slice %436 {offsets = [0, 64], sizes = [1, 32], strides = [1, 1]} : vector<1x104xf32> to vector<1x32xf32>
    %468 = arith.mulf %464, %467 : vector<1x32xf32>
    %469 = arith.addf %466, %468 : vector<1x32xf32>
    %470 = math.tanh %469 : vector<1x32xf32>
    %cst_117 = arith.constant 1.000000e+00 : f32
    %471 = vector.broadcast %cst_117 : f32 to vector<1x32xf32>
    %472 = arith.subf %471, %465 : vector<1x32xf32>
    %473 = arith.mulf %472, %470 : vector<1x32xf32>
    %474 = arith.mulf %465, %415 : vector<1x32xf32>
    %475 = arith.addf %473, %474 : vector<1x32xf32>
    %cst_118 = arith.constant dense<0.000000e+00> : vector<1x64xf32>
    %476 = tpu.matmul %475, %5, %cst_118 {dimension_numbers = #tpu.dot_dimension_numbers<[1], [0], [0], [1], [0, 0, 1, 1], [], []>} : vector<1x32xf32>, vector<32x64xf32>, vector<1x64xf32> -> vector<1x64xf32>
    %477 = arith.addf %476, %8 : vector<1x64xf32>
    %cst_119 = arith.constant dense<0xFF800000> : vector<1xf32>
    %478 = vector.multi_reduction <maximumf>, %477, %cst_119 [1] : vector<1x64xf32> to vector<1xf32>
    %479 = vector.shape_cast %478 : vector<1xf32> to vector<1x1xf32>
    %480 = vector.broadcast %479 : vector<1x1xf32> to vector<1x64xf32>
    %481 = arith.subf %477, %480 : vector<1x64xf32>
    %482 = math.exp %481 : vector<1x64xf32>
    %cst_120 = arith.constant dense<0.000000e+00> : vector<1xf32>
    %483 = vector.multi_reduction <add>, %482, %cst_120 [1] : vector<1x64xf32> to vector<1xf32>
    %484 = vector.shape_cast %483 : vector<1xf32> to vector<1x1xf32>
    %485 = math.log %484 : vector<1x1xf32>
    %486 = vector.broadcast %485 : vector<1x1xf32> to vector<1x64xf32>
    %487 = arith.subf %481, %486 : vector<1x64xf32>
    %488 = tpu.concatenate %487, %475, %448, %9 in 1 : vector<1x64xf32>, vector<1x32xf32>, vector<1x8xf32>, vector<1x24xf32> -> vector<1x128xf32>
    %489 = arith.index_cast %c7_i32 : i32 to index
    %c0_121 = arith.constant 0 : index
    %490 = vector.load %arg12[%489, %c0_121] : memref<8x128xf32, #tpu.memory_space<vmem>>, vector<1x128xf32>
    tpu.vector_store %arg12[%489, %c0_121], %488 {strides = array<i32>} : memref<8x128xf32, #tpu.memory_space<vmem>>, vector<1x128xf32>,
    %c8_i32 = arith.constant 8 : i32
    return
  }
  func.func @transform_0(%arg0: i32, %arg1: memref<8xi32, #tpu.memory_space<smem>>) -> (i32, i32) {
    %c0_i32 = arith.constant 0 : i32
    %c0_i32_0 = arith.constant 0 : i32
    %c0_i32_1 = arith.constant 0 : i32
    return %c0_i32, %c0_i32_0 : i32, i32
  }
  func.func @transform_1(%arg0: i32, %arg1: memref<8xi32, #tpu.memory_space<smem>>) -> (i32, i32) {
    %c0_i32 = arith.constant 0 : i32
    %c0_i32_0 = arith.constant 0 : i32
    %c0_i32_1 = arith.constant 0 : i32
    return %c0_i32, %c0_i32_0 : i32, i32
  }
  func.func @transform_2(%arg0: i32, %arg1: memref<8xi32, #tpu.memory_space<smem>>) -> (i32, i32) {
    %c0_i32 = arith.constant 0 : i32
    %c0_i32_0 = arith.constant 0 : i32
    %c0_i32_1 = arith.constant 0 : i32
    return %c0_i32, %c0_i32_0 : i32, i32
  }
  func.func @transform_3(%arg0: i32, %arg1: memref<8xi32, #tpu.memory_space<smem>>) -> (i32, i32) {
    %c0_i32 = arith.constant 0 : i32
    %c0_i32_0 = arith.constant 0 : i32
    %c0_i32_1 = arith.constant 0 : i32
    return %c0_i32, %c0_i32_0 : i32, i32
  }
  func.func @transform_4(%arg0: i32, %arg1: memref<8xi32, #tpu.memory_space<smem>>) -> (i32, i32) {
    %c0_i32 = arith.constant 0 : i32
    %c0_i32_0 = arith.constant 0 : i32
    %c0_i32_1 = arith.constant 0 : i32
    return %c0_i32, %c0_i32_0 : i32, i32
  }
  func.func @transform_5(%arg0: i32, %arg1: memref<8xi32, #tpu.memory_space<smem>>) -> (i32, i32) {
    %c0_i32 = arith.constant 0 : i32
    %c0_i32_0 = arith.constant 0 : i32
    %c0_i32_1 = arith.constant 0 : i32
    return %c0_i32, %c0_i32_0 : i32, i32
  }
  func.func @transform_6(%arg0: i32, %arg1: memref<8xi32, #tpu.memory_space<smem>>) -> (i32, i32) {
    %c0_i32 = arith.constant 0 : i32
    %c0_i32_0 = arith.constant 0 : i32
    %c0_i32_1 = arith.constant 0 : i32
    return %c0_i32, %c0_i32_0 : i32, i32
  }
  func.func @transform_7(%arg0: i32, %arg1: memref<8xi32, #tpu.memory_space<smem>>) -> (i32, i32) {
    %c0_i32 = arith.constant 0 : i32
    %c0_i32_0 = arith.constant 0 : i32
    %c0_i32_1 = arith.constant 0 : i32
    return %c0_i32, %c0_i32_0 : i32, i32
  }
  func.func @transform_8(%arg0: i32, %arg1: memref<8xi32, #tpu.memory_space<smem>>) -> (i32, i32) {
    %c0_i32 = arith.constant 0 : i32
    %c0_i32_0 = arith.constant 0 : i32
    %c0_i32_1 = arith.constant 0 : i32
    return %c0_i32, %c0_i32_0 : i32, i32
  }
  func.func @transform_9(%arg0: i32, %arg1: memref<8xi32, #tpu.memory_space<smem>>) -> (i32, i32) {
    %c0_i32 = arith.constant 0 : i32
    %c0_i32_0 = arith.constant 0 : i32
    %c0_i32_1 = arith.constant 0 : i32
    return %c0_i32, %c0_i32_0 : i32, i32
  }
  func.func @transform_10(%arg0: i32, %arg1: memref<8xi32, #tpu.memory_space<smem>>) -> (i32, i32) {
    %c0_i32 = arith.constant 0 : i32
    %c0_i32_0 = arith.constant 0 : i32
    %c0_i32_1 = arith.constant 0 : i32
    return %c0_i32, %c0_i32_0 : i32, i32
  }
}

</mosaic_0001>

<llo_original>
// kernel: tpu_custom_call.1
$region0: #{tpu_custom_call.1}
  #allocation0 [shape = 'u32[]', space=smem, size = 0x4, offset = 0x4, fixed_abs, tag = 'smem constant byte address 0x4 - core index']
  #allocation1 [shape = 'u32[144,128]{1,0:T(1,128)}', space=vmem, size = 0x12000, scoped, tag = 'internal scratch']
  #allocation2 [shape = 's32[1]{0}', space=sflag, size = 0x4, scoped, tag = 'scoped memory for tpu_custom_call.1']
  #allocation3 [shape = 'u8[512]{0}', space=smem, size = 0x200, scoped, tag = 'prefetched SMEM operand 0']
  %s0 = inlined_call_operand.vmem [shape: s32[8], index: 0, kind: input, shape index: {}]
  %s1 = inlined_call_operand.vmem [shape: f32[64,40], index: 1, kind: input, shape index: {}]
  %s2 = inlined_call_operand.vmem [shape: f32[1,32], index: 2, kind: input, shape index: {}]
  %s3 = inlined_call_operand.hbm [shape: f32[8,32], index: 3, kind: input, shape index: {}]
  %s4 = inlined_call_operand.vmem [shape: f32[32,104], index: 4, kind: input, shape index: {}]
  %s5 = inlined_call_operand.vmem [shape: f32[32,32], index: 5, kind: input, shape index: {}]
  %s6 = inlined_call_operand.vmem [shape: f32[32,96], index: 6, kind: input, shape index: {}]
  %s7 = inlined_call_operand.vmem [shape: f32[32,64], index: 7, kind: input, shape index: {}]
  %s8 = inlined_call_operand.vmem [shape: f32[1,104], index: 8, kind: input, shape index: {}]
  %s9 = inlined_call_operand.vmem [shape: f32[1,96], index: 9, kind: input, shape index: {}]
  %s10 = inlined_call_operand.vmem [shape: f32[1,64], index: 10, kind: input, shape index: {}]
  %s11 = inlined_call_operand.hbm [shape: f32[8,128], index: 11, kind: output, shape index: {}]
  %s12 = sld [smem:[#allocation0]]
  $region54: #{tpu_custom_call.1} parent=0
    _
  %s14 = ssub.s32 1, %s12
  %s15 = scalar_select 0, %s14, %s12
  %s16 = sshll.u32 %s0, 4
  %s17 = int_to_ptr.vmem [resolvable:$true] %s16
  %19 = dma.vmem_to_smem %s17, 16, [#allocation3], [#allocation2]
  %20 = dma.done [#allocation2], 16
  %21 = sfence
  $region1: #{tpu_custom_call.1} parent=0
    #allocation4 [shape = 'u8[4096]{0}', space=vmem, size = 0x1000, scoped, tag = 'input window, operand 3, single buffered']
    #allocation5 [shape = 's32[1]{0}', space=sflag, size = 0x4, scoped, tag = 'scoped memory for tpu_custom_call.1']
    #allocation6 [shape = 's32[1]{0}', space=sflag, size = 0x4, scoped, tag = 'scoped memory for tpu_custom_call.1']
    #allocation7 [shape = 'u8[4096]{0}', space=vmem, size = 0x1000, scoped, tag = 'output window, operand 0, single buffered']
    %22 = vsyncpa [#allocation5], 0
    %23 = vsyncpa [#allocation6], 0
    // Predicated region
    $region2: #{tpu_custom_call.1} parent=1 // pred_check
      _
    $region3: #{tpu_custom_call.1} parent=1 // pred_check_branch
      %25 = sbr.rel (0) target = $region5
    $region4: #{tpu_custom_call.1} parent=1 // pred_region
      _
    $region5: #{tpu_custom_call.1} parent=1 // pred_fallthru
      _
    // Predicated region
    $region6: #{tpu_custom_call.1} parent=1 // pred_check
      _
    $region7: #{tpu_custom_call.1} parent=1 // pred_check_branch
      %27 = sbr.rel (0) target = $region9
    $region8: #{tpu_custom_call.1} parent=1 // pred_region
      _
    $region9: #{tpu_custom_call.1} parent=1 // pred_fallthru
      _
    // Predicated region
    $region10: #{tpu_custom_call.1} parent=1 // pred_check
      _
    $region11: #{tpu_custom_call.1} parent=1 // pred_check_branch
      %29 = sbr.rel (0) target = $region13
    $region12: #{tpu_custom_call.1} parent=1 // pred_region
      %s31 = ssub.s32 128, 128
      %32 = vsyncadd [#allocation5], %s31
      %s34 = sshll.u32 [#allocation4], 4
      %s35 = int_to_ptr.vmem [resolvable:$true] %s34
      %37 = dma.hbm_to_vmem [thread:$0]  %s3, 128, %s35, [#allocation5]
    $region13: #{tpu_custom_call.1} parent=1 // pred_fallthru
      _
    // Predicated region
    $region14: #{tpu_custom_call.1} parent=1 // pred_check
      _
    $region15: #{tpu_custom_call.1} parent=1 // pred_check_branch
      %39 = sbr.rel (0) target = $region17
    $region16: #{tpu_custom_call.1} parent=1 // pred_region
      _
    $region17: #{tpu_custom_call.1} parent=1 // pred_fallthru
      _
    // Predicated region
    $region18: #{tpu_custom_call.1} parent=1 // pred_check
      _
    $region19: #{tpu_custom_call.1} parent=1 // pred_check_branch
      %41 = sbr.rel (0) target = $region21
    $region20: #{tpu_custom_call.1} parent=1 // pred_region
      _
    $region21: #{tpu_custom_call.1} parent=1 // pred_fallthru
      _
    // Predicated region
    $region22: #{tpu_custom_call.1} parent=1 // pred_check
      _
    $region23: #{tpu_custom_call.1} parent=1 // pred_check_branch
      %43 = sbr.rel (0) target = $region25
    $region24: #{tpu_custom_call.1} parent=1 // pred_region
      _
    $region25: #{tpu_custom_call.1} parent=1 // pred_fallthru
      _
    // Predicated region
    $region26: #{tpu_custom_call.1} parent=1 // pred_check
      _
    $region27: #{tpu_custom_call.1} parent=1 // pred_check_branch
      %45 = sbr.rel (0) target = $region29
    $region28: #{tpu_custom_call.1} parent=1 // pred_region
      _
    $region29: #{tpu_custom_call.1} parent=1 // pred_fallthru
      _
    // Predicated region
    $region30: #{tpu_custom_call.1} parent=1 // pred_check
      _
    $region31: #{tpu_custom_call.1} parent=1 // pred_check_branch
      %47 = sbr.rel (0) target = $region33
    $region32: #{tpu_custom_call.1} parent=1 // pred_region
      _
    $region33: #{tpu_custom_call.1} parent=1 // pred_fallthru
      _
    // Predicated region
    $region34: #{tpu_custom_call.1} parent=1 // pred_check
      _
    $region35: #{tpu_custom_call.1} parent=1 // pred_check_branch
      %49 = sbr.rel (0) target = $region37
    $region36: #{tpu_custom_call.1} parent=1 // pred_region
      _
    $region37: #{tpu_custom_call.1} parent=1 // pred_fallthru
      _
    // Predicated region
    $region38: #{tpu_custom_call.1} parent=1 // pred_check
      _
    $region39: #{tpu_custom_call.1} parent=1 // pred_check_branch
      %51 = sbr.rel (0) target = $region41
    $region40: #{tpu_custom_call.1} parent=1 // pred_region
      _
    $region41: #{tpu_custom_call.1} parent=1 // pred_fallthru
      _
    // Predicated region
    $region42: #{tpu_custom_call.1} parent=1 // pred_check
      _
    $region43: #{tpu_custom_call.1} parent=1 // pred_check_branch
      %53 = sbr.rel (0) target = $region45
    $region44: #{tpu_custom_call.1} parent=1 // pred_region
      %54 = dma.done [#allocation5], 128
    $region45: #{tpu_custom_call.1} parent=1 // pred_fallthru
      _
    %v55 = vld [vmem:[#allocation4] sm:$0xff]
    %v56 = vld [vmem:[%s5] sm:$0xff]
    %v57 = vld [vmem:[%s5 + $0x8] sm:$0xff]
    %v58 = vld [vmem:[%s5 + $0x10] sm:$0xff]
    %v59 = vld [vmem:[%s5 + $0x18] sm:$0xff]
    %vm60 = vcmask 261120
    %v62 = vsel %vm60, %v55, 0
    %64 = vmatprep.subr.mxu0 0.0
    %65 = vmatpush1.msra.mxu0 %v56
    %66 = vmatprep.subr.mxu0 0.0
    %67 = vmatpush1.msra.mxu0 %v57
    %68 = vmatprep.subr.mxu0 0.0
    %69 = vmatpush1.msra.mxu0 %v58
    %70 = vmatprep.subr.mxu0 0.0
    %71 = vmatpush1.msra.mxu0 %v59
    %72 = vmatprep.subr.mxu0 0.0
    %73 = vmatpush1.msra.mxu0 0.0
    %74 = vmatprep.subr.mxu0 0.0
    %75 = vmatpush1.msra.mxu0 0.0
    %76 = vmatprep.subr.mxu0 0.0
    %77 = vmatpush1.msra.mxu0 0.0
    %78 = vmatprep.subr.mxu0 0.0
    %79 = vmatpush1.msra.mxu0 0.0
    %80 = vmatprep.subr.mxu0 0.0
    %81 = vmatpush1.msra.mxu0 0.0
    %82 = vmatprep.subr.mxu0 0.0
    %83 = vmatpush1.msra.mxu0 0.0
    %84 = vmatprep.subr.mxu0 0.0
    %85 = vmatpush1.msra.mxu0 0.0
    %86 = vmatprep.subr.mxu0 0.0
    %87 = vmatpush1.msra.mxu0 0.0
    %88 = vmatprep.subr.mxu0 0.0
    %89 = vmatpush1.msra.mxu0 0.0
    %90 = vmatprep.subr.mxu0 0.0
    %91 = vmatpush1.msra.mxu0 0.0
    %92 = vmatprep.subr.mxu0 0.0
    %93 = vmatpush1.msra.mxu0 0.0
    %94 = vmatprep.subr.mxu0 0.0
    %95 = vmatpush1.msra.mxu0 0.0
    %96 = vmatprep.subr.mxu0 0.0
    %97 = vmatpush1.msra.mxu0 0.0
    %98 = vmatprep.subr.mxu0 0.0
    %99 = vmatpush1.msra.mxu0 0.0
    %100 = vmatprep.subr.mxu0 0.0
    %101 = vmatpush1.msra.mxu0 0.0
    %102 = vmatprep.subr.mxu0 0.0
    %103 = vmatpush1.msra.mxu0 0.0
    %104 = vmatprep.subr.mxu0 0.0
    %105 = vmatpush1.msra.mxu0 0.0
    %106 = vmatprep.subr.mxu0 0.0
    %107 = vmatpush1.msra.mxu0 0.0
    %108 = vmatprep.subr.mxu0 0.0
    %109 = vmatpush1.msra.mxu0 0.0
    %110 = vmatprep.subr.mxu0 0.0
    %111 = vmatpush1.msra.mxu0 0.0
    %112 = vmatprep.subr.mxu0 0.0
    %113 = vmatpush1.msra.mxu0 0.0
    %114 = vmatprep.subr.mxu0 0.0
    %115 = vmatpush1.msra.mxu0 0.0
    %116 = vmatprep.subr.mxu0 0.0
    %117 = vmatpush1.msra.mxu0 0.0
    %118 = vmatprep.subr.mxu0 0.0
    %119 = vmatpush1.msra.mxu0 0.0
    %120 = vmatprep.subr.mxu0 0.0
    %121 = vmatpush1.msra.mxu0 0.0
    %122 = vmatprep.subr.mxu0 0.0
    %123 = vmatpush1.msra.mxu0 0.0
    %124 = vmatprep.subr.mxu0 0.0
    %125 = vmatpush1.msra.mxu0 0.0
    %126 = vmatprep.subr.mxu0 0.0
    %127 = vmatpush1.msra.mxu0 0.0
    %128 = vmatprep.mubr.f32.mxu0 0.0
    %129 = vmatmul.mubr.f32.gmra.mrb[0].mxu0 %v62
    %v130 = vpop.f32.mrb[0].mxu0
    %v131 = vadd.f32 0.0, %v130
    %v132 = vpop.f32.mrb[0].mxu0
    %133 = vdwg.mxu0
    %v134 = vld [vmem:[%s4] sm:$0xff]
    %v135 = vld [vmem:[%s4 + $0x8] sm:$0xff]
    %v136 = vld [vmem:[%s4 + $0x10] sm:$0xff]
    %v137 = vld [vmem:[%s4 + $0x18] sm:$0xff]
    %v138 = vld [vmem:[%s6] sm:$0xff]
    %v139 = vld [vmem:[%s6 + $0x8] sm:$0xff]
    %v140 = vld [vmem:[%s6 + $0x10] sm:$0xff]
    %v141 = vld [vmem:[%s6 + $0x18] sm:$0xff]
    %v142 = vld [vmem:[%s7] sm:$0xff]
    %v143 = vld [vmem:[%s7 + $0x8] sm:$0xff]
    %v144 = vld [vmem:[%s7 + $0x10] sm:$0xff]
    %v145 = vld [vmem:[%s7 + $0x18] sm:$0xff]
    %v146 = vld [vmem:[%s8] sm:$0x1]
    %v147 = vld [vmem:[%s9] sm:$0x1]
    %v148 = vld [vmem:[%s10] sm:$0x1]
    %v149 = vld [vmem:[%s2] sm:$0x1]
    %s150 = sld [smem:[#allocation3]]
    %s151 = scalar_lea.vmem %s1, %s150
    %v152 = vld [vmem:[%s151] sm:$0x1]
    %v154 = vsel %vm60, %v149, 0
    %156 = vmatprep.subr.mxu0 0.0
    %157 = vmatpush1.msra.mxu0 %v134
    %158 = vmatprep.subr.mxu0 0.0
    %159 = vmatpush1.msra.mxu0 %v135
    %160 = vmatprep.subr.mxu0 0.0
    %161 = vmatpush1.msra.mxu0 %v136
    %162 = vmatprep.subr.mxu0 0.0
    %163 = vmatpush1.msra.mxu0 %v137
    %164 = vmatprep.subr.mxu0 0.0
    %165 = vmatpush1.msra.mxu0 0.0
    %166 = vmatprep.subr.mxu0 0.0
    %167 = vmatpush1.msra.mxu0 0.0
    %168 = vmatprep.subr.mxu0 0.0
    %169 = vmatpush1.msra.mxu0 0.0
    %170 = vmatprep.subr.mxu0 0.0
    %171 = vmatpush1.msra.mxu0 0.0
    %172 = vmatprep.subr.mxu0 0.0
    %173 = vmatpush1.msra.mxu0 0.0
    %174 = vmatprep.subr.mxu0 0.0
    %175 = vmatpush1.msra.mxu0 0.0
    %176 = vmatprep.subr.mxu0 0.0
    %177 = vmatpush1.msra.mxu0 0.0
    %178 = vmatprep.subr.mxu0 0.0
    %179 = vmatpush1.msra.mxu0 0.0
    %180 = vmatprep.subr.mxu0 0.0
    %181 = vmatpush1.msra.mxu0 0.0
    %182 = vmatprep.subr.mxu0 0.0
    %183 = vmatpush1.msra.mxu0 0.0
    %184 = vmatprep.subr.mxu0 0.0
    %185 = vmatpush1.msra.mxu0 0.0
    %186 = vmatprep.subr.mxu0 0.0
    %187 = vmatpush1.msra.mxu0 0.0
    %188 = vmatprep.subr.mxu0 0.0
    %189 = vmatpush1.msra.mxu0 0.0
    %190 = vmatprep.subr.mxu0 0.0
    %191 = vmatpush1.msra.mxu0 0.0
    %192 = vmatprep.subr.mxu0 0.0
    %193 = vmatpush1.msra.mxu0 0.0
    %194 = vmatprep.subr.mxu0 0.0
    %195 = vmatpush1.msra.mxu0 0.0
    %196 = vmatprep.subr.mxu0 0.0
    %197 = vmatpush1.msra.mxu0 0.0
    %198 = vmatprep.subr.mxu0 0.0
    %199 = vmatpush1.msra.mxu0 0.0
    %200 = vmatprep.subr.mxu0 0.0
    %201 = vmatpush1.msra.mxu0 0.0
    %202 = vmatprep.subr.mxu0 0.0
    %203 = vmatpush1.msra.mxu0 0.0
    %204 = vmatprep.subr.mxu0 0.0
    %205 = vmatpush1.msra.mxu0 0.0
    %206 = vmatprep.subr.mxu0 0.0
    %207 = vmatpush1.msra.mxu0 0.0
    %208 = vmatprep.subr.mxu0 0.0
    %209 = vmatpush1.msra.mxu0 0.0
    %210 = vmatprep.subr.mxu0 0.0
    %211 = vmatpush1.msra.mxu0 0.0
    %212 = vmatprep.subr.mxu0 0.0
    %213 = vmatpush1.msra.mxu0 0.0
    %214 = vmatprep.subr.mxu0 0.0
    %215 = vmatpush1.msra.mxu0 0.0
    %216 = vmatprep.subr.mxu0 0.0
    %217 = vmatpush1.msra.mxu0 0.0
    %218 = vmatprep.subr.mxu0 0.0
    %219 = vmatpush1.msra.mxu0 0.0
    %220 = vmatprep.mubr.f32.mxu0 0.0
    %221 = vmatmul.mubr.f32.gmra.mrb[0].mxu0 %v154
    %v222 = vpop.f32.mrb[0].mxu0
    %v223 = vadd.f32 %v146, %v222
    %v224 = vpop.f32.mrb[0].mxu0
    %225 = vdwg.mxu0
    %227 = vrot.lane.b32.xlu0 %v223, 32
    %v228 = vpop.permute.xlu0 %227
    %v230 = vadd.f32 %v152, %v228
    %vm231 = vcmask 57344
    %v232 = vsel %vm231, %v230, -inf
    %233 = vmax.xlane.f32.xlu0 %v232
    %v234 = vpop.xlane.xlu0 %233
    %v235 = vsub.f32 %v230, %v234
    %v236 = vmul.f32 %v235, 1.442695
    %v237 = vpow.pop %v236
    %v238 = vsel %vm231, %v237, 0.0
    %239 = vadd.xlane.f32.xlu0 %v238
    %v240 = vpop.xlane.xlu0 %239
    %v241 = vrcp.pop %v240
    %v242 = vmul.f32 %v237, %v241
    %vm243 = vcmask 64512
    %v245 = vsel %vm243, %v242, 0
    %247 = vmatprep.subr.mxu0 0.0
    %248 = vmatpush1.msra.mxu0 %v131
    %249 = vmatprep.subr.mxu0 0.0
    %250 = vmatpush1.msra.mxu0 0.0
    %251 = vmatprep.subr.mxu0 0.0
    %252 = vmatpush1.msra.mxu0 0.0
    %253 = vmatprep.subr.mxu0 0.0
    %254 = vmatpush1.msra.mxu0 0.0
    %255 = vmatprep.subr.mxu0 0.0
    %256 = vmatpush1.msra.mxu0 0.0
    %257 = vmatprep.subr.mxu0 0.0
    %258 = vmatpush1.msra.mxu0 0.0
    %259 = vmatprep.subr.mxu0 0.0
    %260 = vmatpush1.msra.mxu0 0.0
    %261 = vmatprep.subr.mxu0 0.0
    %262 = vmatpush1.msra.mxu0 0.0
    %263 = vmatprep.subr.mxu0 0.0
    %264 = vmatpush1.msra.mxu0 0.0
    %265 = vmatprep.subr.mxu0 0.0
    %266 = vmatpush1.msra.mxu0 0.0
    %267 = vmatprep.subr.mxu0 0.0
    %268 = vmatpush1.msra.mxu0 0.0
    %269 = vmatprep.subr.mxu0 0.0
    %270 = vmatpush1.msra.mxu0 0.0
    %271 = vmatprep.subr.mxu0 0.0
    %272 = vmatpush1.msra.mxu0 0.0
    %273 = vmatprep.subr.mxu0 0.0
    %274 = vmatpush1.msra.mxu0 0.0
    %275 = vmatprep.subr.mxu0 0.0
    %276 = vmatpush1.msra.mxu0 0.0
    %277 = vmatprep.subr.mxu0 0.0
    %278 = vmatpush1.msra.mxu0 0.0
    %279 = vmatprep.subr.mxu0 0.0
    %280 = vmatpush1.msra.mxu0 0.0
    %281 = vmatprep.subr.mxu0 0.0
    %282 = vmatpush1.msra.mxu0 0.0
    %283 = vmatprep.subr.mxu0 0.0
    %284 = vmatpush1.msra.mxu0 0.0
    %285 = vmatprep.subr.mxu0 0.0
    %286 = vmatpush1.msra.mxu0 0.0
    %287 = vmatprep.subr.mxu0 0.0
    %288 = vmatpush1.msra.mxu0 0.0
    %289 = vmatprep.subr.mxu0 0.0
    %290 = vmatpush1.msra.mxu0 0.0
    %291 = vmatprep.subr.mxu0 0.0
    %292 = vmatpush1.msra.mxu0 0.0
    %293 = vmatprep.subr.mxu0 0.0
    %294 = vmatpush1.msra.mxu0 0.0
    %295 = vmatprep.subr.mxu0 0.0
    %296 = vmatpush1.msra.mxu0 0.0
    %297 = vmatprep.subr.mxu0 0.0
    %298 = vmatpush1.msra.mxu0 0.0
    %299 = vmatprep.subr.mxu0 0.0
    %300 = vmatpush1.msra.mxu0 0.0
    %301 = vmatprep.subr.mxu0 0.0
    %302 = vmatpush1.msra.mxu0 0.0
    %303 = vmatprep.subr.mxu0 0.0
    %304 = vmatpush1.msra.mxu0 0.0
    %305 = vmatprep.subr.mxu0 0.0
    %306 = vmatpush1.msra.mxu0 0.0
    %307 = vmatprep.subr.mxu0 0.0
    %308 = vmatpush1.msra.mxu0 0.0
    %309 = vmatprep.subr.mxu0 0.0
    %310 = vmatpush1.msra.mxu0 0.0
    %311 = vmatprep.mubr.f32.mxu0 0.0
    %312 = vmatmul.mubr.f32.gmra.mrb[0].mxu0 %v245
    %v313 = vpop.f32.mrb[0].mxu0
    %v314 = vadd.f32 0.0, %v313
    %v315 = vpop.f32.mrb[0].mxu0
    %316 = vdwg.mxu0
    %318 = vrot.lane.b32.xlu0 %v314, 8
    %v319 = vpop.permute.xlu0 %318
    %v321 = vadd.f32 %v152, %v319
    %v322 = vmax.f32 %v321, 0.0
    %324 = vrot.lane.b32.xlu0 %v322, 120
    %v325 = vpop.permute.xlu0 %324
    %v326 = vsel %vm60, %v325, 0
    %328 = vmatprep.subr.mxu0 0.0
    %329 = vmatpush1.msra.mxu0 %v138
    %330 = vmatprep.subr.mxu0 0.0
    %331 = vmatpush1.msra.mxu0 %v139
    %332 = vmatprep.subr.mxu0 0.0
    %333 = vmatpush1.msra.mxu0 %v140
    %334 = vmatprep.subr.mxu0 0.0
    %335 = vmatpush1.msra.mxu0 %v141
    %336 = vmatprep.subr.mxu0 0.0
    %337 = vmatpush1.msra.mxu0 0.0
    %338 = vmatprep.subr.mxu0 0.0
    %339 = vmatpush1.msra.mxu0 0.0
    %340 = vmatprep.subr.mxu0 0.0
    %341 = vmatpush1.msra.mxu0 0.0
    %342 = vmatprep.subr.mxu0 0.0
    %343 = vmatpush1.msra.mxu0 0.0
    %344 = vmatprep.subr.mxu0 0.0
    %345 = vmatpush1.msra.mxu0 0.0
    %346 = vmatprep.subr.mxu0 0.0
    %347 = vmatpush1.msra.mxu0 0.0
    %348 = vmatprep.subr.mxu0 0.0
    %349 = vmatpush1.msra.mxu0 0.0
    %350 = vmatprep.subr.mxu0 0.0
    %351 = vmatpush1.msra.mxu0 0.0
    %352 = vmatprep.subr.mxu0 0.0
    %353 = vmatpush1.msra.mxu0 0.0
    %354 = vmatprep.subr.mxu0 0.0
    %355 = vmatpush1.msra.mxu0 0.0
    %356 = vmatprep.subr.mxu0 0.0
    %357 = vmatpush1.msra.mxu0 0.0
    %358 = vmatprep.subr.mxu0 0.0
    %359 = vmatpush1.msra.mxu0 0.0
    %360 = vmatprep.subr.mxu0 0.0
    %361 = vmatpush1.msra.mxu0 0.0
    %362 = vmatprep.subr.mxu0 0.0
    %363 = vmatpush1.msra.mxu0 0.0
    %364 = vmatprep.subr.mxu0 0.0
    %365 = vmatpush1.msra.mxu0 0.0
    %366 = vmatprep.subr.mxu0 0.0
    %367 = vmatpush1.msra.mxu0 0.0
    %368 = vmatprep.subr.mxu0 0.0
    %369 = vmatpush1.msra.mxu0 0.0
    %370 = vmatprep.subr.mxu0 0.0
    %371 = vmatpush1.msra.mxu0 0.0
    %372 = vmatprep.subr.mxu0 0.0
    %373 = vmatpush1.msra.mxu0 0.0
    %374 = vmatprep.subr.mxu0 0.0
    %375 = vmatpush1.msra.mxu0 0.0
    %376 = vmatprep.subr.mxu0 0.0
    %377 = vmatpush1.msra.mxu0 0.0
    %378 = vmatprep.subr.mxu0 0.0
    %379 = vmatpush1.msra.mxu0 0.0
    %380 = vmatprep.subr.mxu0 0.0
    %381 = vmatpush1.msra.mxu0 0.0
    %382 = vmatprep.subr.mxu0 0.0
    %383 = vmatpush1.msra.mxu0 0.0
    %384 = vmatprep.subr.mxu0 0.0
    %385 = vmatpush1.msra.mxu0 0.0
    %386 = vmatprep.subr.mxu0 0.0
    %387 = vmatpush1.msra.mxu0 0.0
    %388 = vmatprep.subr.mxu0 0.0
    %389 = vmatpush1.msra.mxu0 0.0
    %390 = vmatprep.subr.mxu0 0.0
    %391 = vmatpush1.msra.mxu0 0.0
    %392 = vmatprep.mubr.f32.mxu0 0.0
    %393 = vmatmul.mubr.f32.gmra.mrb[0].mxu0 %v326
    %v394 = vpop.f32.mrb[0].mxu0
    %v395 = vadd.f32 %v147, %v394
    %v396 = vpop.f32.mrb[0].mxu0
    %397 = vdwg.mxu0
    %v398 = vadd.f32 %v395, %v223
    %v399 = vxor.u32 %v398, 2147483648
    %v400 = vmul.f32 %v399, 1.442695
    %v401 = vpow.pop %v400
    %v402 = vadd.f32 %v401, 1.0
    %v403 = vrcp.pop %v402
    %v404 = vmul.f32 1.0, %v403
    %405 = vrot.lane.b32.xlu0 %v223, 64
    %v406 = vpop.permute.xlu0 %405
    %v408 = vmul.f32 %v404, %v406
    %410 = vrot.lane.b32.xlu0 %v408, 64
    %v411 = vpop.permute.xlu0 %410
    %v413 = vadd.f32 %v395, %v411
    %v414 = vtanh.pop %v413
    %v415 = vsub.f32 1.0, %v404
    %417 = vrot.lane.b32.xlu0 %v414, 96
    %v418 = vpop.permute.xlu0 %417
    %v420 = vmul.f32 %v415, %v418
    %v421 = vlaneseq
    %v422 = vshrl.u32 %v421, 7
    %v423 = vsub.s32 0, %v422
    %v424 = vrot.slane %v149, %v423
    %425 = vrot.lane.b32.xlu0 %v424, 32
    %v426 = vpop.permute.xlu0 %425
    %v428 = vmul.f32 %v404, %v426
    %v429 = vadd.f32 %v420, %v428
    %431 = vrot.lane.b32.xlu0 %v429, 96
    %v432 = vpop.permute.xlu0 %431
    %v433 = vsel %vm60, %v432, 0
    %435 = vmatprep.subr.mxu0 0.0
    %436 = vmatpush1.msra.mxu0 %v142
    %437 = vmatprep.subr.mxu0 0.0
    %438 = vmatpush1.msra.mxu0 %v143
    %439 = vmatprep.subr.mxu0 0.0
    %440 = vmatpush1.msra.mxu0 %v144
    %441 = vmatprep.subr.mxu0 0.0
    %442 = vmatpush1.msra.mxu0 %v145
    %443 = vmatprep.subr.mxu0 0.0
    %444 = vmatpush1.msra.mxu0 0.0
    %445 = vmatprep.subr.mxu0 0.0
    %446 = vmatpush1.msra.mxu0 0.0
    %447 = vmatprep.subr.mxu0 0.0
    %448 = vmatpush1.msra.mxu0 0.0
    %449 = vmatprep.subr.mxu0 0.0
    %450 = vmatpush1.msra.mxu0 0.0
    %451 = vmatprep.subr.mxu0 0.0
    %452 = vmatpush1.msra.mxu0 0.0
    %453 = vmatprep.subr.mxu0 0.0
    %454 = vmatpush1.msra.mxu0 0.0
    %455 = vmatprep.subr.mxu0 0.0
    %456 = vmatpush1.msra.mxu0 0.0
    %457 = vmatprep.subr.mxu0 0.0
    %458 = vmatpush1.msra.mxu0 0.0
    %459 = vmatprep.subr.mxu0 0.0
    %460 = vmatpush1.msra.mxu0 0.0
    %461 = vmatprep.subr.mxu0 0.0
    %462 = vmatpush1.msra.mxu0 0.0
    %463 = vmatprep.subr.mxu0 0.0
    %464 = vmatpush1.msra.mxu0 0.0
    %465 = vmatprep.subr.mxu0 0.0
    %466 = vmatpush1.msra.mxu0 0.0
    %467 = vmatprep.subr.mxu0 0.0
    %468 = vmatpush1.msra.mxu0 0.0
    %469 = vmatprep.subr.mxu0 0.0
    %470 = vmatpush1.msra.mxu0 0.0
    %471 = vmatprep.subr.mxu0 0.0
    %472 = vmatpush1.msra.mxu0 0.0
    %473 = vmatprep.subr.mxu0 0.0
    %474 = vmatpush1.msra.mxu0 0.0
    %475 = vmatprep.subr.mxu0 0.0
    %476 = vmatpush1.msra.mxu0 0.0
    %477 = vmatprep.subr.mxu0 0.0
    %478 = vmatpush1.msra.mxu0 0.0
    %479 = vmatprep.subr.mxu0 0.0
    %480 = vmatpush1.msra.mxu0 0.0
    %481 = vmatprep.subr.mxu0 0.0
    %482 = vmatpush1.msra.mxu0 0.0
    %483 = vmatprep.subr.mxu0 0.0
    %484 = vmatpush1.msra.mxu0 0.0
    %485 = vmatprep.subr.mxu0 0.0
    %486 = vmatpush1.msra.mxu0 0.0
    %487 = vmatprep.subr.mxu0 0.0
    %488 = vmatpush1.msra.mxu0 0.0
    %489 = vmatprep.subr.mxu0 0.0
    %490 = vmatpush1.msra.mxu0 0.0
    %491 = vmatprep.subr.mxu0 0.0
    %492 = vmatpush1.msra.mxu0 0.0
    %493 = vmatprep.subr.mxu0 0.0
    %494 = vmatpush1.msra.mxu0 0.0
    %495 = vmatprep.subr.mxu0 0.0
    %496 = vmatpush1.msra.mxu0 0.0
    %497 = vmatprep.subr.mxu0 0.0
    %498 = vmatpush1.msra.mxu0 0.0
    %499 = vmatprep.mubr.f32.mxu0 0.0
    %500 = vmatmul.mubr.f32.gmra.mrb[0].mxu0 %v433
    %v501 = vpop.f32.mrb[0].mxu0
    %v502 = vadd.f32 %v148, %v501
    %v503 = vpop.f32.mrb[0].mxu0
    %504 = vdwg.mxu0
    %vm505 = vcmask 516096
    %v506 = vsel %vm505, %v502, -inf
    %507 = vmax.xlane.f32.xlu0 %v506
    %v508 = vpop.xlane.xlu0 %507
    %v509 = vsub.f32 %v502, %v508
    %v510 = vmul.f32 %v509, 1.442695
    %v511 = vpow.pop %v510
    %v512 = vsel %vm505, %v511, 0.0
    %513 = vadd.xlane.f32.xlu0 %v512
    %v514 = vpop.xlane.xlu0 %513
    %v515 = vlog2.pop %v514
    %v516 = vmul.f32 %v515, 0.6931472
    %v517 = vsub.f32 %v509, %v516
    %518 = vrot.lane.b32.xlu0 %v429, 32
    %v519 = vpop.permute.xlu0 %518
    %521 = vrot.lane.b32.xlu0 %v242, 96
    %v522 = vpop.permute.xlu0 %521
    %vm524 = vcmask 523264
    %v525 = vsel %vm524, %v517, %v519
    %vm526 = vcmask 785408
    %v527 = vsel %vm526, %v525, %v522
    %vm528 = vcmask 850944
    %v529 = vsel %vm528, %v527, 0.0
    %530 = vst [vmem:[#allocation7] sm:$0x1] %v529
    %s531 = sld [smem:[#allocation3 + $0x1]]
    %s532 = scalar_lea.vmem %s1, %s531
    %v533 = vld [vmem:[%s532] sm:$0x1]
    %534 = vmatprep.subr.mxu0 0.0
    %535 = vmatpush1.msra.mxu0 %v134
    %536 = vmatprep.subr.mxu0 0.0
    %537 = vmatpush1.msra.mxu0 %v135
    %538 = vmatprep.subr.mxu0 0.0
    %539 = vmatpush1.msra.mxu0 %v136
    %540 = vmatprep.subr.mxu0 0.0
    %541 = vmatpush1.msra.mxu0 %v137
    %542 = vmatprep.subr.mxu0 0.0
    %543 = vmatpush1.msra.mxu0 0.0
    %544 = vmatprep.subr.mxu0 0.0
    %545 = vmatpush1.msra.mxu0 0.0
    %546 = vmatprep.subr.mxu0 0.0
    %547 = vmatpush1.msra.mxu0 0.0
    %548 = vmatprep.subr.mxu0 0.0
    %549 = vmatpush1.msra.mxu0 0.0
    %550 = vmatprep.subr.mxu0 0.0
    %551 = vmatpush1.msra.mxu0 0.0
    %552 = vmatprep.subr.mxu0 0.0
    %553 = vmatpush1.msra.mxu0 0.0
    %554 = vmatprep.subr.mxu0 0.0
    %555 = vmatpush1.msra.mxu0 0.0
    %556 = vmatprep.subr.mxu0 0.0
    %557 = vmatpush1.msra.mxu0 0.0
    %558 = vmatprep.subr.mxu0 0.0
    %559 = vmatpush1.msra.mxu0 0.0
    %560 = vmatprep.subr.mxu0 0.0
    %561 = vmatpush1.msra.mxu0 0.0
    %562 = vmatprep.subr.mxu0 0.0
    %563 = vmatpush1.msra.mxu0 0.0
    %564 = vmatprep.subr.mxu0 0.0
    %565 = vmatpush1.msra.mxu0 0.0
    %566 = vmatprep.subr.mxu0 0.0
    %567 = vmatpush1.msra.mxu0 0.0
    %568 = vmatprep.subr.mxu0 0.0
    %569 = vmatpush1.msra.mxu0 0.0
    %570 = vmatprep.subr.mxu0 0.0
    %571 = vmatpush1.msra.mxu0 0.0
    %572 = vmatprep.subr.mxu0 0.0
    %573 = vmatpush1.msra.mxu0 0.0
    %574 = vmatprep.subr.mxu0 0.0
    %575 = vmatpush1.msra.mxu0 0.0
    %576 = vmatprep.subr.mxu0 0.0
    %577 = vmatpush1.msra.mxu0 0.0
    %578 = vmatprep.subr.mxu0 0.0
    %579 = vmatpush1.msra.mxu0 0.0
    %580 = vmatprep.subr.mxu0 0.0
    %581 = vmatpush1.msra.mxu0 0.0
    %582 = vmatprep.subr.mxu0 0.0
    %583 = vmatpush1.msra.mxu0 0.0
    %584 = vmatprep.subr.mxu0 0.0
    %585 = vmatpush1.msra.mxu0 0.0
    %586 = vmatprep.subr.mxu0 0.0
    %587 = vmatpush1.msra.mxu0 0.0
    %588 = vmatprep.subr.mxu0 0.0
    %589 = vmatpush1.msra.mxu0 0.0
    %590 = vmatprep.subr.mxu0 0.0
    %591 = vmatpush1.msra.mxu0 0.0
    %592 = vmatprep.subr.mxu0 0.0
    %593 = vmatpush1.msra.mxu0 0.0
    %594 = vmatprep.subr.mxu0 0.0
    %595 = vmatpush1.msra.mxu0 0.0
    %596 = vmatprep.subr.mxu0 0.0
    %597 = vmatpush1.msra.mxu0 0.0
    %598 = vmatprep.mubr.f32.mxu0 0.0
    %599 = vmatmul.mubr.f32.gmra.mrb[0].mxu0 %v433
    %v600 = vpop.f32.mrb[0].mxu0
    %v601 = vadd.f32 %v146, %v600
    %v602 = vpop.f32.mrb[0].mxu0
    %603 = vdwg.mxu0
    %605 = vrot.lane.b32.xlu0 %v601, 32
    %v606 = vpop.permute.xlu0 %605
    %v608 = vadd.f32 %v533, %v606
    %v609 = vsel %vm231, %v608, -inf
    %610 = vmax.xlane.f32.xlu0 %v609
    %v611 = vpop.xlane.xlu0 %610
    %v612 = vsub.f32 %v608, %v611
    %v613 = vmul.f32 %v612, 1.442695
    %v614 = vpow.pop %v613
    %v615 = vsel %vm231, %v614, 0.0
    %616 = vadd.xlane.f32.xlu0 %v615
    %v617 = vpop.xlane.xlu0 %616
    %v618 = vrcp.pop %v617
    %v619 = vmul.f32 %v614, %v618
    %v621 = vsel %vm243, %v619, 0
    %623 = vmatprep.subr.mxu0 0.0
    %624 = vmatpush1.msra.mxu0 %v131
    %625 = vmatprep.subr.mxu0 0.0
    %626 = vmatpush1.msra.mxu0 0.0
    %627 = vmatprep.subr.mxu0 0.0
    %628 = vmatpush1.msra.mxu0 0.0
    %629 = vmatprep.subr.mxu0 0.0
    %630 = vmatpush1.msra.mxu0 0.0
    %631 = vmatprep.subr.mxu0 0.0
    %632 = vmatpush1.msra.mxu0 0.0
    %633 = vmatprep.subr.mxu0 0.0
    %634 = vmatpush1.msra.mxu0 0.0
    %635 = vmatprep.subr.mxu0 0.0
    %636 = vmatpush1.msra.mxu0 0.0
    %637 = vmatprep.subr.mxu0 0.0
    %638 = vmatpush1.msra.mxu0 0.0
    %639 = vmatprep.subr.mxu0 0.0
    %640 = vmatpush1.msra.mxu0 0.0
    %641 = vmatprep.subr.mxu0 0.0
    %642 = vmatpush1.msra.mxu0 0.0
    %643 = vmatprep.subr.mxu0 0.0
    %644 = vmatpush1.msra.mxu0 0.0
    %645 = vmatprep.subr.mxu0 0.0
    %646 = vmatpush1.msra.mxu0 0.0
    %647 = vmatprep.subr.mxu0 0.0
    %648 = vmatpush1.msra.mxu0 0.0
    %649 = vmatprep.subr.mxu0 0.0
    %650 = vmatpush1.msra.mxu0 0.0
    %651 = vmatprep.subr.mxu0 0.0
    %652 = vmatpush1.msra.mxu0 0.0
    %653 = vmatprep.subr.mxu0 0.0
    %654 = vmatpush1.msra.mxu0 0.0
    %655 = vmatprep.subr.mxu0 0.0
    %656 = vmatpush1.msra.mxu0 0.0
    %657 = vmatprep.subr.mxu0 0.0
    %658 = vmatpush1.msra.mxu0 0.0
    %659 = vmatprep.subr.mxu0 0.0
    %660 = vmatpush1.msra.mxu0 0.0
    %661 = vmatprep.subr.mxu0 0.0
    %662 = vmatpush1.msra.mxu0 0.0
    %663 = vmatprep.subr.mxu0 0.0
    %664 = vmatpush1.msra.mxu0 0.0
    %665 = vmatprep.subr.mxu0 0.0
    %666 = vmatpush1.msra.mxu0 0.0
    %667 = vmatprep.subr.mxu0 0.0
    %668 = vmatpush1.msra.mxu0 0.0
    %669 = vmatprep.subr.mxu0 0.0
    %670 = vmatpush1.msra.mxu0 0.0
    %671 = vmatprep.subr.mxu0 0.0
    %672 = vmatpush1.msra.mxu0 0.0
    %673 = vmatprep.subr.mxu0 0.0
    %674 = vmatpush1.msra.mxu0 0.0
    %675 = vmatprep.subr.mxu0 0.0
    %676 = vmatpush1.msra.mxu0 0.0
    %677 = vmatprep.subr.mxu0 0.0
    %678 = vmatpush1.msra.mxu0 0.0
    %679 = vmatprep.subr.mxu0 0.0
    %680 = vmatpush1.msra.mxu0 0.0
    %681 = vmatprep.subr.mxu0 0.0
    %682 = vmatpush1.msra.mxu0 0.0
    %683 = vmatprep.subr.mxu0 0.0
    %684 = vmatpush1.msra.mxu0 0.0
    %685 = vmatprep.subr.mxu0 0.0
    %686 = vmatpush1.msra.mxu0 0.0
    %687 = vmatprep.mubr.f32.mxu0 0.0
    %688 = vmatmul.mubr.f32.gmra.mrb[0].mxu0 %v621
    %v689 = vpop.f32.mrb[0].mxu0
    %v690 = vadd.f32 0.0, %v689
    %v691 = vpop.f32.mrb[0].mxu0
    %692 = vdwg.mxu0
    %694 = vrot.lane.b32.xlu0 %v690, 8
    %v695 = vpop.permute.xlu0 %694
    %v697 = vadd.f32 %v533, %v695
    %v698 = vmax.f32 %v697, 0.0
    %700 = vrot.lane.b32.xlu0 %v698, 120
    %v701 = vpop.permute.xlu0 %700
    %v702 = vsel %vm60, %v701, 0
    %704 = vmatprep.subr.mxu0 0.0
    %705 = vmatpush1.msra.mxu0 %v138
    %706 = vmatprep.subr.mxu0 0.0
    %707 = vmatpush1.msra.mxu0 %v139
    %708 = vmatprep.subr.mxu0 0.0
    %709 = vmatpush1.msra.mxu0 %v140
    %710 = vmatprep.subr.mxu0 0.0
    %711 = vmatpush1.msra.mxu0 %v141
    %712 = vmatprep.subr.mxu0 0.0
    %713 = vmatpush1.msra.mxu0 0.0
    %714 = vmatprep.subr.mxu0 0.0
    %715 = vmatpush1.msra.mxu0 0.0
    %716 = vmatprep.subr.mxu0 0.0
    %717 = vmatpush1.msra.mxu0 0.0
    %718 = vmatprep.subr.mxu0 0.0
    %719 = vmatpush1.msra.mxu0 0.0
    %720 = vmatprep.subr.mxu0 0.0
    %721 = vmatpush1.msra.mxu0 0.0
    %722 = vmatprep.subr.mxu0 0.0
    %723 = vmatpush1.msra.mxu0 0.0
    %724 = vmatprep.subr.mxu0 0.0
    %725 = vmatpush1.msra.mxu0 0.0
    %726 = vmatprep.subr.mxu0 0.0
    %727 = vmatpush1.msra.mxu0 0.0
    %728 = vmatprep.subr.mxu0 0.0
    %729 = vmatpush1.msra.mxu0 0.0
    %730 = vmatprep.subr.mxu0 0.0
    %731 = vmatpush1.msra.mxu0 0.0
    %732 = vmatprep.subr.mxu0 0.0
    %733 = vmatpush1.msra.mxu0 0.0
    %734 = vmatprep.subr.mxu0 0.0
    %735 = vmatpush1.msra.mxu0 0.0
    %736 = vmatprep.subr.mxu0 0.0
    %737 = vmatpush1.msra.mxu0 0.0
    %738 = vmatprep.subr.mxu0 0.0
    %739 = vmatpush1.msra.mxu0 0.0
    %740 = vmatprep.subr.mxu0 0.0
    %741 = vmatpush1.msra.mxu0 0.0
    %742 = vmatprep.subr.mxu0 0.0
    %743 = vmatpush1.msra.mxu0 0.0
    %744 = vmatprep.subr.mxu0 0.0
    %745 = vmatpush1.msra.mxu0 0.0
    %746 = vmatprep.subr.mxu0 0.0
    %747 = vmatpush1.msra.mxu0 0.0
    %748 = vmatprep.subr.mxu0 0.0
    %749 = vmatpush1.msra.mxu0 0.0
    %750 = vmatprep.subr.mxu0 0.0
    %751 = vmatpush1.msra.mxu0 0.0
    %752 = vmatprep.subr.mxu0 0.0
    %753 = vmatpush1.msra.mxu0 0.0
    %754 = vmatprep.subr.mxu0 0.0
    %755 = vmatpush1.msra.mxu0 0.0
    %756 = vmatprep.subr.mxu0 0.0
    %757 = vmatpush1.msra.mxu0 0.0
    %758 = vmatprep.subr.mxu0 0.0
    %759 = vmatpush1.msra.mxu0 0.0
    %760 = vmatprep.subr.mxu0 0.0
    %761 = vmatpush1.msra.mxu0 0.0
    %762 = vmatprep.subr.mxu0 0.0
    %763 = vmatpush1.msra.mxu0 0.0
    %764 = vmatprep.subr.mxu0 0.0
    %765 = vmatpush1.msra.mxu0 0.0
    %766 = vmatprep.subr.mxu0 0.0
    %767 = vmatpush1.msra.mxu0 0.0
    %768 = vmatprep.mubr.f32.mxu0 0.0
    %769 = vmatmul.mubr.f32.gmra.mrb[0].mxu0 %v702
    %v770 = vpop.f32.mrb[0].mxu0
    %v771 = vadd.f32 %v147, %v770
    %v772 = vpop.f32.mrb[0].mxu0
    %773 = vdwg.mxu0
    %v774 = vadd.f32 %v771, %v601
    %v775 = vxor.u32 %v774, 2147483648
    %v776 = vmul.f32 %v775, 1.442695
    %v777 = vpow.pop %v776
    %v778 = vadd.f32 %v777, 1.0
    %v779 = vrcp.pop %v778
    %v780 = vmul.f32 1.0, %v779
    %781 = vrot.lane.b32.xlu0 %v601, 64
    %v782 = vpop.permute.xlu0 %781
    %v784 = vmul.f32 %v780, %v782
    %786 = vrot.lane.b32.xlu0 %v784, 64
    %v787 = vpop.permute.xlu0 %786
    %v789 = vadd.f32 %v771, %v787
    %v790 = vtanh.pop %v789
    %v791 = vsub.f32 1.0, %v780
    %793 = vrot.lane.b32.xlu0 %v790, 96
    %v794 = vpop.permute.xlu0 %793
    %v796 = vmul.f32 %v791, %v794
    %v797 = vmul.f32 %v780, %v429
    %v798 = vadd.f32 %v796, %v797
    %800 = vrot.lane.b32.xlu0 %v798, 96
    %v801 = vpop.permute.xlu0 %800
    %v802 = vsel %vm60, %v801, 0
    %804 = vmatprep.subr.mxu0 0.0
    %805 = vmatpush1.msra.mxu0 %v142
    %806 = vmatprep.subr.mxu0 0.0
    %807 = vmatpush1.msra.mxu0 %v143
    %808 = vmatprep.subr.mxu0 0.0
    %809 = vmatpush1.msra.mxu0 %v144
    %810 = vmatprep.subr.mxu0 0.0
    %811 = vmatpush1.msra.mxu0 %v145
    %812 = vmatprep.subr.mxu0 0.0
    %813 = vmatpush1.msra.mxu0 0.0
    %814 = vmatprep.subr.mxu0 0.0
    %815 = vmatpush1.msra.mxu0 0.0
    %816 = vmatprep.subr.mxu0 0.0
    %817 = vmatpush1.msra.mxu0 0.0
    %818 = vmatprep.subr.mxu0 0.0
    %819 = vmatpush1.msra.mxu0 0.0
    %820 = vmatprep.subr.mxu0 0.0
    %821 = vmatpush1.msra.mxu0 0.0
    %822 = vmatprep.subr.mxu0 0.0
    %823 = vmatpush1.msra.mxu0 0.0
    %824 = vmatprep.subr.mxu0 0.0
    %825 = vmatpush1.msra.mxu0 0.0
    %826 = vmatprep.subr.mxu0 0.0
    %827 = vmatpush1.msra.mxu0 0.0
    %828 = vmatprep.subr.mxu0 0.0
    %829 = vmatpush1.msra.mxu0 0.0
    %830 = vmatprep.subr.mxu0 0.0
    %831 = vmatpush1.msra.mxu0 0.0
    %832 = vmatprep.subr.mxu0 0.0
    %833 = vmatpush1.msra.mxu0 0.0
    %834 = vmatprep.subr.mxu0 0.0
    %835 = vmatpush1.msra.mxu0 0.0
    %836 = vmatprep.subr.mxu0 0.0
    %837 = vmatpush1.msra.mxu0 0.0
    %838 = vmatprep.subr.mxu0 0.0
    %839 = vmatpush1.msra.mxu0 0.0
    %840 = vmatprep.subr.mxu0 0.0
    %841 = vmatpush1.msra.mxu0 0.0
    %842 = vmatprep.subr.mxu0 0.0
    %843 = vmatpush1.msra.mxu0 0.0
    %844 = vmatprep.subr.mxu0 0.0
    %845 = vmatpush1.msra.mxu0 0.0
    %846 = vmatprep.subr.mxu0 0.0
    %847 = vmatpush1.msra.mxu0 0.0
    %848 = vmatprep.subr.mxu0 0.0
    %849 = vmatpush1.msra.mxu0 0.0
    %850 = vmatprep.subr.mxu0 0.0
    %851 = vmatpush1.msra.mxu0 0.0
    %852 = vmatprep.subr.mxu0 0.0
    %853 = vmatpush1.msra.mxu0 0.0
    %854 = vmatprep.subr.mxu0 0.0
    %855 = vmatpush1.msra.mxu0 0.0
    %856 = vmatprep.subr.mxu0 0.0
    %857 = vmatpush1.msra.mxu0 0.0
    %858 = vmatprep.subr.mxu0 0.0
    %859 = vmatpush1.msra.mxu0 0.0
    %860 = vmatprep.subr.mxu0 0.0
    %861 = vmatpush1.msra.mxu0 0.0
    %862 = vmatprep.subr.mxu0 0.0
    %863 = vmatpush1.msra.mxu0 0.0
    %864 = vmatprep.subr.mxu0 0.0
    %865 = vmatpush1.msra.mxu0 0.0
    %866 = vmatprep.subr.mxu0 0.0
    %867 = vmatpush1.msra.mxu0 0.0
    %868 = vmatprep.mubr.f32.mxu0 0.0
    %869 = vmatmul.mubr.f32.gmra.mrb[0].mxu0 %v802
    %v870 = vpop.f32.mrb[0].mxu0
    %v871 = vadd.f32 %v148, %v870
    %v872 = vpop.f32.mrb[0].mxu0
    %873 = vdwg.mxu0
    %v874 = vsel %vm505, %v871, -inf
    %875 = vmax.xlane.f32.xlu0 %v874
    %v876 = vpop.xlane.xlu0 %875
    %v877 = vsub.f32 %v871, %v876
    %v878 = vmul.f32 %v877, 1.442695
    %v879 = vpow.pop %v878
    %v880 = vsel %vm505, %v879, 0.0
    %881 = vadd.xlane.f32.xlu0 %v880
    %v882 = vpop.xlane.xlu0 %881
    %v883 = vlog2.pop %v882
    %v884 = vmul.f32 %v883, 0.6931472
    %v885 = vsub.f32 %v877, %v884
    %886 = vrot.lane.b32.xlu0 %v798, 32
    %v887 = vpop.permute.xlu0 %886
    %889 = vrot.lane.b32.xlu0 %v619, 96
    %v890 = vpop.permute.xlu0 %889
    %v892 = vsel %vm524, %v885, %v887
    %v893 = vsel %vm526, %v892, %v890
    %v894 = vsel %vm528, %v893, 0.0
    %895 = vst [vmem:[#allocation7 + $0x1] sm:$0x1] %v894
    %s896 = sld [smem:[#allocation3 + $0x2]]
    %s897 = scalar_lea.vmem %s1, %s896
    %v898 = vld [vmem:[%s897] sm:$0x1]
    %899 = vmatprep.subr.mxu0 0.0
    %900 = vmatpush1.msra.mxu0 %v134
    %901 = vmatprep.subr.mxu0 0.0
    %902 = vmatpush1.msra.mxu0 %v135
    %903 = vmatprep.subr.mxu0 0.0
    %904 = vmatpush1.msra.mxu0 %v136
    %905 = vmatprep.subr.mxu0 0.0
    %906 = vmatpush1.msra.mxu0 %v137
    %907 = vmatprep.subr.mxu0 0.0
    %908 = vmatpush1.msra.mxu0 0.0
    %909 = vmatprep.subr.mxu0 0.0
    %910 = vmatpush1.msra.mxu0 0.0
    %911 = vmatprep.subr.mxu0 0.0
    %912 = vmatpush1.msra.mxu0 0.0
    %913 = vmatprep.subr.mxu0 0.0
    %914 = vmatpush1.msra.mxu0 0.0
    %915 = vmatprep.subr.mxu0 0.0
    %916 = vmatpush1.msra.mxu0 0.0
    %917 = vmatprep.subr.mxu0 0.0
    %918 = vmatpush1.msra.mxu0 0.0
    %919 = vmatprep.subr.mxu0 0.0
    %920 = vmatpush1.msra.mxu0 0.0
    %921 = vmatprep.subr.mxu0 0.0
    %922 = vmatpush1.msra.mxu0 0.0
    %923 = vmatprep.subr.mxu0 0.0
    %924 = vmatpush1.msra.mxu0 0.0
    %925 = vmatprep.subr.mxu0 0.0
    %926 = vmatpush1.msra.mxu0 0.0
    %927 = vmatprep.subr.mxu0 0.0
    %928 = vmatpush1.msra.mxu0 0.0
    %929 = vmatprep.subr.mxu0 0.0
    %930 = vmatpush1.msra.mxu0 0.0
    %931 = vmatprep.subr.mxu0 0.0
    %932 = vmatpush1.msra.mxu0 0.0
    %933 = vmatprep.subr.mxu0 0.0
    %934 = vmatpush1.msra.mxu0 0.0
    %935 = vmatprep.subr.mxu0 0.0
    %936 = vmatpush1.msra.mxu0 0.0
    %937 = vmatprep.subr.mxu0 0.0
    %938 = vmatpush1.msra.mxu0 0.0
    %939 = vmatprep.subr.mxu0 0.0
    %940 = vmatpush1.msra.mxu0 0.0
    %941 = vmatprep.subr.mxu0 0.0
    %942 = vmatpush1.msra.mxu0 0.0
    %943 = vmatprep.subr.mxu0 0.0
    %944 = vmatpush1.msra.mxu0 0.0
    %945 = vmatprep.subr.mxu0 0.0
    %946 = vmatpush1.msra.mxu0 0.0
    %947 = vmatprep.subr.mxu0 0.0
    %948 = vmatpush1.msra.mxu0 0.0
    %949 = vmatprep.subr.mxu0 0.0
    %950 = vmatpush1.msra.mxu0 0.0
    %951 = vmatprep.subr.mxu0 0.0
    %952 = vmatpush1.msra.mxu0 0.0
    %953 = vmatprep.subr.mxu0 0.0
    %954 = vmatpush1.msra.mxu0 0.0
    %955 = vmatprep.subr.mxu0 0.0
    %956 = vmatpush1.msra.mxu0 0.0
    %957 = vmatprep.subr.mxu0 0.0
    %958 = vmatpush1.msra.mxu0 0.0
    %959 = vmatprep.subr.mxu0 0.0
    %960 = vmatpush1.msra.mxu0 0.0
    %961 = vmatprep.subr.mxu0 0.0
    %962 = vmatpush1.msra.mxu0 0.0
    %963 = vmatprep.mubr.f32.mxu0 0.0
    %964 = vmatmul.mubr.f32.gmra.mrb[0].mxu0 %v802
    %v965 = vpop.f32.mrb[0].mxu0
    %v966 = vadd.f32 %v146, %v965
    %v967 = vpop.f32.mrb[0].mxu0
    %968 = vdwg.mxu0
    %970 = vrot.lane.b32.xlu0 %v966, 32
    %v971 = vpop.permute.xlu0 %970
    %v973 = vadd.f32 %v898, %v971
    %v974 = vsel %vm231, %v973, -inf
    %975 = vmax.xlane.f32.xlu0 %v974
    %v976 = vpop.xlane.xlu0 %975
    %v977 = vsub.f32 %v973, %v976
    %v978 = vmul.f32 %v977, 1.442695
    %v979 = vpow.pop %v978
    %v980 = vsel %vm231, %v979, 0.0
    %981 = vadd.xlane.f32.xlu0 %v980
    %v982 = vpop.xlane.xlu0 %981
    %v983 = vrcp.pop %v982
    %v984 = vmul.f32 %v979, %v983
    %v986 = vsel %vm243, %v984, 0
    %988 = vmatprep.subr.mxu0 0.0
    %989 = vmatpush1.msra.mxu0 %v131
    %990 = vmatprep.subr.mxu0 0.0
    %991 = vmatpush1.msra.mxu0 0.0
    %992 = vmatprep.subr.mxu0 0.0
    %993 = vmatpush1.msra.mxu0 0.0
    %994 = vmatprep.subr.mxu0 0.0
    %995 = vmatpush1.msra.mxu0 0.0
    %996 = vmatprep.subr.mxu0 0.0
    %997 = vmatpush1.msra.mxu0 0.0
    %998 = vmatprep.subr.mxu0 0.0
    %999 = vmatpush1.msra.mxu0 0.0
    %1000 = vmatprep.subr.mxu0 0.0
    %1001 = vmatpush1.msra.mxu0 0.0
    %1002 = vmatprep.subr.mxu0 0.0
    %1003 = vmatpush1.msra.mxu0 0.0
    %1004 = vmatprep.subr.mxu0 0.0
    %1005 = vmatpush1.msra.mxu0 0.0
    %1006 = vmatprep.subr.mxu0 0.0
    %1007 = vmatpush1.msra.mxu0 0.0
    %1008 = vmatprep.subr.mxu0 0.0
    %1009 = vmatpush1.msra.mxu0 0.0
    %1010 = vmatprep.subr.mxu0 0.0
    %1011 = vmatpush1.msra.mxu0 0.0
    %1012 = vmatprep.subr.mxu0 0.0
    %1013 = vmatpush1.msra.mxu0 0.0
    %1014 = vmatprep.subr.mxu0 0.0
    %1015 = vmatpush1.msra.mxu0 0.0
    %1016 = vmatprep.subr.mxu0 0.0
    %1017 = vmatpush1.msra.mxu0 0.0
    %1018 = vmatprep.subr.mxu0 0.0
    %1019 = vmatpush1.msra.mxu0 0.0
    %1020 = vmatprep.subr.mxu0 0.0
    %1021 = vmatpush1.msra.mxu0 0.0
    %1022 = vmatprep.subr.mxu0 0.0
    %1023 = vmatpush1.msra.mxu0 0.0
    %1024 = vmatprep.subr.mxu0 0.0
    %1025 = vmatpush1.msra.mxu0 0.0
    %1026 = vmatprep.subr.mxu0 0.0
    %1027 = vmatpush1.msra.mxu0 0.0
    %1028 = vmatprep.subr.mxu0 0.0
    %1029 = vmatpush1.msra.mxu0 0.0
    %1030 = vmatprep.subr.mxu0 0.0
    %1031 = vmatpush1.msra.mxu0 0.0
    %1032 = vmatprep.subr.mxu0 0.0
    %1033 = vmatpush1.msra.mxu0 0.0
    %1034 = vmatprep.subr.mxu0 0.0
    %1035 = vmatpush1.msra.mxu0 0.0
    %1036 = vmatprep.subr.mxu0 0.0
    %1037 = vmatpush1.msra.mxu0 0.0
    %1038 = vmatprep.subr.mxu0 0.0
    %1039 = vmatpush1.msra.mxu0 0.0
    %1040 = vmatprep.subr.mxu0 0.0
    %1041 = vmatpush1.msra.mxu0 0.0
    %1042 = vmatprep.subr.mxu0 0.0
    %1043 = vmatpush1.msra.mxu0 0.0
    %1044 = vmatprep.subr.mxu0 0.0
    %1045 = vmatpush1.msra.mxu0 0.0
    %1046 = vmatprep.subr.mxu0 0.0
    %1047 = vmatpush1.msra.mxu0 0.0
    %1048 = vmatprep.subr.mxu0 0.0
    %1049 = vmatpush1.msra.mxu0 0.0
    %1050 = vmatprep.subr.mxu0 0.0
    %1051 = vmatpush1.msra.mxu0 0.0
    %1052 = vmatprep.mubr.f32.mxu0 0.0
    %1053 = vmatmul.mubr.f32.gmra.mrb[0].mxu0 %v986
    %v1054 = vpop.f32.mrb[0].mxu0
    %v1055 = vadd.f32 0.0, %v1054
    %v1056 = vpop.f32.mrb[0].mxu0
    %1057 = vdwg.mxu0
    %1059 = vrot.lane.b32.xlu0 %v1055, 8
    %v1060 = vpop.permute.xlu0 %1059
    %v1062 = vadd.f32 %v898, %v1060
    %v1063 = vmax.f32 %v1062, 0.0
    %1065 = vrot.lane.b32.xlu0 %v1063, 120
    %v1066 = vpop.permute.xlu0 %1065
    %v1067 = vsel %vm60, %v1066, 0
    %1069 = vmatprep.subr.mxu0 0.0
    %1070 = vmatpush1.msra.mxu0 %v138
    %1071 = vmatprep.subr.mxu0 0.0
    %1072 = vmatpush1.msra.mxu0 %v139
    %1073 = vmatprep.subr.mxu0 0.0
    %1074 = vmatpush1.msra.mxu0 %v140
    %1075 = vmatprep.subr.mxu0 0.0
    %1076 = vmatpush1.msra.mxu0 %v141
    %1077 = vmatprep.subr.mxu0 0.0
    %1078 = vmatpush1.msra.mxu0 0.0
    %1079 = vmatprep.subr.mxu0 0.0
    %1080 = vmatpush1.msra.mxu0 0.0
    %1081 = vmatprep.subr.mxu0 0.0
    %1082 = vmatpush1.msra.mxu0 0.0
    %1083 = vmatprep.subr.mxu0 0.0
    %1084 = vmatpush1.msra.mxu0 0.0
    %1085 = vmatprep.subr.mxu0 0.0
    %1086 = vmatpush1.msra.mxu0 0.0
    %1087 = vmatprep.subr.mxu0 0.0
    %1088 = vmatpush1.msra.mxu0 0.0
    %1089 = vmatprep.subr.mxu0 0.0
    %1090 = vmatpush1.msra.mxu0 0.0
    %1091 = vmatprep.subr.mxu0 0.0
    %1092 = vmatpush1.msra.mxu0 0.0
    %1093 = vmatprep.subr.mxu0 0.0
    %1094 = vmatpush1.msra.mxu0 0.0
    %1095 = vmatprep.subr.mxu0 0.0
    %1096 = vmatpush1.msra.mxu0 0.0
    %1097 = vmatprep.subr.mxu0 0.0
    %1098 = vmatpush1.msra.mxu0 0.0
    %1099 = vmatprep.subr.mxu0 0.0
    %1100 = vmatpush1.msra.mxu0 0.0
    %1101 = vmatprep.subr.mxu0 0.0
    %1102 = vmatpush1.msra.mxu0 0.0
    %1103 = vmatprep.subr.mxu0 0.0
    %1104 = vmatpush1.msra.mxu0 0.0
    %1105 = vmatprep.subr.mxu0 0.0
    %1106 = vmatpush1.msra.mxu0 0.0
    %1107 = vmatprep.subr.mxu0 0.0
    %1108 = vmatpush1.msra.mxu0 0.0
    %1109 = vmatprep.subr.mxu0 0.0
    %1110 = vmatpush1.msra.mxu0 0.0
    %1111 = vmatprep.subr.mxu0 0.0
    %1112 = vmatpush1.msra.mxu0 0.0
    %1113 = vmatprep.subr.mxu0 0.0
    %1114 = vmatpush1.msra.mxu0 0.0
    %1115 = vmatprep.subr.mxu0 0.0
    %1116 = vmatpush1.msra.mxu0 0.0
    %1117 = vmatprep.subr.mxu0 0.0
    %1118 = vmatpush1.msra.mxu0 0.0
    %1119 = vmatprep.subr.mxu0 0.0
    %1120 = vmatpush1.msra.mxu0 0.0
    %1121 = vmatprep.subr.mxu0 0.0
    %1122 = vmatpush1.msra.mxu0 0.0
    %1123 = vmatprep.subr.mxu0 0.0
    %1124 = vmatpush1.msra.mxu0 0.0
    %1125 = vmatprep.subr.mxu0 0.0
    %1126 = vmatpush1.msra.mxu0 0.0
    %1127 = vmatprep.subr.mxu0 0.0
    %1128 = vmatpush1.msra.mxu0 0.0
    %1129 = vmatprep.subr.mxu0 0.0
    %1130 = vmatpush1.msra.mxu0 0.0
    %1131 = vmatprep.subr.mxu0 0.0
    %1132 = vmatpush1.msra.mxu0 0.0
    %1133 = vmatprep.mubr.f32.mxu0 0.0
    %1134 = vmatmul.mubr.f32.gmra.mrb[0].mxu0 %v1067
    %v1135 = vpop.f32.mrb[0].mxu0
    %v1136 = vadd.f32 %v147, %v1135
    %v1137 = vpop.f32.mrb[0].mxu0
    %1138 = vdwg.mxu0
    %v1139 = vadd.f32 %v1136, %v966
    %v1140 = vxor.u32 %v1139, 2147483648
    %v1141 = vmul.f32 %v1140, 1.442695
    %v1142 = vpow.pop %v1141
    %v1143 = vadd.f32 %v1142, 1.0
    %v1144 = vrcp.pop %v1143
    %v1145 = vmul.f32 1.0, %v1144
    %1146 = vrot.lane.b32.xlu0 %v966, 64
    %v1147 = vpop.permute.xlu0 %1146
    %v1149 = vmul.f32 %v1145, %v1147
    %1151 = vrot.lane.b32.xlu0 %v1149, 64
    %v1152 = vpop.permute.xlu0 %1151
    %v1154 = vadd.f32 %v1136, %v1152
    %v1155 = vtanh.pop %v1154
    %v1156 = vsub.f32 1.0, %v1145
    %1158 = vrot.lane.b32.xlu0 %v1155, 96
    %v1159 = vpop.permute.xlu0 %1158
    %v1161 = vmul.f32 %v1156, %v1159
    %v1162 = vmul.f32 %v1145, %v798
    %v1163 = vadd.f32 %v1161, %v1162
    %1165 = vrot.lane.b32.xlu0 %v1163, 96
    %v1166 = vpop.permute.xlu0 %1165
    %v1167 = vsel %vm60, %v1166, 0
    %1169 = vmatprep.subr.mxu0 0.0
    %1170 = vmatpush1.msra.mxu0 %v142
    %1171 = vmatprep.subr.mxu0 0.0
    %1172 = vmatpush1.msra.mxu0 %v143
    %1173 = vmatprep.subr.mxu0 0.0
    %1174 = vmatpush1.msra.mxu0 %v144
    %1175 = vmatprep.subr.mxu0 0.0
    %1176 = vmatpush1.msra.mxu0 %v145
    %1177 = vmatprep.subr.mxu0 0.0
    %1178 = vmatpush1.msra.mxu0 0.0
    %1179 = vmatprep.subr.mxu0 0.0
    %1180 = vmatpush1.msra.mxu0 0.0
    %1181 = vmatprep.subr.mxu0 0.0
    %1182 = vmatpush1.msra.mxu0 0.0
    %1183 = vmatprep.subr.mxu0 0.0
    %1184 = vmatpush1.msra.mxu0 0.0
    %1185 = vmatprep.subr.mxu0 0.0
    %1186 = vmatpush1.msra.mxu0 0.0
    %1187 = vmatprep.subr.mxu0 0.0
    %1188 = vmatpush1.msra.mxu0 0.0
    %1189 = vmatprep.subr.mxu0 0.0
    %1190 = vmatpush1.msra.mxu0 0.0
    %1191 = vmatprep.subr.mxu0 0.0
    %1192 = vmatpush1.msra.mxu0 0.0
    %1193 = vmatprep.subr.mxu0 0.0
    %1194 = vmatpush1.msra.mxu0 0.0
    %1195 = vmatprep.subr.mxu0 0.0
    %1196 = vmatpush1.msra.mxu0 0.0
    %1197 = vmatprep.subr.mxu0 0.0
    %1198 = vmatpush1.msra.mxu0 0.0
    %1199 = vmatprep.subr.mxu0 0.0
    %1200 = vmatpush1.msra.mxu0 0.0
    %1201 = vmatprep.subr.mxu0 0.0
    %1202 = vmatpush1.msra.mxu0 0.0
    %1203 = vmatprep.subr.mxu0 0.0
    %1204 = vmatpush1.msra.mxu0 0.0
    %1205 = vmatprep.subr.mxu0 0.0
    %1206 = vmatpush1.msra.mxu0 0.0
    %1207 = vmatprep.subr.mxu0 0.0
    %1208 = vmatpush1.msra.mxu0 0.0
    %1209 = vmatprep.subr.mxu0 0.0
    %1210 = vmatpush1.msra.mxu0 0.0
    %1211 = vmatprep.subr.mxu0 0.0
    %1212 = vmatpush1.msra.mxu0 0.0
    %1213 = vmatprep.subr.mxu0 0.0
    %1214 = vmatpush1.msra.mxu0 0.0
    %1215 = vmatprep.subr.mxu0 0.0
    %1216 = vmatpush1.msra.mxu0 0.0
    %1217 = vmatprep.subr.mxu0 0.0
    %1218 = vmatpush1.msra.mxu0 0.0
    %1219 = vmatprep.subr.mxu0 0.0
    %1220 = vmatpush1.msra.mxu0 0.0
    %1221 = vmatprep.subr.mxu0 0.0
    %1222 = vmatpush1.msra.mxu0 0.0
    %1223 = vmatprep.subr.mxu0 0.0
    %1224 = vmatpush1.msra.mxu0 0.0
    %1225 = vmatprep.subr.mxu0 0.0
    %1226 = vmatpush1.msra.mxu0 0.0
    %1227 = vmatprep.subr.mxu0 0.0
    %1228 = vmatpush1.msra.mxu0 0.0
    %1229 = vmatprep.subr.mxu0 0.0
    %1230 = vmatpush1.msra.mxu0 0.0
    %1231 = vmatprep.subr.mxu0 0.0
    %1232 = vmatpush1.msra.mxu0 0.0
    %1233 = vmatprep.mubr.f32.mxu0 0.0
    %1234 = vmatmul.mubr.f32.gmra.mrb[0].mxu0 %v1167
    %v1235 = vpop.f32.mrb[0].mxu0
    %v1236 = vadd.f32 %v148, %v1235
    %v1237 = vpop.f32.mrb[0].mxu0
    %1238 = vdwg.mxu0
    %v1239 = vsel %vm505, %v1236, -inf
    %1240 = vmax.xlane.f32.xlu0 %v1239
    %v1241 = vpop.xlane.xlu0 %1240
    %v1242 = vsub.f32 %v1236, %v1241
    %v1243 = vmul.f32 %v1242, 1.442695
    %v1244 = vpow.pop %v1243
    %v1245 = vsel %vm505, %v1244, 0.0
    %1246 = vadd.xlane.f32.xlu0 %v1245
    %v1247 = vpop.xlane.xlu0 %1246
    %v1248 = vlog2.pop %v1247
    %v1249 = vmul.f32 %v1248, 0.6931472
    %v1250 = vsub.f32 %v1242, %v1249
    %1251 = vrot.lane.b32.xlu0 %v1163, 32
    %v1252 = vpop.permute.xlu0 %1251
    %1254 = vrot.lane.b32.xlu0 %v984, 96
    %v1255 = vpop.permute.xlu0 %1254
    %v1257 = vsel %vm524, %v1250, %v1252
    %v1258 = vsel %vm526, %v1257, %v1255
    %v1259 = vsel %vm528, %v1258, 0.0
    %1260 = vst [vmem:[#allocation7 + $0x2] sm:$0x1] %v1259
    %s1261 = sld [smem:[#allocation3 + $0x3]]
    %s1262 = scalar_lea.vmem %s1, %s1261
    %v1263 = vld [vmem:[%s1262] sm:$0x1]
    %1264 = vmatprep.subr.mxu0 0.0
    %1265 = vmatpush1.msra.mxu0 %v134
    %1266 = vmatprep.subr.mxu0 0.0
    %1267 = vmatpush1.msra.mxu0 %v135
    %1268 = vmatprep.subr.mxu0 0.0
    %1269 = vmatpush1.msra.mxu0 %v136
    %1270 = vmatprep.subr.mxu0 0.0
    %1271 = vmatpush1.msra.mxu0 %v137
    %1272 = vmatprep.subr.mxu0 0.0
    %1273 = vmatpush1.msra.mxu0 0.0
    %1274 = vmatprep.subr.mxu0 0.0
    %1275 = vmatpush1.msra.mxu0 0.0
    %1276 = vmatprep.subr.mxu0 0.0
    %1277 = vmatpush1.msra.mxu0 0.0
    %1278 = vmatprep.subr.mxu0 0.0
    %1279 = vmatpush1.msra.mxu0 0.0
    %1280 = vmatprep.subr.mxu0 0.0
    %1281 = vmatpush1.msra.mxu0 0.0
    %1282 = vmatprep.subr.mxu0 0.0
    %1283 = vmatpush1.msra.mxu0 0.0
    %1284 = vmatprep.subr.mxu0 0.0
    %1285 = vmatpush1.msra.mxu0 0.0
    %1286 = vmatprep.subr.mxu0 0.0
    %1287 = vmatpush1.msra.mxu0 0.0
    %1288 = vmatprep.subr.mxu0 0.0
    %1289 = vmatpush1.msra.mxu0 0.0
    %1290 = vmatprep.subr.mxu0 0.0
    %1291 = vmatpush1.msra.mxu0 0.0
    %1292 = vmatprep.subr.mxu0 0.0
    %1293 = vmatpush1.msra.mxu0 0.0
    %1294 = vmatprep.subr.mxu0 0.0
    %1295 = vmatpush1.msra.mxu0 0.0
    %1296 = vmatprep.subr.mxu0 0.0
    %1297 = vmatpush1.msra.mxu0 0.0
    %1298 = vmatprep.subr.mxu0 0.0
    %1299 = vmatpush1.msra.mxu0 0.0
    %1300 = vmatprep.subr.mxu0 0.0
    %1301 = vmatpush1.msra.mxu0 0.0
    %1302 = vmatprep.subr.mxu0 0.0
    %1303 = vmatpush1.msra.mxu0 0.0
    %1304 = vmatprep.subr.mxu0 0.0
    %1305 = vmatpush1.msra.mxu0 0.0
    %1306 = vmatprep.subr.mxu0 0.0
    %1307 = vmatpush1.msra.mxu0 0.0
    %1308 = vmatprep.subr.mxu0 0.0
    %1309 = vmatpush1.msra.mxu0 0.0
    %1310 = vmatprep.subr.mxu0 0.0
    %1311 = vmatpush1.msra.mxu0 0.0
    %1312 = vmatprep.subr.mxu0 0.0
    %1313 = vmatpush1.msra.mxu0 0.0
    %1314 = vmatprep.subr.mxu0 0.0
    %1315 = vmatpush1.msra.mxu0 0.0
    %1316 = vmatprep.subr.mxu0 0.0
    %1317 = vmatpush1.msra.mxu0 0.0
    %1318 = vmatprep.subr.mxu0 0.0
    %1319 = vmatpush1.msra.mxu0 0.0
    %1320 = vmatprep.subr.mxu0 0.0
    %1321 = vmatpush1.msra.mxu0 0.0
    %1322 = vmatprep.subr.mxu0 0.0
    %1323 = vmatpush1.msra.mxu0 0.0
    %1324 = vmatprep.subr.mxu0 0.0
    %1325 = vmatpush1.msra.mxu0 0.0
    %1326 = vmatprep.subr.mxu0 0.0
    %1327 = vmatpush1.msra.mxu0 0.0
    %1328 = vmatprep.mubr.f32.mxu0 0.0
    %1329 = vmatmul.mubr.f32.gmra.mrb[0].mxu0 %v1167
    %v1330 = vpop.f32.mrb[0].mxu0
    %v1331 = vadd.f32 %v146, %v1330
    %v1332 = vpop.f32.mrb[0].mxu0
    %1333 = vdwg.mxu0
    %1335 = vrot.lane.b32.xlu0 %v1331, 32
    %v1336 = vpop.permute.xlu0 %1335
    %v1338 = vadd.f32 %v1263, %v1336
    %v1339 = vsel %vm231, %v1338, -inf
    %1340 = vmax.xlane.f32.xlu0 %v1339
    %v1341 = vpop.xlane.xlu0 %1340
    %v1342 = vsub.f32 %v1338, %v1341
    %v1343 = vmul.f32 %v1342, 1.442695
    %v1344 = vpow.pop %v1343
    %v1345 = vsel %vm231, %v1344, 0.0
    %1346 = vadd.xlane.f32.xlu0 %v1345
    %v1347 = vpop.xlane.xlu0 %1346
    %v1348 = vrcp.pop %v1347
    %v1349 = vmul.f32 %v1344, %v1348
    %v1351 = vsel %vm243, %v1349, 0
    %1353 = vmatprep.subr.mxu0 0.0
    %1354 = vmatpush1.msra.mxu0 %v131
    %1355 = vmatprep.subr.mxu0 0.0
    %1356 = vmatpush1.msra.mxu0 0.0
    %1357 = vmatprep.subr.mxu0 0.0
    %1358 = vmatpush1.msra.mxu0 0.0
    %1359 = vmatprep.subr.mxu0 0.0
    %1360 = vmatpush1.msra.mxu0 0.0
    %1361 = vmatprep.subr.mxu0 0.0
    %1362 = vmatpush1.msra.mxu0 0.0
    %1363 = vmatprep.subr.mxu0 0.0
    %1364 = vmatpush1.msra.mxu0 0.0
    %1365 = vmatprep.subr.mxu0 0.0
    %1366 = vmatpush1.msra.mxu0 0.0
    %1367 = vmatprep.subr.mxu0 0.0
    %1368 = vmatpush1.msra.mxu0 0.0
    %1369 = vmatprep.subr.mxu0 0.0
    %1370 = vmatpush1.msra.mxu0 0.0
    %1371 = vmatprep.subr.mxu0 0.0
    %1372 = vmatpush1.msra.mxu0 0.0
    %1373 = vmatprep.subr.mxu0 0.0
    %1374 = vmatpush1.msra.mxu0 0.0
    %1375 = vmatprep.subr.mxu0 0.0
    %1376 = vmatpush1.msra.mxu0 0.0
    %1377 = vmatprep.subr.mxu0 0.0
    %1378 = vmatpush1.msra.mxu0 0.0
    %1379 = vmatprep.subr.mxu0 0.0
    %1380 = vmatpush1.msra.mxu0 0.0
    %1381 = vmatprep.subr.mxu0 0.0
    %1382 = vmatpush1.msra.mxu0 0.0
    %1383 = vmatprep.subr.mxu0 0.0
    %1384 = vmatpush1.msra.mxu0 0.0
    %1385 = vmatprep.subr.mxu0 0.0
    %1386 = vmatpush1.msra.mxu0 0.0
    %1387 = vmatprep.subr.mxu0 0.0
    %1388 = vmatpush1.msra.mxu0 0.0
    %1389 = vmatprep.subr.mxu0 0.0
    %1390 = vmatpush1.msra.mxu0 0.0
    %1391 = vmatprep.subr.mxu0 0.0
    %1392 = vmatpush1.msra.mxu0 0.0
    %1393 = vmatprep.subr.mxu0 0.0
    %1394 = vmatpush1.msra.mxu0 0.0
    %1395 = vmatprep.subr.mxu0 0.0
    %1396 = vmatpush1.msra.mxu0 0.0
    %1397 = vmatprep.subr.mxu0 0.0
    %1398 = vmatpush1.msra.mxu0 0.0
    %1399 = vmatprep.subr.mxu0 0.0
    %1400 = vmatpush1.msra.mxu0 0.0
    %1401 = vmatprep.subr.mxu0 0.0
    %1402 = vmatpush1.msra.mxu0 0.0
    %1403 = vmatprep.subr.mxu0 0.0
    %1404 = vmatpush1.msra.mxu0 0.0
    %1405 = vmatprep.subr.mxu0 0.0
    %1406 = vmatpush1.msra.mxu0 0.0
    %1407 = vmatprep.subr.mxu0 0.0
    %1408 = vmatpush1.msra.mxu0 0.0
    %1409 = vmatprep.subr.mxu0 0.0
    %1410 = vmatpush1.msra.mxu0 0.0
    %1411 = vmatprep.subr.mxu0 0.0
    %1412 = vmatpush1.msra.mxu0 0.0
    %1413 = vmatprep.subr.mxu0 0.0
    %1414 = vmatpush1.msra.mxu0 0.0
    %1415 = vmatprep.subr.mxu0 0.0
    %1416 = vmatpush1.msra.mxu0 0.0
    %1417 = vmatprep.mubr.f32.mxu0 0.0
    %1418 = vmatmul.mubr.f32.gmra.mrb[0].mxu0 %v1351
    %v1419 = vpop.f32.mrb[0].mxu0
    %v1420 = vadd.f32 0.0, %v1419
    %v1421 = vpop.f32.mrb[0].mxu0
    %1422 = vdwg.mxu0
    %1424 = vrot.lane.b32.xlu0 %v1420, 8
    %v1425 = vpop.permute.xlu0 %1424
    %v1427 = vadd.f32 %v1263, %v1425
    %v1428 = vmax.f32 %v1427, 0.0
    %1430 = vrot.lane.b32.xlu0 %v1428, 120
    %v1431 = vpop.permute.xlu0 %1430
    %v1432 = vsel %vm60, %v1431, 0
    %1434 = vmatprep.subr.mxu0 0.0
    %1435 = vmatpush1.msra.mxu0 %v138
    %1436 = vmatprep.subr.mxu0 0.0
    %1437 = vmatpush1.msra.mxu0 %v139
    %1438 = vmatprep.subr.mxu0 0.0
    %1439 = vmatpush1.msra.mxu0 %v140
    %1440 = vmatprep.subr.mxu0 0.0
    %1441 = vmatpush1.msra.mxu0 %v141
    %1442 = vmatprep.subr.mxu0 0.0
    %1443 = vmatpush1.msra.mxu0 0.0
    %1444 = vmatprep.subr.mxu0 0.0
    %1445 = vmatpush1.msra.mxu0 0.0
    %1446 = vmatprep.subr.mxu0 0.0
    %1447 = vmatpush1.msra.mxu0 0.0
    %1448 = vmatprep.subr.mxu0 0.0
    %1449 = vmatpush1.msra.mxu0 0.0
    %1450 = vmatprep.subr.mxu0 0.0
    %1451 = vmatpush1.msra.mxu0 0.0
    %1452 = vmatprep.subr.mxu0 0.0
    %1453 = vmatpush1.msra.mxu0 0.0
    %1454 = vmatprep.subr.mxu0 0.0
    %1455 = vmatpush1.msra.mxu0 0.0
    %1456 = vmatprep.subr.mxu0 0.0
    %1457 = vmatpush1.msra.mxu0 0.0
    %1458 = vmatprep.subr.mxu0 0.0
    %1459 = vmatpush1.msra.mxu0 0.0
    %1460 = vmatprep.subr.mxu0 0.0
    %1461 = vmatpush1.msra.mxu0 0.0
    %1462 = vmatprep.subr.mxu0 0.0
    %1463 = vmatpush1.msra.mxu0 0.0
    %1464 = vmatprep.subr.mxu0 0.0
    %1465 = vmatpush1.msra.mxu0 0.0
    %1466 = vmatprep.subr.mxu0 0.0
    %1467 = vmatpush1.msra.mxu0 0.0
    %1468 = vmatprep.subr.mxu0 0.0
    %1469 = vmatpush1.msra.mxu0 0.0
    %1470 = vmatprep.subr.mxu0 0.0
    %1471 = vmatpush1.msra.mxu0 0.0
    %1472 = vmatprep.subr.mxu0 0.0
    %1473 = vmatpush1.msra.mxu0 0.0
    %1474 = vmatprep.subr.mxu0 0.0
    %1475 = vmatpush1.msra.mxu0 0.0
    %1476 = vmatprep.subr.mxu0 0.0
    %1477 = vmatpush1.msra.mxu0 0.0
    %1478 = vmatprep.subr.mxu0 0.0
    %1479 = vmatpush1.msra.mxu0 0.0
    %1480 = vmatprep.subr.mxu0 0.0
    %1481 = vmatpush1.msra.mxu0 0.0
    %1482 = vmatprep.subr.mxu0 0.0
    %1483 = vmatpush1.msra.mxu0 0.0
    %1484 = vmatprep.subr.mxu0 0.0
    %1485 = vmatpush1.msra.mxu0 0.0
    %1486 = vmatprep.subr.mxu0 0.0
    %1487 = vmatpush1.msra.mxu0 0.0
    %1488 = vmatprep.subr.mxu0 0.0
    %1489 = vmatpush1.msra.mxu0 0.0
    %1490 = vmatprep.subr.mxu0 0.0
    %1491 = vmatpush1.msra.mxu0 0.0
    %1492 = vmatprep.subr.mxu0 0.0
    %1493 = vmatpush1.msra.mxu0 0.0
    %1494 = vmatprep.subr.mxu0 0.0
    %1495 = vmatpush1.msra.mxu0 0.0
    %1496 = vmatprep.subr.mxu0 0.0
    %1497 = vmatpush1.msra.mxu0 0.0
    %1498 = vmatprep.mubr.f32.mxu0 0.0
    %1499 = vmatmul.mubr.f32.gmra.mrb[0].mxu0 %v1432
    %v1500 = vpop.f32.mrb[0].mxu0
    %v1501 = vadd.f32 %v147, %v1500
    %v1502 = vpop.f32.mrb[0].mxu0
    %1503 = vdwg.mxu0
    %v1504 = vadd.f32 %v1501, %v1331
    %v1505 = vxor.u32 %v1504, 2147483648
    %v1506 = vmul.f32 %v1505, 1.442695
    %v1507 = vpow.pop %v1506
    %v1508 = vadd.f32 %v1507, 1.0
    %v1509 = vrcp.pop %v1508
    %v1510 = vmul.f32 1.0, %v1509
    %1511 = vrot.lane.b32.xlu0 %v1331, 64
    %v1512 = vpop.permute.xlu0 %1511
    %v1514 = vmul.f32 %v1510, %v1512
    %1516 = vrot.lane.b32.xlu0 %v1514, 64
    %v1517 = vpop.permute.xlu0 %1516
    %v1519 = vadd.f32 %v1501, %v1517
    %v1520 = vtanh.pop %v1519
    %v1521 = vsub.f32 1.0, %v1510
    %1523 = vrot.lane.b32.xlu0 %v1520, 96
    %v1524 = vpop.permute.xlu0 %1523
    %v1526 = vmul.f32 %v1521, %v1524
    %v1527 = vmul.f32 %v1510, %v1163
    %v1528 = vadd.f32 %v1526, %v1527
    %1530 = vrot.lane.b32.xlu0 %v1528, 96
    %v1531 = vpop.permute.xlu0 %1530
    %v1532 = vsel %vm60, %v1531, 0
    %1534 = vmatprep.subr.mxu0 0.0
    %1535 = vmatpush1.msra.mxu0 %v142
    %1536 = vmatprep.subr.mxu0 0.0
    %1537 = vmatpush1.msra.mxu0 %v143
    %1538 = vmatprep.subr.mxu0 0.0
    %1539 = vmatpush1.msra.mxu0 %v144
    %1540 = vmatprep.subr.mxu0 0.0
    %1541 = vmatpush1.msra.mxu0 %v145
    %1542 = vmatprep.subr.mxu0 0.0
    %1543 = vmatpush1.msra.mxu0 0.0
    %1544 = vmatprep.subr.mxu0 0.0
    %1545 = vmatpush1.msra.mxu0 0.0
    %1546 = vmatprep.subr.mxu0 0.0
    %1547 = vmatpush1.msra.mxu0 0.0
    %1548 = vmatprep.subr.mxu0 0.0
    %1549 = vmatpush1.msra.mxu0 0.0
    %1550 = vmatprep.subr.mxu0 0.0
    %1551 = vmatpush1.msra.mxu0 0.0
    %1552 = vmatprep.subr.mxu0 0.0
    %1553 = vmatpush1.msra.mxu0 0.0
    %1554 = vmatprep.subr.mxu0 0.0
    %1555 = vmatpush1.msra.mxu0 0.0
    %1556 = vmatprep.subr.mxu0 0.0
    %1557 = vmatpush1.msra.mxu0 0.0
    %1558 = vmatprep.subr.mxu0 0.0
    %1559 = vmatpush1.msra.mxu0 0.0
    %1560 = vmatprep.subr.mxu0 0.0
    %1561 = vmatpush1.msra.mxu0 0.0
    %1562 = vmatprep.subr.mxu0 0.0
    %1563 = vmatpush1.msra.mxu0 0.0
    %1564 = vmatprep.subr.mxu0 0.0
    %1565 = vmatpush1.msra.mxu0 0.0
    %1566 = vmatprep.subr.mxu0 0.0
    %1567 = vmatpush1.msra.mxu0 0.0
    %1568 = vmatprep.subr.mxu0 0.0
    %1569 = vmatpush1.msra.mxu0 0.0
    %1570 = vmatprep.subr.mxu0 0.0
    %1571 = vmatpush1.msra.mxu0 0.0
    %1572 = vmatprep.subr.mxu0 0.0
    %1573 = vmatpush1.msra.mxu0 0.0
    %1574 = vmatprep.subr.mxu0 0.0
    %1575 = vmatpush1.msra.mxu0 0.0
    %1576 = vmatprep.subr.mxu0 0.0
    %1577 = vmatpush1.msra.mxu0 0.0
    %1578 = vmatprep.subr.mxu0 0.0
    %1579 = vmatpush1.msra.mxu0 0.0
    %1580 = vmatprep.subr.mxu0 0.0
    %1581 = vmatpush1.msra.mxu0 0.0
    %1582 = vmatprep.subr.mxu0 0.0
    %1583 = vmatpush1.msra.mxu0 0.0
    %1584 = vmatprep.subr.mxu0 0.0
    %1585 = vmatpush1.msra.mxu0 0.0
    %1586 = vmatprep.subr.mxu0 0.0
    %1587 = vmatpush1.msra.mxu0 0.0
    %1588 = vmatprep.subr.mxu0 0.0
    %1589 = vmatpush1.msra.mxu0 0.0
    %1590 = vmatprep.subr.mxu0 0.0
    %1591 = vmatpush1.msra.mxu0 0.0
    %1592 = vmatprep.subr.mxu0 0.0
    %1593 = vmatpush1.msra.mxu0 0.0
    %1594 = vmatprep.subr.mxu0 0.0
    %1595 = vmatpush1.msra.mxu0 0.0
    %1596 = vmatprep.subr.mxu0 0.0
    %1597 = vmatpush1.msra.mxu0 0.0
    %1598 = vmatprep.mubr.f32.mxu0 0.0
    %1599 = vmatmul.mubr.f32.gmra.mrb[0].mxu0 %v1532
    %v1600 = vpop.f32.mrb[0].mxu0
    %v1601 = vadd.f32 %v148, %v1600
    %v1602 = vpop.f32.mrb[0].mxu0
    %1603 = vdwg.mxu0
    %v1604 = vsel %vm505, %v1601, -inf
    %1605 = vmax.xlane.f32.xlu0 %v1604
    %v1606 = vpop.xlane.xlu0 %1605
    %v1607 = vsub.f32 %v1601, %v1606
    %v1608 = vmul.f32 %v1607, 1.442695
    %v1609 = vpow.pop %v1608
    %v1610 = vsel %vm505, %v1609, 0.0
    %1611 = vadd.xlane.f32.xlu0 %v1610
    %v1612 = vpop.xlane.xlu0 %1611
    %v1613 = vlog2.pop %v1612
    %v1614 = vmul.f32 %v1613, 0.6931472
    %v1615 = vsub.f32 %v1607, %v1614
    %1616 = vrot.lane.b32.xlu0 %v1528, 32
    %v1617 = vpop.permute.xlu0 %1616
    %1619 = vrot.lane.b32.xlu0 %v1349, 96
    %v1620 = vpop.permute.xlu0 %1619
    %v1622 = vsel %vm524, %v1615, %v1617
    %v1623 = vsel %vm526, %v1622, %v1620
    %v1624 = vsel %vm528, %v1623, 0.0
    %1625 = vst [vmem:[#allocation7 + $0x3] sm:$0x1] %v1624
    %s1626 = sld [smem:[#allocation3 + $0x4]]
    %s1627 = scalar_lea.vmem %s1, %s1626
    %v1628 = vld [vmem:[%s1627] sm:$0x1]
    %1629 = vmatprep.subr.mxu0 0.0
    %1630 = vmatpush1.msra.mxu0 %v134
    %1631 = vmatprep.subr.mxu0 0.0
    %1632 = vmatpush1.msra.mxu0 %v135
    %1633 = vmatprep.subr.mxu0 0.0
    %1634 = vmatpush1.msra.mxu0 %v136
    %1635 = vmatprep.subr.mxu0 0.0
    %1636 = vmatpush1.msra.mxu0 %v137
    %1637 = vmatprep.subr.mxu0 0.0
    %1638 = vmatpush1.msra.mxu0 0.0
    %1639 = vmatprep.subr.mxu0 0.0
    %1640 = vmatpush1.msra.mxu0 0.0
    %1641 = vmatprep.subr.mxu0 0.0
    %1642 = vmatpush1.msra.mxu0 0.0
    %1643 = vmatprep.subr.mxu0 0.0
    %1644 = vmatpush1.msra.mxu0 0.0
    %1645 = vmatprep.subr.mxu0 0.0
    %1646 = vmatpush1.msra.mxu0 0.0
    %1647 = vmatprep.subr.mxu0 0.0
    %1648 = vmatpush1.msra.mxu0 0.0
    %1649 = vmatprep.subr.mxu0 0.0
    %1650 = vmatpush1.msra.mxu0 0.0
    %1651 = vmatprep.subr.mxu0 0.0
    %1652 = vmatpush1.msra.mxu0 0.0
    %1653 = vmatprep.subr.mxu0 0.0
    %1654 = vmatpush1.msra.mxu0 0.0
    %1655 = vmatprep.subr.mxu0 0.0
    %1656 = vmatpush1.msra.mxu0 0.0
    %1657 = vmatprep.subr.mxu0 0.0
    %1658 = vmatpush1.msra.mxu0 0.0
    %1659 = vmatprep.subr.mxu0 0.0
    %1660 = vmatpush1.msra.mxu0 0.0
    %1661 = vmatprep.subr.mxu0 0.0
    %1662 = vmatpush1.msra.mxu0 0.0
    %1663 = vmatprep.subr.mxu0 0.0
    %1664 = vmatpush1.msra.mxu0 0.0
    %1665 = vmatprep.subr.mxu0 0.0
    %1666 = vmatpush1.msra.mxu0 0.0
    %1667 = vmatprep.subr.mxu0 0.0
    %1668 = vmatpush1.msra.mxu0 0.0
    %1669 = vmatprep.subr.mxu0 0.0
    %1670 = vmatpush1.msra.mxu0 0.0
    %1671 = vmatprep.subr.mxu0 0.0
    %1672 = vmatpush1.msra.mxu0 0.0
    %1673 = vmatprep.subr.mxu0 0.0
    %1674 = vmatpush1.msra.mxu0 0.0
    %1675 = vmatprep.subr.mxu0 0.0
    %1676 = vmatpush1.msra.mxu0 0.0
    %1677 = vmatprep.subr.mxu0 0.0
    %1678 = vmatpush1.msra.mxu0 0.0
    %1679 = vmatprep.subr.mxu0 0.0
    %1680 = vmatpush1.msra.mxu0 0.0
    %1681 = vmatprep.subr.mxu0 0.0
    %1682 = vmatpush1.msra.mxu0 0.0
    %1683 = vmatprep.subr.mxu0 0.0
    %1684 = vmatpush1.msra.mxu0 0.0
    %1685 = vmatprep.subr.mxu0 0.0
    %1686 = vmatpush1.msra.mxu0 0.0
    %1687 = vmatprep.subr.mxu0 0.0
    %1688 = vmatpush1.msra.mxu0 0.0
    %1689 = vmatprep.subr.mxu0 0.0
    %1690 = vmatpush1.msra.mxu0 0.0
    %1691 = vmatprep.subr.mxu0 0.0
    %1692 = vmatpush1.msra.mxu0 0.0
    %1693 = vmatprep.mubr.f32.mxu0 0.0
    %1694 = vmatmul.mubr.f32.gmra.mrb[0].mxu0 %v1532
    %v1695 = vpop.f32.mrb[0].mxu0
    %v1696 = vadd.f32 %v146, %v1695
    %v1697 = vpop.f32.mrb[0].mxu0
    %1698 = vdwg.mxu0
    %1700 = vrot.lane.b32.xlu0 %v1696, 32
    %v1701 = vpop.permute.xlu0 %1700
    %v1703 = vadd.f32 %v1628, %v1701
    %v1704 = vsel %vm231, %v1703, -inf
    %1705 = vmax.xlane.f32.xlu0 %v1704
    %v1706 = vpop.xlane.xlu0 %1705
    %v1707 = vsub.f32 %v1703, %v1706
    %v1708 = vmul.f32 %v1707, 1.442695
    %v1709 = vpow.pop %v1708
    %v1710 = vsel %vm231, %v1709, 0.0
    %1711 = vadd.xlane.f32.xlu0 %v1710
    %v1712 = vpop.xlane.xlu0 %1711
    %v1713 = vrcp.pop %v1712
    %v1714 = vmul.f32 %v1709, %v1713
    %v1716 = vsel %vm243, %v1714, 0
    %1718 = vmatprep.subr.mxu0 0.0
    %1719 = vmatpush1.msra.mxu0 %v131
    %1720 = vmatprep.subr.mxu0 0.0
    %1721 = vmatpush1.msra.mxu0 0.0
    %1722 = vmatprep.subr.mxu0 0.0
    %1723 = vmatpush1.msra.mxu0 0.0
    %1724 = vmatprep.subr.mxu0 0.0
    %1725 = vmatpush1.msra.mxu0 0.0
    %1726 = vmatprep.subr.mxu0 0.0
    %1727 = vmatpush1.msra.mxu0 0.0
    %1728 = vmatprep.subr.mxu0 0.0
    %1729 = vmatpush1.msra.mxu0 0.0
    %1730 = vmatprep.subr.mxu0 0.0
    %1731 = vmatpush1.msra.mxu0 0.0
    %1732 = vmatprep.subr.mxu0 0.0
    %1733 = vmatpush1.msra.mxu0 0.0
    %1734 = vmatprep.subr.mxu0 0.0
    %1735 = vmatpush1.msra.mxu0 0.0
    %1736 = vmatprep.subr.mxu0 0.0
    %1737 = vmatpush1.msra.mxu0 0.0
    %1738 = vmatprep.subr.mxu0 0.0
    %1739 = vmatpush1.msra.mxu0 0.0
    %1740 = vmatprep.subr.mxu0 0.0
    %1741 = vmatpush1.msra.mxu0 0.0
    %1742 = vmatprep.subr.mxu0 0.0
    %1743 = vmatpush1.msra.mxu0 0.0
    %1744 = vmatprep.subr.mxu0 0.0
    %1745 = vmatpush1.msra.mxu0 0.0
    %1746 = vmatprep.subr.mxu0 0.0
    %1747 = vmatpush1.msra.mxu0 0.0
    %1748 = vmatprep.subr.mxu0 0.0
    %1749 = vmatpush1.msra.mxu0 0.0
    %1750 = vmatprep.subr.mxu0 0.0
    %1751 = vmatpush1.msra.mxu0 0.0
    %1752 = vmatprep.subr.mxu0 0.0
    %1753 = vmatpush1.msra.mxu0 0.0
    %1754 = vmatprep.subr.mxu0 0.0
    %1755 = vmatpush1.msra.mxu0 0.0
    %1756 = vmatprep.subr.mxu0 0.0
    %1757 = vmatpush1.msra.mxu0 0.0
    %1758 = vmatprep.subr.mxu0 0.0
    %1759 = vmatpush1.msra.mxu0 0.0
    %1760 = vmatprep.subr.mxu0 0.0
    %1761 = vmatpush1.msra.mxu0 0.0
    %1762 = vmatprep.subr.mxu0 0.0
    %1763 = vmatpush1.msra.mxu0 0.0
    %1764 = vmatprep.subr.mxu0 0.0
    %1765 = vmatpush1.msra.mxu0 0.0
    %1766 = vmatprep.subr.mxu0 0.0
    %1767 = vmatpush1.msra.mxu0 0.0
    %1768 = vmatprep.subr.mxu0 0.0
    %1769 = vmatpush1.msra.mxu0 0.0
    %1770 = vmatprep.subr.mxu0 0.0
    %1771 = vmatpush1.msra.mxu0 0.0
    %1772 = vmatprep.subr.mxu0 0.0
    %1773 = vmatpush1.msra.mxu0 0.0
    %1774 = vmatprep.subr.mxu0 0.0
    %1775 = vmatpush1.msra.mxu0 0.0
    %1776 = vmatprep.subr.mxu0 0.0
    %1777 = vmatpush1.msra.mxu0 0.0
    %1778 = vmatprep.subr.mxu0 0.0
    %1779 = vmatpush1.msra.mxu0 0.0
    %1780 = vmatprep.subr.mxu0 0.0
    %1781 = vmatpush1.msra.mxu0 0.0
    %1782 = vmatprep.mubr.f32.mxu0 0.0
    %1783 = vmatmul.mubr.f32.gmra.mrb[0].mxu0 %v1716
    %v1784 = vpop.f32.mrb[0].mxu0
    %v1785 = vadd.f32 0.0, %v1784
    %v1786 = vpop.f32.mrb[0].mxu0
    %1787 = vdwg.mxu0
    %1789 = vrot.lane.b32.xlu0 %v1785, 8
    %v1790 = vpop.permute.xlu0 %1789
    %v1792 = vadd.f32 %v1628, %v1790
    %v1793 = vmax.f32 %v1792, 0.0
    %1795 = vrot.lane.b32.xlu0 %v1793, 120
    %v1796 = vpop.permute.xlu0 %1795
    %v1797 = vsel %vm60, %v1796, 0
    %1799 = vmatprep.subr.mxu0 0.0
    %1800 = vmatpush1.msra.mxu0 %v138
    %1801 = vmatprep.subr.mxu0 0.0
    %1802 = vmatpush1.msra.mxu0 %v139
    %1803 = vmatprep.subr.mxu0 0.0
    %1804 = vmatpush1.msra.mxu0 %v140
    %1805 = vmatprep.subr.mxu0 0.0
    %1806 = vmatpush1.msra.mxu0 %v141
    %1807 = vmatprep.subr.mxu0 0.0
    %1808 = vmatpush1.msra.mxu0 0.0
    %1809 = vmatprep.subr.mxu0 0.0
    %1810 = vmatpush1.msra.mxu0 0.0
    %1811 = vmatprep.subr.mxu0 0.0
    %1812 = vmatpush1.msra.mxu0 0.0
    %1813 = vmatprep.subr.mxu0 0.0
    %1814 = vmatpush1.msra.mxu0 0.0
    %1815 = vmatprep.subr.mxu0 0.0
    %1816 = vmatpush1.msra.mxu0 0.0
    %1817 = vmatprep.subr.mxu0 0.0
    %1818 = vmatpush1.msra.mxu0 0.0
    %1819 = vmatprep.subr.mxu0 0.0
    %1820 = vmatpush1.msra.mxu0 0.0
    %1821 = vmatprep.subr.mxu0 0.0
    %1822 = vmatpush1.msra.mxu0 0.0
    %1823 = vmatprep.subr.mxu0 0.0
    %1824 = vmatpush1.msra.mxu0 0.0
    %1825 = vmatprep.subr.mxu0 0.0
    %1826 = vmatpush1.msra.mxu0 0.0
    %1827 = vmatprep.subr.mxu0 0.0
    %1828 = vmatpush1.msra.mxu0 0.0
    %1829 = vmatprep.subr.mxu0 0.0
    %1830 = vmatpush1.msra.mxu0 0.0
    %1831 = vmatprep.subr.mxu0 0.0
    %1832 = vmatpush1.msra.mxu0 0.0
    %1833 = vmatprep.subr.mxu0 0.0
    %1834 = vmatpush1.msra.mxu0 0.0
    %1835 = vmatprep.subr.mxu0 0.0
    %1836 = vmatpush1.msra.mxu0 0.0
    %1837 = vmatprep.subr.mxu0 0.0
    %1838 = vmatpush1.msra.mxu0 0.0
    %1839 = vmatprep.subr.mxu0 0.0
    %1840 = vmatpush1.msra.mxu0 0.0
    %1841 = vmatprep.subr.mxu0 0.0
    %1842 = vmatpush1.msra.mxu0 0.0
    %1843 = vmatprep.subr.mxu0 0.0
    %1844 = vmatpush1.msra.mxu0 0.0
    %1845 = vmatprep.subr.mxu0 0.0
    %1846 = vmatpush1.msra.mxu0 0.0
    %1847 = vmatprep.subr.mxu0 0.0
    %1848 = vmatpush1.msra.mxu0 0.0
    %1849 = vmatprep.subr.mxu0 0.0
    %1850 = vmatpush1.msra.mxu0 0.0
    %1851 = vmatprep.subr.mxu0 0.0
    %1852 = vmatpush1.msra.mxu0 0.0
    %1853 = vmatprep.subr.mxu0 0.0
    %1854 = vmatpush1.msra.mxu0 0.0
    %1855 = vmatprep.subr.mxu0 0.0
    %1856 = vmatpush1.msra.mxu0 0.0
    %1857 = vmatprep.subr.mxu0 0.0
    %1858 = vmatpush1.msra.mxu0 0.0
    %1859 = vmatprep.subr.mxu0 0.0
    %1860 = vmatpush1.msra.mxu0 0.0
    %1861 = vmatprep.subr.mxu0 0.0
    %1862 = vmatpush1.msra.mxu0 0.0
    %1863 = vmatprep.mubr.f32.mxu0 0.0
    %1864 = vmatmul.mubr.f32.gmra.mrb[0].mxu0 %v1797
    %v1865 = vpop.f32.mrb[0].mxu0
    %v1866 = vadd.f32 %v147, %v1865
    %v1867 = vpop.f32.mrb[0].mxu0
    %1868 = vdwg.mxu0
    %v1869 = vadd.f32 %v1866, %v1696
    %v1870 = vxor.u32 %v1869, 2147483648
    %v1871 = vmul.f32 %v1870, 1.442695
    %v1872 = vpow.pop %v1871
    %v1873 = vadd.f32 %v1872, 1.0
    %v1874 = vrcp.pop %v1873
    %v1875 = vmul.f32 1.0, %v1874
    %1876 = vrot.lane.b32.xlu0 %v1696, 64
    %v1877 = vpop.permute.xlu0 %1876
    %v1879 = vmul.f32 %v1875, %v1877
    %1881 = vrot.lane.b32.xlu0 %v1879, 64
    %v1882 = vpop.permute.xlu0 %1881
    %v1884 = vadd.f32 %v1866, %v1882
    %v1885 = vtanh.pop %v1884
    %v1886 = vsub.f32 1.0, %v1875
    %1888 = vrot.lane.b32.xlu0 %v1885, 96
    %v1889 = vpop.permute.xlu0 %1888
    %v1891 = vmul.f32 %v1886, %v1889
    %v1892 = vmul.f32 %v1875, %v1528
    %v1893 = vadd.f32 %v1891, %v1892
    %1895 = vrot.lane.b32.xlu0 %v1893, 96
    %v1896 = vpop.permute.xlu0 %1895
    %v1897 = vsel %vm60, %v1896, 0
    %1899 = vmatprep.subr.mxu0 0.0
    %1900 = vmatpush1.msra.mxu0 %v142
    %1901 = vmatprep.subr.mxu0 0.0
    %1902 = vmatpush1.msra.mxu0 %v143
    %1903 = vmatprep.subr.mxu0 0.0
    %1904 = vmatpush1.msra.mxu0 %v144
    %1905 = vmatprep.subr.mxu0 0.0
    %1906 = vmatpush1.msra.mxu0 %v145
    %1907 = vmatprep.subr.mxu0 0.0
    %1908 = vmatpush1.msra.mxu0 0.0
    %1909 = vmatprep.subr.mxu0 0.0
    %1910 = vmatpush1.msra.mxu0 0.0
    %1911 = vmatprep.subr.mxu0 0.0
    %1912 = vmatpush1.msra.mxu0 0.0
    %1913 = vmatprep.subr.mxu0 0.0
    %1914 = vmatpush1.msra.mxu0 0.0
    %1915 = vmatprep.subr.mxu0 0.0
    %1916 = vmatpush1.msra.mxu0 0.0
    %1917 = vmatprep.subr.mxu0 0.0
    %1918 = vmatpush1.msra.mxu0 0.0
    %1919 = vmatprep.subr.mxu0 0.0
    %1920 = vmatpush1.msra.mxu0 0.0
    %1921 = vmatprep.subr.mxu0 0.0
    %1922 = vmatpush1.msra.mxu0 0.0
    %1923 = vmatprep.subr.mxu0 0.0
    %1924 = vmatpush1.msra.mxu0 0.0
    %1925 = vmatprep.subr.mxu0 0.0
    %1926 = vmatpush1.msra.mxu0 0.0
    %1927 = vmatprep.subr.mxu0 0.0
    %1928 = vmatpush1.msra.mxu0 0.0
    %1929 = vmatprep.subr.mxu0 0.0
    %1930 = vmatpush1.msra.mxu0 0.0
    %1931 = vmatprep.subr.mxu0 0.0
    %1932 = vmatpush1.msra.mxu0 0.0
    %1933 = vmatprep.subr.mxu0 0.0
    %1934 = vmatpush1.msra.mxu0 0.0
    %1935 = vmatprep.subr.mxu0 0.0
    %1936 = vmatpush1.msra.mxu0 0.0
    %1937 = vmatprep.subr.mxu0 0.0
    %1938 = vmatpush1.msra.mxu0 0.0
    %1939 = vmatprep.subr.mxu0 0.0
    %1940 = vmatpush1.msra.mxu0 0.0
    %1941 = vmatprep.subr.mxu0 0.0
    %1942 = vmatpush1.msra.mxu0 0.0
    %1943 = vmatprep.subr.mxu0 0.0
    %1944 = vmatpush1.msra.mxu0 0.0
    %1945 = vmatprep.subr.mxu0 0.0
    %1946 = vmatpush1.msra.mxu0 0.0
    %1947 = vmatprep.subr.mxu0 0.0
    %1948 = vmatpush1.msra.mxu0 0.0
    %1949 = vmatprep.subr.mxu0 0.0
    %1950 = vmatpush1.msra.mxu0 0.0
    %1951 = vmatprep.subr.mxu0 0.0
    %1952 = vmatpush1.msra.mxu0 0.0
    %1953 = vmatprep.subr.mxu0 0.0
    %1954 = vmatpush1.msra.mxu0 0.0
    %1955 = vmatprep.subr.mxu0 0.0
    %1956 = vmatpush1.msra.mxu0 0.0
    %1957 = vmatprep.subr.mxu0 0.0
    %1958 = vmatpush1.msra.mxu0 0.0
    %1959 = vmatprep.subr.mxu0 0.0
    %1960 = vmatpush1.msra.mxu0 0.0
    %1961 = vmatprep.subr.mxu0 0.0
    %1962 = vmatpush1.msra.mxu0 0.0
    %1963 = vmatprep.mubr.f32.mxu0 0.0
    %1964 = vmatmul.mubr.f32.gmra.mrb[0].mxu0 %v1897
    %v1965 = vpop.f32.mrb[0].mxu0
    %v1966 = vadd.f32 %v148, %v1965
    %v1967 = vpop.f32.mrb[0].mxu0
    %1968 = vdwg.mxu0
    %v1969 = vsel %vm505, %v1966, -inf
    %1970 = vmax.xlane.f32.xlu0 %v1969
    %v1971 = vpop.xlane.xlu0 %1970
    %v1972 = vsub.f32 %v1966, %v1971
    %v1973 = vmul.f32 %v1972, 1.442695
    %v1974 = vpow.pop %v1973
    %v1975 = vsel %vm505, %v1974, 0.0
    %1976 = vadd.xlane.f32.xlu0 %v1975
    %v1977 = vpop.xlane.xlu0 %1976
    %v1978 = vlog2.pop %v1977
    %v1979 = vmul.f32 %v1978, 0.6931472
    %v1980 = vsub.f32 %v1972, %v1979
    %1981 = vrot.lane.b32.xlu0 %v1893, 32
    %v1982 = vpop.permute.xlu0 %1981
    %1984 = vrot.lane.b32.xlu0 %v1714, 96
    %v1985 = vpop.permute.xlu0 %1984
    %v1987 = vsel %vm524, %v1980, %v1982
    %v1988 = vsel %vm526, %v1987, %v1985
    %v1989 = vsel %vm528, %v1988, 0.0
    %1990 = vst [vmem:[#allocation7 + $0x4] sm:$0x1] %v1989
    %s1991 = sld [smem:[#allocation3 + $0x5]]
    %s1992 = scalar_lea.vmem %s1, %s1991
    %v1993 = vld [vmem:[%s1992] sm:$0x1]
    %1994 = vmatprep.subr.mxu0 0.0
    %1995 = vmatpush1.msra.mxu0 %v134
    %1996 = vmatprep.subr.mxu0 0.0
    %1997 = vmatpush1.msra.mxu0 %v135
    %1998 = vmatprep.subr.mxu0 0.0
    %1999 = vmatpush1.msra.mxu0 %v136
    %2000 = vmatprep.subr.mxu0 0.0
    %2001 = vmatpush1.msra.mxu0 %v137
    %2002 = vmatprep.subr.mxu0 0.0
    %2003 = vmatpush1.msra.mxu0 0.0
    %2004 = vmatprep.subr.mxu0 0.0
    %2005 = vmatpush1.msra.mxu0 0.0
    %2006 = vmatprep.subr.mxu0 0.0
    %2007 = vmatpush1.msra.mxu0 0.0
    %2008 = vmatprep.subr.mxu0 0.0
    %2009 = vmatpush1.msra.mxu0 0.0
    %2010 = vmatprep.subr.mxu0 0.0
    %2011 = vmatpush1.msra.mxu0 0.0
    %2012 = vmatprep.subr.mxu0 0.0
    %2013 = vmatpush1.msra.mxu0 0.0
    %2014 = vmatprep.subr.mxu0 0.0
    %2015 = vmatpush1.msra.mxu0 0.0
    %2016 = vmatprep.subr.mxu0 0.0
    %2017 = vmatpush1.msra.mxu0 0.0
    %2018 = vmatprep.subr.mxu0 0.0
    %2019 = vmatpush1.msra.mxu0 0.0
    %2020 = vmatprep.subr.mxu0 0.0
    %2021 = vmatpush1.msra.mxu0 0.0
    %2022 = vmatprep.subr.mxu0 0.0
    %2023 = vmatpush1.msra.mxu0 0.0
    %2024 = vmatprep.subr.mxu0 0.0
    %2025 = vmatpush1.msra.mxu0 0.0
    %2026 = vmatprep.subr.mxu0 0.0
    %2027 = vmatpush1.msra.mxu0 0.0
    %2028 = vmatprep.subr.mxu0 0.0
    %2029 = vmatpush1.msra.mxu0 0.0
    %2030 = vmatprep.subr.mxu0 0.0
    %2031 = vmatpush1.msra.mxu0 0.0
    %2032 = vmatprep.subr.mxu0 0.0
    %2033 = vmatpush1.msra.mxu0 0.0
    %2034 = vmatprep.subr.mxu0 0.0
    %2035 = vmatpush1.msra.mxu0 0.0
    %2036 = vmatprep.subr.mxu0 0.0
    %2037 = vmatpush1.msra.mxu0 0.0
    %2038 = vmatprep.subr.mxu0 0.0
    %2039 = vmatpush1.msra.mxu0 0.0
    %2040 = vmatprep.subr.mxu0 0.0
    %2041 = vmatpush1.msra.mxu0 0.0
    %2042 = vmatprep.subr.mxu0 0.0
    %2043 = vmatpush1.msra.mxu0 0.0
    %2044 = vmatprep.subr.mxu0 0.0
    %2045 = vmatpush1.msra.mxu0 0.0
    %2046 = vmatprep.subr.mxu0 0.0
    %2047 = vmatpush1.msra.mxu0 0.0
    %2048 = vmatprep.subr.mxu0 0.0
    %2049 = vmatpush1.msra.mxu0 0.0
    %2050 = vmatprep.subr.mxu0 0.0
    %2051 = vmatpush1.msra.mxu0 0.0
    %2052 = vmatprep.subr.mxu0 0.0
    %2053 = vmatpush1.msra.mxu0 0.0
    %2054 = vmatprep.subr.mxu0 0.0
    %2055 = vmatpush1.msra.mxu0 0.0
    %2056 = vmatprep.subr.mxu0 0.0
    %2057 = vmatpush1.msra.mxu0 0.0
    %2058 = vmatprep.mubr.f32.mxu0 0.0
    %2059 = vmatmul.mubr.f32.gmra.mrb[0].mxu0 %v1897
    %v2060 = vpop.f32.mrb[0].mxu0
    %v2061 = vadd.f32 %v146, %v2060
    %v2062 = vpop.f32.mrb[0].mxu0
    %2063 = vdwg.mxu0
    %2065 = vrot.lane.b32.xlu0 %v2061, 32
    %v2066 = vpop.permute.xlu0 %2065
    %v2068 = vadd.f32 %v1993, %v2066
    %v2069 = vsel %vm231, %v2068, -inf
    %2070 = vmax.xlane.f32.xlu0 %v2069
    %v2071 = vpop.xlane.xlu0 %2070
    %v2072 = vsub.f32 %v2068, %v2071
    %v2073 = vmul.f32 %v2072, 1.442695
    %v2074 = vpow.pop %v2073
    %v2075 = vsel %vm231, %v2074, 0.0
    %2076 = vadd.xlane.f32.xlu0 %v2075
    %v2077 = vpop.xlane.xlu0 %2076
    %v2078 = vrcp.pop %v2077
    %v2079 = vmul.f32 %v2074, %v2078
    %v2081 = vsel %vm243, %v2079, 0
    %2083 = vmatprep.subr.mxu0 0.0
    %2084 = vmatpush1.msra.mxu0 %v131
    %2085 = vmatprep.subr.mxu0 0.0
    %2086 = vmatpush1.msra.mxu0 0.0
    %2087 = vmatprep.subr.mxu0 0.0
    %2088 = vmatpush1.msra.mxu0 0.0
    %2089 = vmatprep.subr.mxu0 0.0
    %2090 = vmatpush1.msra.mxu0 0.0
    %2091 = vmatprep.subr.mxu0 0.0
    %2092 = vmatpush1.msra.mxu0 0.0
    %2093 = vmatprep.subr.mxu0 0.0
    %2094 = vmatpush1.msra.mxu0 0.0
    %2095 = vmatprep.subr.mxu0 0.0
    %2096 = vmatpush1.msra.mxu0 0.0
    %2097 = vmatprep.subr.mxu0 0.0
    %2098 = vmatpush1.msra.mxu0 0.0
    %2099 = vmatprep.subr.mxu0 0.0
    %2100 = vmatpush1.msra.mxu0 0.0
    %2101 = vmatprep.subr.mxu0 0.0
    %2102 = vmatpush1.msra.mxu0 0.0
    %2103 = vmatprep.subr.mxu0 0.0
    %2104 = vmatpush1.msra.mxu0 0.0
    %2105 = vmatprep.subr.mxu0 0.0
    %2106 = vmatpush1.msra.mxu0 0.0
    %2107 = vmatprep.subr.mxu0 0.0
    %2108 = vmatpush1.msra.mxu0 0.0
    %2109 = vmatprep.subr.mxu0 0.0
    %2110 = vmatpush1.msra.mxu0 0.0
    %2111 = vmatprep.subr.mxu0 0.0
    %2112 = vmatpush1.msra.mxu0 0.0
    %2113 = vmatprep.subr.mxu0 0.0
    %2114 = vmatpush1.msra.mxu0 0.0
    %2115 = vmatprep.subr.mxu0 0.0
    %2116 = vmatpush1.msra.mxu0 0.0
    %2117 = vmatprep.subr.mxu0 0.0
    %2118 = vmatpush1.msra.mxu0 0.0
    %2119 = vmatprep.subr.mxu0 0.0
    %2120 = vmatpush1.msra.mxu0 0.0
    %2121 = vmatprep.subr.mxu0 0.0
    %2122 = vmatpush1.msra.mxu0 0.0
    %2123 = vmatprep.subr.mxu0 0.0
    %2124 = vmatpush1.msra.mxu0 0.0
    %2125 = vmatprep.subr.mxu0 0.0
    %2126 = vmatpush1.msra.mxu0 0.0
    %2127 = vmatprep.subr.mxu0 0.0
    %2128 = vmatpush1.msra.mxu0 0.0
    %2129 = vmatprep.subr.mxu0 0.0
    %2130 = vmatpush1.msra.mxu0 0.0
    %2131 = vmatprep.subr.mxu0 0.0
    %2132 = vmatpush1.msra.mxu0 0.0
    %2133 = vmatprep.subr.mxu0 0.0
    %2134 = vmatpush1.msra.mxu0 0.0
    %2135 = vmatprep.subr.mxu0 0.0
    %2136 = vmatpush1.msra.mxu0 0.0
    %2137 = vmatprep.subr.mxu0 0.0
    %2138 = vmatpush1.msra.mxu0 0.0
    %2139 = vmatprep.subr.mxu0 0.0
    %2140 = vmatpush1.msra.mxu0 0.0
    %2141 = vmatprep.subr.mxu0 0.0
    %2142 = vmatpush1.msra.mxu0 0.0
    %2143 = vmatprep.subr.mxu0 0.0
    %2144 = vmatpush1.msra.mxu0 0.0
    %2145 = vmatprep.subr.mxu0 0.0
    %2146 = vmatpush1.msra.mxu0 0.0
    %2147 = vmatprep.mubr.f32.mxu0 0.0
    %2148 = vmatmul.mubr.f32.gmra.mrb[0].mxu0 %v2081
    %v2149 = vpop.f32.mrb[0].mxu0
    %v2150 = vadd.f32 0.0, %v2149
    %v2151 = vpop.f32.mrb[0].mxu0
    %2152 = vdwg.mxu0
    %2154 = vrot.lane.b32.xlu0 %v2150, 8
    %v2155 = vpop.permute.xlu0 %2154
    %v2157 = vadd.f32 %v1993, %v2155
    %v2158 = vmax.f32 %v2157, 0.0
    %2160 = vrot.lane.b32.xlu0 %v2158, 120
    %v2161 = vpop.permute.xlu0 %2160
    %v2162 = vsel %vm60, %v2161, 0
    %2164 = vmatprep.subr.mxu0 0.0
    %2165 = vmatpush1.msra.mxu0 %v138
    %2166 = vmatprep.subr.mxu0 0.0
    %2167 = vmatpush1.msra.mxu0 %v139
    %2168 = vmatprep.subr.mxu0 0.0
    %2169 = vmatpush1.msra.mxu0 %v140
    %2170 = vmatprep.subr.mxu0 0.0
    %2171 = vmatpush1.msra.mxu0 %v141
    %2172 = vmatprep.subr.mxu0 0.0
    %2173 = vmatpush1.msra.mxu0 0.0
    %2174 = vmatprep.subr.mxu0 0.0
    %2175 = vmatpush1.msra.mxu0 0.0
    %2176 = vmatprep.subr.mxu0 0.0
    %2177 = vmatpush1.msra.mxu0 0.0
    %2178 = vmatprep.subr.mxu0 0.0
    %2179 = vmatpush1.msra.mxu0 0.0
    %2180 = vmatprep.subr.mxu0 0.0
    %2181 = vmatpush1.msra.mxu0 0.0
    %2182 = vmatprep.subr.mxu0 0.0
    %2183 = vmatpush1.msra.mxu0 0.0
    %2184 = vmatprep.subr.mxu0 0.0
    %2185 = vmatpush1.msra.mxu0 0.0
    %2186 = vmatprep.subr.mxu0 0.0
    %2187 = vmatpush1.msra.mxu0 0.0
    %2188 = vmatprep.subr.mxu0 0.0
    %2189 = vmatpush1.msra.mxu0 0.0
    %2190 = vmatprep.subr.mxu0 0.0
    %2191 = vmatpush1.msra.mxu0 0.0
    %2192 = vmatprep.subr.mxu0 0.0
    %2193 = vmatpush1.msra.mxu0 0.0
    %2194 = vmatprep.subr.mxu0 0.0
    %2195 = vmatpush1.msra.mxu0 0.0
    %2196 = vmatprep.subr.mxu0 0.0
    %2197 = vmatpush1.msra.mxu0 0.0
    %2198 = vmatprep.subr.mxu0 0.0
    %2199 = vmatpush1.msra.mxu0 0.0
    %2200 = vmatprep.subr.mxu0 0.0
    %2201 = vmatpush1.msra.mxu0 0.0
    %2202 = vmatprep.subr.mxu0 0.0
    %2203 = vmatpush1.msra.mxu0 0.0
    %2204 = vmatprep.subr.mxu0 0.0
    %2205 = vmatpush1.msra.mxu0 0.0
    %2206 = vmatprep.subr.mxu0 0.0
    %2207 = vmatpush1.msra.mxu0 0.0
    %2208 = vmatprep.subr.mxu0 0.0
    %2209 = vmatpush1.msra.mxu0 0.0
    %2210 = vmatprep.subr.mxu0 0.0
    %2211 = vmatpush1.msra.mxu0 0.0
    %2212 = vmatprep.subr.mxu0 0.0
    %2213 = vmatpush1.msra.mxu0 0.0
    %2214 = vmatprep.subr.mxu0 0.0
    %2215 = vmatpush1.msra.mxu0 0.0
    %2216 = vmatprep.subr.mxu0 0.0
    %2217 = vmatpush1.msra.mxu0 0.0
    %2218 = vmatprep.subr.mxu0 0.0
    %2219 = vmatpush1.msra.mxu0 0.0
    %2220 = vmatprep.subr.mxu0 0.0
    %2221 = vmatpush1.msra.mxu0 0.0
    %2222 = vmatprep.subr.mxu0 0.0
    %2223 = vmatpush1.msra.mxu0 0.0
    %2224 = vmatprep.subr.mxu0 0.0
    %2225 = vmatpush1.msra.mxu0 0.0
    %2226 = vmatprep.subr.mxu0 0.0
    %2227 = vmatpush1.msra.mxu0 0.0
    %2228 = vmatprep.mubr.f32.mxu0 0.0
    %2229 = vmatmul.mubr.f32.gmra.mrb[0].mxu0 %v2162
    %v2230 = vpop.f32.mrb[0].mxu0
    %v2231 = vadd.f32 %v147, %v2230
    %v2232 = vpop.f32.mrb[0].mxu0
    %2233 = vdwg.mxu0
    %v2234 = vadd.f32 %v2231, %v2061
    %v2235 = vxor.u32 %v2234, 2147483648
    %v2236 = vmul.f32 %v2235, 1.442695
    %v2237 = vpow.pop %v2236
    %v2238 = vadd.f32 %v2237, 1.0
    %v2239 = vrcp.pop %v2238
    %v2240 = vmul.f32 1.0, %v2239
    %2241 = vrot.lane.b32.xlu0 %v2061, 64
    %v2242 = vpop.permute.xlu0 %2241
    %v2244 = vmul.f32 %v2240, %v2242
    %2246 = vrot.lane.b32.xlu0 %v2244, 64
    %v2247 = vpop.permute.xlu0 %2246
    %v2249 = vadd.f32 %v2231, %v2247
    %v2250 = vtanh.pop %v2249
    %v2251 = vsub.f32 1.0, %v2240
    %2253 = vrot.lane.b32.xlu0 %v2250, 96
    %v2254 = vpop.permute.xlu0 %2253
    %v2256 = vmul.f32 %v2251, %v2254
    %v2257 = vmul.f32 %v2240, %v1893
    %v2258 = vadd.f32 %v2256, %v2257
    %2260 = vrot.lane.b32.xlu0 %v2258, 96
    %v2261 = vpop.permute.xlu0 %2260
    %v2262 = vsel %vm60, %v2261, 0
    %2264 = vmatprep.subr.mxu0 0.0
    %2265 = vmatpush1.msra.mxu0 %v142
    %2266 = vmatprep.subr.mxu0 0.0
    %2267 = vmatpush1.msra.mxu0 %v143
    %2268 = vmatprep.subr.mxu0 0.0
    %2269 = vmatpush1.msra.mxu0 %v144
    %2270 = vmatprep.subr.mxu0 0.0
    %2271 = vmatpush1.msra.mxu0 %v145
    %2272 = vmatprep.subr.mxu0 0.0
    %2273 = vmatpush1.msra.mxu0 0.0
    %2274 = vmatprep.subr.mxu0 0.0
    %2275 = vmatpush1.msra.mxu0 0.0
    %2276 = vmatprep.subr.mxu0 0.0
    %2277 = vmatpush1.msra.mxu0 0.0
    %2278 = vmatprep.subr.mxu0 0.0
    %2279 = vmatpush1.msra.mxu0 0.0
    %2280 = vmatprep.subr.mxu0 0.0
    %2281 = vmatpush1.msra.mxu0 0.0
    %2282 = vmatprep.subr.mxu0 0.0
    %2283 = vmatpush1.msra.mxu0 0.0
    %2284 = vmatprep.subr.mxu0 0.0
    %2285 = vmatpush1.msra.mxu0 0.0
    %2286 = vmatprep.subr.mxu0 0.0
    %2287 = vmatpush1.msra.mxu0 0.0
    %2288 = vmatprep.subr.mxu0 0.0
    %2289 = vmatpush1.msra.mxu0 0.0
    %2290 = vmatprep.subr.mxu0 0.0
    %2291 = vmatpush1.msra.mxu0 0.0
    %2292 = vmatprep.subr.mxu0 0.0
    %2293 = vmatpush1.msra.mxu0 0.0
    %2294 = vmatprep.subr.mxu0 0.0
    %2295 = vmatpush1.msra.mxu0 0.0
    %2296 = vmatprep.subr.mxu0 0.0
    %2297 = vmatpush1.msra.mxu0 0.0
    %2298 = vmatprep.subr.mxu0 0.0
    %2299 = vmatpush1.msra.mxu0 0.0
    %2300 = vmatprep.subr.mxu0 0.0
    %2301 = vmatpush1.msra.mxu0 0.0
    %2302 = vmatprep.subr.mxu0 0.0
    %2303 = vmatpush1.msra.mxu0 0.0
    %2304 = vmatprep.subr.mxu0 0.0
    %2305 = vmatpush1.msra.mxu0 0.0
    %2306 = vmatprep.subr.mxu0 0.0
    %2307 = vmatpush1.msra.mxu0 0.0
    %2308 = vmatprep.subr.mxu0 0.0
    %2309 = vmatpush1.msra.mxu0 0.0
    %2310 = vmatprep.subr.mxu0 0.0
    %2311 = vmatpush1.msra.mxu0 0.0
    %2312 = vmatprep.subr.mxu0 0.0
    %2313 = vmatpush1.msra.mxu0 0.0
    %2314 = vmatprep.subr.mxu0 0.0
    %2315 = vmatpush1.msra.mxu0 0.0
    %2316 = vmatprep.subr.mxu0 0.0
    %2317 = vmatpush1.msra.mxu0 0.0
    %2318 = vmatprep.subr.mxu0 0.0
    %2319 = vmatpush1.msra.mxu0 0.0
    %2320 = vmatprep.subr.mxu0 0.0
    %2321 = vmatpush1.msra.mxu0 0.0
    %2322 = vmatprep.subr.mxu0 0.0
    %2323 = vmatpush1.msra.mxu0 0.0
    %2324 = vmatprep.subr.mxu0 0.0
    %2325 = vmatpush1.msra.mxu0 0.0
    %2326 = vmatprep.subr.mxu0 0.0
    %2327 = vmatpush1.msra.mxu0 0.0
    %2328 = vmatprep.mubr.f32.mxu0 0.0
    %2329 = vmatmul.mubr.f32.gmra.mrb[0].mxu0 %v2262
    %v2330 = vpop.f32.mrb[0].mxu0
    %v2331 = vadd.f32 %v148, %v2330
    %v2332 = vpop.f32.mrb[0].mxu0
    %2333 = vdwg.mxu0
    %v2334 = vsel %vm505, %v2331, -inf
    %2335 = vmax.xlane.f32.xlu0 %v2334
    %v2336 = vpop.xlane.xlu0 %2335
    %v2337 = vsub.f32 %v2331, %v2336
    %v2338 = vmul.f32 %v2337, 1.442695
    %v2339 = vpow.pop %v2338
    %v2340 = vsel %vm505, %v2339, 0.0
    %2341 = vadd.xlane.f32.xlu0 %v2340
    %v2342 = vpop.xlane.xlu0 %2341
    %v2343 = vlog2.pop %v2342
    %v2344 = vmul.f32 %v2343, 0.6931472
    %v2345 = vsub.f32 %v2337, %v2344
    %2346 = vrot.lane.b32.xlu0 %v2258, 32
    %v2347 = vpop.permute.xlu0 %2346
    %2349 = vrot.lane.b32.xlu0 %v2079, 96
    %v2350 = vpop.permute.xlu0 %2349
    %v2352 = vsel %vm524, %v2345, %v2347
    %v2353 = vsel %vm526, %v2352, %v2350
    %v2354 = vsel %vm528, %v2353, 0.0
    %2355 = vst [vmem:[#allocation7 + $0x5] sm:$0x1] %v2354
    %s2356 = sld [smem:[#allocation3 + $0x6]]
    %s2357 = scalar_lea.vmem %s1, %s2356
    %v2358 = vld [vmem:[%s2357] sm:$0x1]
    %2359 = vmatprep.subr.mxu0 0.0
    %2360 = vmatpush1.msra.mxu0 %v134
    %2361 = vmatprep.subr.mxu0 0.0
    %2362 = vmatpush1.msra.mxu0 %v135
    %2363 = vmatprep.subr.mxu0 0.0
    %2364 = vmatpush1.msra.mxu0 %v136
    %2365 = vmatprep.subr.mxu0 0.0
    %2366 = vmatpush1.msra.mxu0 %v137
    %2367 = vmatprep.subr.mxu0 0.0
    %2368 = vmatpush1.msra.mxu0 0.0
    %2369 = vmatprep.subr.mxu0 0.0
    %2370 = vmatpush1.msra.mxu0 0.0
    %2371 = vmatprep.subr.mxu0 0.0
    %2372 = vmatpush1.msra.mxu0 0.0
    %2373 = vmatprep.subr.mxu0 0.0
    %2374 = vmatpush1.msra.mxu0 0.0
    %2375 = vmatprep.subr.mxu0 0.0
    %2376 = vmatpush1.msra.mxu0 0.0
    %2377 = vmatprep.subr.mxu0 0.0
    %2378 = vmatpush1.msra.mxu0 0.0
    %2379 = vmatprep.subr.mxu0 0.0
    %2380 = vmatpush1.msra.mxu0 0.0
    %2381 = vmatprep.subr.mxu0 0.0
    %2382 = vmatpush1.msra.mxu0 0.0
    %2383 = vmatprep.subr.mxu0 0.0
    %2384 = vmatpush1.msra.mxu0 0.0
    %2385 = vmatprep.subr.mxu0 0.0
    %2386 = vmatpush1.msra.mxu0 0.0
    %2387 = vmatprep.subr.mxu0 0.0
    %2388 = vmatpush1.msra.mxu0 0.0
    %2389 = vmatprep.subr.mxu0 0.0
    %2390 = vmatpush1.msra.mxu0 0.0
    %2391 = vmatprep.subr.mxu0 0.0
    %2392 = vmatpush1.msra.mxu0 0.0
    %2393 = vmatprep.subr.mxu0 0.0
    %2394 = vmatpush1.msra.mxu0 0.0
    %2395 = vmatprep.subr.mxu0 0.0
    %2396 = vmatpush1.msra.mxu0 0.0
    %2397 = vmatprep.subr.mxu0 0.0
    %2398 = vmatpush1.msra.mxu0 0.0
    %2399 = vmatprep.subr.mxu0 0.0
    %2400 = vmatpush1.msra.mxu0 0.0
    %2401 = vmatprep.subr.mxu0 0.0
    %2402 = vmatpush1.msra.mxu0 0.0
    %2403 = vmatprep.subr.mxu0 0.0
    %2404 = vmatpush1.msra.mxu0 0.0
    %2405 = vmatprep.subr.mxu0 0.0
    %2406 = vmatpush1.msra.mxu0 0.0
    %2407 = vmatprep.subr.mxu0 0.0
    %2408 = vmatpush1.msra.mxu0 0.0
    %2409 = vmatprep.subr.mxu0 0.0
    %2410 = vmatpush1.msra.mxu0 0.0
    %2411 = vmatprep.subr.mxu0 0.0
    %2412 = vmatpush1.msra.mxu0 0.0
    %2413 = vmatprep.subr.mxu0 0.0
    %2414 = vmatpush1.msra.mxu0 0.0
    %2415 = vmatprep.subr.mxu0 0.0
    %2416 = vmatpush1.msra.mxu0 0.0
    %2417 = vmatprep.subr.mxu0 0.0
    %2418 = vmatpush1.msra.mxu0 0.0
    %2419 = vmatprep.subr.mxu0 0.0
    %2420 = vmatpush1.msra.mxu0 0.0
    %2421 = vmatprep.subr.mxu0 0.0
    %2422 = vmatpush1.msra.mxu0 0.0
    %2423 = vmatprep.mubr.f32.mxu0 0.0
    %2424 = vmatmul.mubr.f32.gmra.mrb[0].mxu0 %v2262
    %v2425 = vpop.f32.mrb[0].mxu0
    %v2426 = vadd.f32 %v146, %v2425
    %v2427 = vpop.f32.mrb[0].mxu0
    %2428 = vdwg.mxu0
    %2430 = vrot.lane.b32.xlu0 %v2426, 32
    %v2431 = vpop.permute.xlu0 %2430
    %v2433 = vadd.f32 %v2358, %v2431
    %v2434 = vsel %vm231, %v2433, -inf
    %2435 = vmax.xlane.f32.xlu0 %v2434
    %v2436 = vpop.xlane.xlu0 %2435
    %v2437 = vsub.f32 %v2433, %v2436
    %v2438 = vmul.f32 %v2437, 1.442695
    %v2439 = vpow.pop %v2438
    %v2440 = vsel %vm231, %v2439, 0.0
    %2441 = vadd.xlane.f32.xlu0 %v2440
    %v2442 = vpop.xlane.xlu0 %2441
    %v2443 = vrcp.pop %v2442
    %v2444 = vmul.f32 %v2439, %v2443
    %v2446 = vsel %vm243, %v2444, 0
    %2448 = vmatprep.subr.mxu0 0.0
    %2449 = vmatpush1.msra.mxu0 %v131
    %2450 = vmatprep.subr.mxu0 0.0
    %2451 = vmatpush1.msra.mxu0 0.0
    %2452 = vmatprep.subr.mxu0 0.0
    %2453 = vmatpush1.msra.mxu0 0.0
    %2454 = vmatprep.subr.mxu0 0.0
    %2455 = vmatpush1.msra.mxu0 0.0
    %2456 = vmatprep.subr.mxu0 0.0
    %2457 = vmatpush1.msra.mxu0 0.0
    %2458 = vmatprep.subr.mxu0 0.0
    %2459 = vmatpush1.msra.mxu0 0.0
    %2460 = vmatprep.subr.mxu0 0.0
    %2461 = vmatpush1.msra.mxu0 0.0
    %2462 = vmatprep.subr.mxu0 0.0
    %2463 = vmatpush1.msra.mxu0 0.0
    %2464 = vmatprep.subr.mxu0 0.0
    %2465 = vmatpush1.msra.mxu0 0.0
    %2466 = vmatprep.subr.mxu0 0.0
    %2467 = vmatpush1.msra.mxu0 0.0
    %2468 = vmatprep.subr.mxu0 0.0
    %2469 = vmatpush1.msra.mxu0 0.0
    %2470 = vmatprep.subr.mxu0 0.0
    %2471 = vmatpush1.msra.mxu0 0.0
    %2472 = vmatprep.subr.mxu0 0.0
    %2473 = vmatpush1.msra.mxu0 0.0
    %2474 = vmatprep.subr.mxu0 0.0
    %2475 = vmatpush1.msra.mxu0 0.0
    %2476 = vmatprep.subr.mxu0 0.0
    %2477 = vmatpush1.msra.mxu0 0.0
    %2478 = vmatprep.subr.mxu0 0.0
    %2479 = vmatpush1.msra.mxu0 0.0
    %2480 = vmatprep.subr.mxu0 0.0
    %2481 = vmatpush1.msra.mxu0 0.0
    %2482 = vmatprep.subr.mxu0 0.0
    %2483 = vmatpush1.msra.mxu0 0.0
    %2484 = vmatprep.subr.mxu0 0.0
    %2485 = vmatpush1.msra.mxu0 0.0
    %2486 = vmatprep.subr.mxu0 0.0
    %2487 = vmatpush1.msra.mxu0 0.0
    %2488 = vmatprep.subr.mxu0 0.0
    %2489 = vmatpush1.msra.mxu0 0.0
    %2490 = vmatprep.subr.mxu0 0.0
    %2491 = vmatpush1.msra.mxu0 0.0
    %2492 = vmatprep.subr.mxu0 0.0
    %2493 = vmatpush1.msra.mxu0 0.0
    %2494 = vmatprep.subr.mxu0 0.0
    %2495 = vmatpush1.msra.mxu0 0.0
    %2496 = vmatprep.subr.mxu0 0.0
    %2497 = vmatpush1.msra.mxu0 0.0
    %2498 = vmatprep.subr.mxu0 0.0
    %2499 = vmatpush1.msra.mxu0 0.0
    %2500 = vmatprep.subr.mxu0 0.0
    %2501 = vmatpush1.msra.mxu0 0.0
    %2502 = vmatprep.subr.mxu0 0.0
    %2503 = vmatpush1.msra.mxu0 0.0
    %2504 = vmatprep.subr.mxu0 0.0
    %2505 = vmatpush1.msra.mxu0 0.0
    %2506 = vmatprep.subr.mxu0 0.0
    %2507 = vmatpush1.msra.mxu0 0.0
    %2508 = vmatprep.subr.mxu0 0.0
    %2509 = vmatpush1.msra.mxu0 0.0
    %2510 = vmatprep.subr.mxu0 0.0
    %2511 = vmatpush1.msra.mxu0 0.0
    %2512 = vmatprep.mubr.f32.mxu0 0.0
    %2513 = vmatmul.mubr.f32.gmra.mrb[0].mxu0 %v2446
    %v2514 = vpop.f32.mrb[0].mxu0
    %v2515 = vadd.f32 0.0, %v2514
    %v2516 = vpop.f32.mrb[0].mxu0
    %2517 = vdwg.mxu0
    %2519 = vrot.lane.b32.xlu0 %v2515, 8
    %v2520 = vpop.permute.xlu0 %2519
    %v2522 = vadd.f32 %v2358, %v2520
    %v2523 = vmax.f32 %v2522, 0.0
    %2525 = vrot.lane.b32.xlu0 %v2523, 120
    %v2526 = vpop.permute.xlu0 %2525
    %v2527 = vsel %vm60, %v2526, 0
    %2529 = vmatprep.subr.mxu0 0.0
    %2530 = vmatpush1.msra.mxu0 %v138
    %2531 = vmatprep.subr.mxu0 0.0
    %2532 = vmatpush1.msra.mxu0 %v139
    %2533 = vmatprep.subr.mxu0 0.0
    %2534 = vmatpush1.msra.mxu0 %v140
    %2535 = vmatprep.subr.mxu0 0.0
    %2536 = vmatpush1.msra.mxu0 %v141
    %2537 = vmatprep.subr.mxu0 0.0
    %2538 = vmatpush1.msra.mxu0 0.0
    %2539 = vmatprep.subr.mxu0 0.0
    %2540 = vmatpush1.msra.mxu0 0.0
    %2541 = vmatprep.subr.mxu0 0.0
    %2542 = vmatpush1.msra.mxu0 0.0
    %2543 = vmatprep.subr.mxu0 0.0
    %2544 = vmatpush1.msra.mxu0 0.0
    %2545 = vmatprep.subr.mxu0 0.0
    %2546 = vmatpush1.msra.mxu0 0.0
    %2547 = vmatprep.subr.mxu0 0.0
    %2548 = vmatpush1.msra.mxu0 0.0
    %2549 = vmatprep.subr.mxu0 0.0
    %2550 = vmatpush1.msra.mxu0 0.0
    %2551 = vmatprep.subr.mxu0 0.0
    %2552 = vmatpush1.msra.mxu0 0.0
    %2553 = vmatprep.subr.mxu0 0.0
    %2554 = vmatpush1.msra.mxu0 0.0
    %2555 = vmatprep.subr.mxu0 0.0
    %2556 = vmatpush1.msra.mxu0 0.0
    %2557 = vmatprep.subr.mxu0 0.0
    %2558 = vmatpush1.msra.mxu0 0.0
    %2559 = vmatprep.subr.mxu0 0.0
    %2560 = vmatpush1.msra.mxu0 0.0
    %2561 = vmatprep.subr.mxu0 0.0
    %2562 = vmatpush1.msra.mxu0 0.0
    %2563 = vmatprep.subr.mxu0 0.0
    %2564 = vmatpush1.msra.mxu0 0.0
    %2565 = vmatprep.subr.mxu0 0.0
    %2566 = vmatpush1.msra.mxu0 0.0
    %2567 = vmatprep.subr.mxu0 0.0
    %2568 = vmatpush1.msra.mxu0 0.0
    %2569 = vmatprep.subr.mxu0 0.0
    %2570 = vmatpush1.msra.mxu0 0.0
    %2571 = vmatprep.subr.mxu0 0.0
    %2572 = vmatpush1.msra.mxu0 0.0
    %2573 = vmatprep.subr.mxu0 0.0
    %2574 = vmatpush1.msra.mxu0 0.0
    %2575 = vmatprep.subr.mxu0 0.0
    %2576 = vmatpush1.msra.mxu0 0.0
    %2577 = vmatprep.subr.mxu0 0.0
    %2578 = vmatpush1.msra.mxu0 0.0
    %2579 = vmatprep.subr.mxu0 0.0
    %2580 = vmatpush1.msra.mxu0 0.0
    %2581 = vmatprep.subr.mxu0 0.0
    %2582 = vmatpush1.msra.mxu0 0.0
    %2583 = vmatprep.subr.mxu0 0.0
    %2584 = vmatpush1.msra.mxu0 0.0
    %2585 = vmatprep.subr.mxu0 0.0
    %2586 = vmatpush1.msra.mxu0 0.0
    %2587 = vmatprep.subr.mxu0 0.0
    %2588 = vmatpush1.msra.mxu0 0.0
    %2589 = vmatprep.subr.mxu0 0.0
    %2590 = vmatpush1.msra.mxu0 0.0
    %2591 = vmatprep.subr.mxu0 0.0
    %2592 = vmatpush1.msra.mxu0 0.0
    %2593 = vmatprep.mubr.f32.mxu0 0.0
    %2594 = vmatmul.mubr.f32.gmra.mrb[0].mxu0 %v2527
    %v2595 = vpop.f32.mrb[0].mxu0
    %v2596 = vadd.f32 %v147, %v2595
    %v2597 = vpop.f32.mrb[0].mxu0
    %2598 = vdwg.mxu0
    %v2599 = vadd.f32 %v2596, %v2426
    %v2600 = vxor.u32 %v2599, 2147483648
    %v2601 = vmul.f32 %v2600, 1.442695
    %v2602 = vpow.pop %v2601
    %v2603 = vadd.f32 %v2602, 1.0
    %v2604 = vrcp.pop %v2603
    %v2605 = vmul.f32 1.0, %v2604
    %2606 = vrot.lane.b32.xlu0 %v2426, 64
    %v2607 = vpop.permute.xlu0 %2606
    %v2609 = vmul.f32 %v2605, %v2607
    %2611 = vrot.lane.b32.xlu0 %v2609, 64
    %v2612 = vpop.permute.xlu0 %2611
    %v2614 = vadd.f32 %v2596, %v2612
    %v2615 = vtanh.pop %v2614
    %v2616 = vsub.f32 1.0, %v2605
    %2618 = vrot.lane.b32.xlu0 %v2615, 96
    %v2619 = vpop.permute.xlu0 %2618
    %v2621 = vmul.f32 %v2616, %v2619
    %v2622 = vmul.f32 %v2605, %v2258
    %v2623 = vadd.f32 %v2621, %v2622
    %2625 = vrot.lane.b32.xlu0 %v2623, 96
    %v2626 = vpop.permute.xlu0 %2625
    %v2627 = vsel %vm60, %v2626, 0
    %2629 = vmatprep.subr.mxu0 0.0
    %2630 = vmatpush1.msra.mxu0 %v142
    %2631 = vmatprep.subr.mxu0 0.0
    %2632 = vmatpush1.msra.mxu0 %v143
    %2633 = vmatprep.subr.mxu0 0.0
    %2634 = vmatpush1.msra.mxu0 %v144
    %2635 = vmatprep.subr.mxu0 0.0
    %2636 = vmatpush1.msra.mxu0 %v145
    %2637 = vmatprep.subr.mxu0 0.0
    %2638 = vmatpush1.msra.mxu0 0.0
    %2639 = vmatprep.subr.mxu0 0.0
    %2640 = vmatpush1.msra.mxu0 0.0
    %2641 = vmatprep.subr.mxu0 0.0
    %2642 = vmatpush1.msra.mxu0 0.0
    %2643 = vmatprep.subr.mxu0 0.0
    %2644 = vmatpush1.msra.mxu0 0.0
    %2645 = vmatprep.subr.mxu0 0.0
    %2646 = vmatpush1.msra.mxu0 0.0
    %2647 = vmatprep.subr.mxu0 0.0
    %2648 = vmatpush1.msra.mxu0 0.0
    %2649 = vmatprep.subr.mxu0 0.0
    %2650 = vmatpush1.msra.mxu0 0.0
    %2651 = vmatprep.subr.mxu0 0.0
    %2652 = vmatpush1.msra.mxu0 0.0
    %2653 = vmatprep.subr.mxu0 0.0
    %2654 = vmatpush1.msra.mxu0 0.0
    %2655 = vmatprep.subr.mxu0 0.0
    %2656 = vmatpush1.msra.mxu0 0.0
    %2657 = vmatprep.subr.mxu0 0.0
    %2658 = vmatpush1.msra.mxu0 0.0
    %2659 = vmatprep.subr.mxu0 0.0
    %2660 = vmatpush1.msra.mxu0 0.0
    %2661 = vmatprep.subr.mxu0 0.0
    %2662 = vmatpush1.msra.mxu0 0.0
    %2663 = vmatprep.subr.mxu0 0.0
    %2664 = vmatpush1.msra.mxu0 0.0
    %2665 = vmatprep.subr.mxu0 0.0
    %2666 = vmatpush1.msra.mxu0 0.0
    %2667 = vmatprep.subr.mxu0 0.0
    %2668 = vmatpush1.msra.mxu0 0.0
    %2669 = vmatprep.subr.mxu0 0.0
    %2670 = vmatpush1.msra.mxu0 0.0
    %2671 = vmatprep.subr.mxu0 0.0
    %2672 = vmatpush1.msra.mxu0 0.0
    %2673 = vmatprep.subr.mxu0 0.0
    %2674 = vmatpush1.msra.mxu0 0.0
    %2675 = vmatprep.subr.mxu0 0.0
    %2676 = vmatpush1.msra.mxu0 0.0
    %2677 = vmatprep.subr.mxu0 0.0
    %2678 = vmatpush1.msra.mxu0 0.0
    %2679 = vmatprep.subr.mxu0 0.0
    %2680 = vmatpush1.msra.mxu0 0.0
    %2681 = vmatprep.subr.mxu0 0.0
    %2682 = vmatpush1.msra.mxu0 0.0
    %2683 = vmatprep.subr.mxu0 0.0
    %2684 = vmatpush1.msra.mxu0 0.0
    %2685 = vmatprep.subr.mxu0 0.0
    %2686 = vmatpush1.msra.mxu0 0.0
    %2687 = vmatprep.subr.mxu0 0.0
    %2688 = vmatpush1.msra.mxu0 0.0
    %2689 = vmatprep.subr.mxu0 0.0
    %2690 = vmatpush1.msra.mxu0 0.0
    %2691 = vmatprep.subr.mxu0 0.0
    %2692 = vmatpush1.msra.mxu0 0.0
    %2693 = vmatprep.mubr.f32.mxu0 0.0
    %2694 = vmatmul.mubr.f32.gmra.mrb[0].mxu0 %v2627
    %v2695 = vpop.f32.mrb[0].mxu0
    %v2696 = vadd.f32 %v148, %v2695
    %v2697 = vpop.f32.mrb[0].mxu0
    %2698 = vdwg.mxu0
    %v2699 = vsel %vm505, %v2696, -inf
    %2700 = vmax.xlane.f32.xlu0 %v2699
    %v2701 = vpop.xlane.xlu0 %2700
    %v2702 = vsub.f32 %v2696, %v2701
    %v2703 = vmul.f32 %v2702, 1.442695
    %v2704 = vpow.pop %v2703
    %v2705 = vsel %vm505, %v2704, 0.0
    %2706 = vadd.xlane.f32.xlu0 %v2705
    %v2707 = vpop.xlane.xlu0 %2706
    %v2708 = vlog2.pop %v2707
    %v2709 = vmul.f32 %v2708, 0.6931472
    %v2710 = vsub.f32 %v2702, %v2709
    %2711 = vrot.lane.b32.xlu0 %v2623, 32
    %v2712 = vpop.permute.xlu0 %2711
    %2714 = vrot.lane.b32.xlu0 %v2444, 96
    %v2715 = vpop.permute.xlu0 %2714
    %v2717 = vsel %vm524, %v2710, %v2712
    %v2718 = vsel %vm526, %v2717, %v2715
    %v2719 = vsel %vm528, %v2718, 0.0
    %2720 = vst [vmem:[#allocation7 + $0x6] sm:$0x1] %v2719
    %s2721 = sld [smem:[#allocation3 + $0x7]]
    %s2722 = scalar_lea.vmem %s1, %s2721
    %v2723 = vld [vmem:[%s2722] sm:$0x1]
    %2724 = vmatprep.subr.mxu0 0.0
    %2725 = vmatpush1.msra.mxu0 %v134
    %2726 = vmatprep.subr.mxu0 0.0
    %2727 = vmatpush1.msra.mxu0 %v135
    %2728 = vmatprep.subr.mxu0 0.0
    %2729 = vmatpush1.msra.mxu0 %v136
    %2730 = vmatprep.subr.mxu0 0.0
    %2731 = vmatpush1.msra.mxu0 %v137
    %2732 = vmatprep.subr.mxu0 0.0
    %2733 = vmatpush1.msra.mxu0 0.0
    %2734 = vmatprep.subr.mxu0 0.0
    %2735 = vmatpush1.msra.mxu0 0.0
    %2736 = vmatprep.subr.mxu0 0.0
    %2737 = vmatpush1.msra.mxu0 0.0
    %2738 = vmatprep.subr.mxu0 0.0
    %2739 = vmatpush1.msra.mxu0 0.0
    %2740 = vmatprep.subr.mxu0 0.0
    %2741 = vmatpush1.msra.mxu0 0.0
    %2742 = vmatprep.subr.mxu0 0.0
    %2743 = vmatpush1.msra.mxu0 0.0
    %2744 = vmatprep.subr.mxu0 0.0
    %2745 = vmatpush1.msra.mxu0 0.0
    %2746 = vmatprep.subr.mxu0 0.0
    %2747 = vmatpush1.msra.mxu0 0.0
    %2748 = vmatprep.subr.mxu0 0.0
    %2749 = vmatpush1.msra.mxu0 0.0
    %2750 = vmatprep.subr.mxu0 0.0
    %2751 = vmatpush1.msra.mxu0 0.0
    %2752 = vmatprep.subr.mxu0 0.0
    %2753 = vmatpush1.msra.mxu0 0.0
    %2754 = vmatprep.subr.mxu0 0.0
    %2755 = vmatpush1.msra.mxu0 0.0
    %2756 = vmatprep.subr.mxu0 0.0
    %2757 = vmatpush1.msra.mxu0 0.0
    %2758 = vmatprep.subr.mxu0 0.0
    %2759 = vmatpush1.msra.mxu0 0.0
    %2760 = vmatprep.subr.mxu0 0.0
    %2761 = vmatpush1.msra.mxu0 0.0
    %2762 = vmatprep.subr.mxu0 0.0
    %2763 = vmatpush1.msra.mxu0 0.0
    %2764 = vmatprep.subr.mxu0 0.0
    %2765 = vmatpush1.msra.mxu0 0.0
    %2766 = vmatprep.subr.mxu0 0.0
    %2767 = vmatpush1.msra.mxu0 0.0
    %2768 = vmatprep.subr.mxu0 0.0
    %2769 = vmatpush1.msra.mxu0 0.0
    %2770 = vmatprep.subr.mxu0 0.0
    %2771 = vmatpush1.msra.mxu0 0.0
    %2772 = vmatprep.subr.mxu0 0.0
    %2773 = vmatpush1.msra.mxu0 0.0
    %2774 = vmatprep.subr.mxu0 0.0
    %2775 = vmatpush1.msra.mxu0 0.0
    %2776 = vmatprep.subr.mxu0 0.0
    %2777 = vmatpush1.msra.mxu0 0.0
    %2778 = vmatprep.subr.mxu0 0.0
    %2779 = vmatpush1.msra.mxu0 0.0
    %2780 = vmatprep.subr.mxu0 0.0
    %2781 = vmatpush1.msra.mxu0 0.0
    %2782 = vmatprep.subr.mxu0 0.0
    %2783 = vmatpush1.msra.mxu0 0.0
    %2784 = vmatprep.subr.mxu0 0.0
    %2785 = vmatpush1.msra.mxu0 0.0
    %2786 = vmatprep.subr.mxu0 0.0
    %2787 = vmatpush1.msra.mxu0 0.0
    %2788 = vmatprep.mubr.f32.mxu0 0.0
    %2789 = vmatmul.mubr.f32.gmra.mrb[0].mxu0 %v2627
    %v2790 = vpop.f32.mrb[0].mxu0
    %v2791 = vadd.f32 %v146, %v2790
    %v2792 = vpop.f32.mrb[0].mxu0
    %2793 = vdwg.mxu0
    %2795 = vrot.lane.b32.xlu0 %v2791, 32
    %v2796 = vpop.permute.xlu0 %2795
    %v2798 = vadd.f32 %v2723, %v2796
    %v2799 = vsel %vm231, %v2798, -inf
    %2800 = vmax.xlane.f32.xlu0 %v2799
    %v2801 = vpop.xlane.xlu0 %2800
    %v2802 = vsub.f32 %v2798, %v2801
    %v2803 = vmul.f32 %v2802, 1.442695
    %v2804 = vpow.pop %v2803
    %v2805 = vsel %vm231, %v2804, 0.0
    %2806 = vadd.xlane.f32.xlu0 %v2805
    %v2807 = vpop.xlane.xlu0 %2806
    %v2808 = vrcp.pop %v2807
    %v2809 = vmul.f32 %v2804, %v2808
    %v2811 = vsel %vm243, %v2809, 0
    %2813 = vmatprep.subr.mxu0 0.0
    %2814 = vmatpush1.msra.mxu0 %v131
    %2815 = vmatprep.subr.mxu0 0.0
    %2816 = vmatpush1.msra.mxu0 0.0
    %2817 = vmatprep.subr.mxu0 0.0
    %2818 = vmatpush1.msra.mxu0 0.0
    %2819 = vmatprep.subr.mxu0 0.0
    %2820 = vmatpush1.msra.mxu0 0.0
    %2821 = vmatprep.subr.mxu0 0.0
    %2822 = vmatpush1.msra.mxu0 0.0
    %2823 = vmatprep.subr.mxu0 0.0
    %2824 = vmatpush1.msra.mxu0 0.0
    %2825 = vmatprep.subr.mxu0 0.0
    %2826 = vmatpush1.msra.mxu0 0.0
    %2827 = vmatprep.subr.mxu0 0.0
    %2828 = vmatpush1.msra.mxu0 0.0
    %2829 = vmatprep.subr.mxu0 0.0
    %2830 = vmatpush1.msra.mxu0 0.0
    %2831 = vmatprep.subr.mxu0 0.0
    %2832 = vmatpush1.msra.mxu0 0.0
    %2833 = vmatprep.subr.mxu0 0.0
    %2834 = vmatpush1.msra.mxu0 0.0
    %2835 = vmatprep.subr.mxu0 0.0
    %2836 = vmatpush1.msra.mxu0 0.0
    %2837 = vmatprep.subr.mxu0 0.0
    %2838 = vmatpush1.msra.mxu0 0.0
    %2839 = vmatprep.subr.mxu0 0.0
    %2840 = vmatpush1.msra.mxu0 0.0
    %2841 = vmatprep.subr.mxu0 0.0
    %2842 = vmatpush1.msra.mxu0 0.0
    %2843 = vmatprep.subr.mxu0 0.0
    %2844 = vmatpush1.msra.mxu0 0.0
    %2845 = vmatprep.subr.mxu0 0.0
    %2846 = vmatpush1.msra.mxu0 0.0
    %2847 = vmatprep.subr.mxu0 0.0
    %2848 = vmatpush1.msra.mxu0 0.0
    %2849 = vmatprep.subr.mxu0 0.0
    %2850 = vmatpush1.msra.mxu0 0.0
    %2851 = vmatprep.subr.mxu0 0.0
    %2852 = vmatpush1.msra.mxu0 0.0
    %2853 = vmatprep.subr.mxu0 0.0
    %2854 = vmatpush1.msra.mxu0 0.0
    %2855 = vmatprep.subr.mxu0 0.0
    %2856 = vmatpush1.msra.mxu0 0.0
    %2857 = vmatprep.subr.mxu0 0.0
    %2858 = vmatpush1.msra.mxu0 0.0
    %2859 = vmatprep.subr.mxu0 0.0
    %2860 = vmatpush1.msra.mxu0 0.0
    %2861 = vmatprep.subr.mxu0 0.0
    %2862 = vmatpush1.msra.mxu0 0.0
    %2863 = vmatprep.subr.mxu0 0.0
    %2864 = vmatpush1.msra.mxu0 0.0
    %2865 = vmatprep.subr.mxu0 0.0
    %2866 = vmatpush1.msra.mxu0 0.0
    %2867 = vmatprep.subr.mxu0 0.0
    %2868 = vmatpush1.msra.mxu0 0.0
    %2869 = vmatprep.subr.mxu0 0.0
    %2870 = vmatpush1.msra.mxu0 0.0
    %2871 = vmatprep.subr.mxu0 0.0
    %2872 = vmatpush1.msra.mxu0 0.0
    %2873 = vmatprep.subr.mxu0 0.0
    %2874 = vmatpush1.msra.mxu0 0.0
    %2875 = vmatprep.subr.mxu0 0.0
    %2876 = vmatpush1.msra.mxu0 0.0
    %2877 = vmatprep.mubr.f32.mxu0 0.0
    %2878 = vmatmul.mubr.f32.gmra.mrb[0].mxu0 %v2811
    %v2879 = vpop.f32.mrb[0].mxu0
    %v2880 = vadd.f32 0.0, %v2879
    %v2881 = vpop.f32.mrb[0].mxu0
    %2882 = vdwg.mxu0
    %2884 = vrot.lane.b32.xlu0 %v2880, 8
    %v2885 = vpop.permute.xlu0 %2884
    %v2887 = vadd.f32 %v2723, %v2885
    %v2888 = vmax.f32 %v2887, 0.0
    %2890 = vrot.lane.b32.xlu0 %v2888, 120
    %v2891 = vpop.permute.xlu0 %2890
    %v2892 = vsel %vm60, %v2891, 0
    %2894 = vmatprep.subr.mxu0 0.0
    %2895 = vmatpush1.msra.mxu0 %v138
    %2896 = vmatprep.subr.mxu0 0.0
    %2897 = vmatpush1.msra.mxu0 %v139
    %2898 = vmatprep.subr.mxu0 0.0
    %2899 = vmatpush1.msra.mxu0 %v140
    %2900 = vmatprep.subr.mxu0 0.0
    %2901 = vmatpush1.msra.mxu0 %v141
    %2902 = vmatprep.subr.mxu0 0.0
    %2903 = vmatpush1.msra.mxu0 0.0
    %2904 = vmatprep.subr.mxu0 0.0
    %2905 = vmatpush1.msra.mxu0 0.0
    %2906 = vmatprep.subr.mxu0 0.0
    %2907 = vmatpush1.msra.mxu0 0.0
    %2908 = vmatprep.subr.mxu0 0.0
    %2909 = vmatpush1.msra.mxu0 0.0
    %2910 = vmatprep.subr.mxu0 0.0
    %2911 = vmatpush1.msra.mxu0 0.0
    %2912 = vmatprep.subr.mxu0 0.0
    %2913 = vmatpush1.msra.mxu0 0.0
    %2914 = vmatprep.subr.mxu0 0.0
    %2915 = vmatpush1.msra.mxu0 0.0
    %2916 = vmatprep.subr.mxu0 0.0
    %2917 = vmatpush1.msra.mxu0 0.0
    %2918 = vmatprep.subr.mxu0 0.0
    %2919 = vmatpush1.msra.mxu0 0.0
    %2920 = vmatprep.subr.mxu0 0.0
    %2921 = vmatpush1.msra.mxu0 0.0
    %2922 = vmatprep.subr.mxu0 0.0
    %2923 = vmatpush1.msra.mxu0 0.0
    %2924 = vmatprep.subr.mxu0 0.0
    %2925 = vmatpush1.msra.mxu0 0.0
    %2926 = vmatprep.subr.mxu0 0.0
    %2927 = vmatpush1.msra.mxu0 0.0
    %2928 = vmatprep.subr.mxu0 0.0
    %2929 = vmatpush1.msra.mxu0 0.0
    %2930 = vmatprep.subr.mxu0 0.0
    %2931 = vmatpush1.msra.mxu0 0.0
    %2932 = vmatprep.subr.mxu0 0.0
    %2933 = vmatpush1.msra.mxu0 0.0
    %2934 = vmatprep.subr.mxu0 0.0
    %2935 = vmatpush1.msra.mxu0 0.0
    %2936 = vmatprep.subr.mxu0 0.0
    %2937 = vmatpush1.msra.mxu0 0.0
    %2938 = vmatprep.subr.mxu0 0.0
    %2939 = vmatpush1.msra.mxu0 0.0
    %2940 = vmatprep.subr.mxu0 0.0
    %2941 = vmatpush1.msra.mxu0 0.0
    %2942 = vmatprep.subr.mxu0 0.0
    %2943 = vmatpush1.msra.mxu0 0.0
    %2944 = vmatprep.subr.mxu0 0.0
    %2945 = vmatpush1.msra.mxu0 0.0
    %2946 = vmatprep.subr.mxu0 0.0
    %2947 = vmatpush1.msra.mxu0 0.0
    %2948 = vmatprep.subr.mxu0 0.0
    %2949 = vmatpush1.msra.mxu0 0.0
    %2950 = vmatprep.subr.mxu0 0.0
    %2951 = vmatpush1.msra.mxu0 0.0
    %2952 = vmatprep.subr.mxu0 0.0
    %2953 = vmatpush1.msra.mxu0 0.0
    %2954 = vmatprep.subr.mxu0 0.0
    %2955 = vmatpush1.msra.mxu0 0.0
    %2956 = vmatprep.subr.mxu0 0.0
    %2957 = vmatpush1.msra.mxu0 0.0
    %2958 = vmatprep.mubr.f32.mxu0 0.0
    %2959 = vmatmul.mubr.f32.gmra.mrb[0].mxu0 %v2892
    %v2960 = vpop.f32.mrb[0].mxu0
    %v2961 = vadd.f32 %v147, %v2960
    %v2962 = vpop.f32.mrb[0].mxu0
    %2963 = vdwg.mxu0
    %v2964 = vadd.f32 %v2961, %v2791
    %v2965 = vxor.u32 %v2964, 2147483648
    %v2966 = vmul.f32 %v2965, 1.442695
    %v2967 = vpow.pop %v2966
    %v2968 = vadd.f32 %v2967, 1.0
    %v2969 = vrcp.pop %v2968
    %v2970 = vmul.f32 1.0, %v2969
    %2971 = vrot.lane.b32.xlu0 %v2791, 64
    %v2972 = vpop.permute.xlu0 %2971
    %v2974 = vmul.f32 %v2970, %v2972
    %2976 = vrot.lane.b32.xlu0 %v2974, 64
    %v2977 = vpop.permute.xlu0 %2976
    %v2979 = vadd.f32 %v2961, %v2977
    %v2980 = vtanh.pop %v2979
    %v2981 = vsub.f32 1.0, %v2970
    %2983 = vrot.lane.b32.xlu0 %v2980, 96
    %v2984 = vpop.permute.xlu0 %2983
    %v2986 = vmul.f32 %v2981, %v2984
    %v2987 = vmul.f32 %v2970, %v2623
    %v2988 = vadd.f32 %v2986, %v2987
    %2990 = vrot.lane.b32.xlu0 %v2988, 96
    %v2991 = vpop.permute.xlu0 %2990
    %v2992 = vsel %vm60, %v2991, 0
    %2994 = vmatprep.subr.mxu0 0.0
    %2995 = vmatpush1.msra.mxu0 %v142
    %2996 = vmatprep.subr.mxu0 0.0
    %2997 = vmatpush1.msra.mxu0 %v143
    %2998 = vmatprep.subr.mxu0 0.0
    %2999 = vmatpush1.msra.mxu0 %v144
    %3000 = vmatprep.subr.mxu0 0.0
    %3001 = vmatpush1.msra.mxu0 %v145
    %3002 = vmatprep.subr.mxu0 0.0
    %3003 = vmatpush1.msra.mxu0 0.0
    %3004 = vmatprep.subr.mxu0 0.0
    %3005 = vmatpush1.msra.mxu0 0.0
    %3006 = vmatprep.subr.mxu0 0.0
    %3007 = vmatpush1.msra.mxu0 0.0
    %3008 = vmatprep.subr.mxu0 0.0
    %3009 = vmatpush1.msra.mxu0 0.0
    %3010 = vmatprep.subr.mxu0 0.0
    %3011 = vmatpush1.msra.mxu0 0.0
    %3012 = vmatprep.subr.mxu0 0.0
    %3013 = vmatpush1.msra.mxu0 0.0
    %3014 = vmatprep.subr.mxu0 0.0
    %3015 = vmatpush1.msra.mxu0 0.0
    %3016 = vmatprep.subr.mxu0 0.0
    %3017 = vmatpush1.msra.mxu0 0.0
    %3018 = vmatprep.subr.mxu0 0.0
    %3019 = vmatpush1.msra.mxu0 0.0
    %3020 = vmatprep.subr.mxu0 0.0
    %3021 = vmatpush1.msra.mxu0 0.0
    %3022 = vmatprep.subr.mxu0 0.0
    %3023 = vmatpush1.msra.mxu0 0.0
    %3024 = vmatprep.subr.mxu0 0.0
    %3025 = vmatpush1.msra.mxu0 0.0
    %3026 = vmatprep.subr.mxu0 0.0
    %3027 = vmatpush1.msra.mxu0 0.0
    %3028 = vmatprep.subr.mxu0 0.0
    %3029 = vmatpush1.msra.mxu0 0.0
    %3030 = vmatprep.subr.mxu0 0.0
    %3031 = vmatpush1.msra.mxu0 0.0
    %3032 = vmatprep.subr.mxu0 0.0
    %3033 = vmatpush1.msra.mxu0 0.0
    %3034 = vmatprep.subr.mxu0 0.0
    %3035 = vmatpush1.msra.mxu0 0.0
    %3036 = vmatprep.subr.mxu0 0.0
    %3037 = vmatpush1.msra.mxu0 0.0
    %3038 = vmatprep.subr.mxu0 0.0
    %3039 = vmatpush1.msra.mxu0 0.0
    %3040 = vmatprep.subr.mxu0 0.0
    %3041 = vmatpush1.msra.mxu0 0.0
    %3042 = vmatprep.subr.mxu0 0.0
    %3043 = vmatpush1.msra.mxu0 0.0
    %3044 = vmatprep.subr.mxu0 0.0
    %3045 = vmatpush1.msra.mxu0 0.0
    %3046 = vmatprep.subr.mxu0 0.0
    %3047 = vmatpush1.msra.mxu0 0.0
    %3048 = vmatprep.subr.mxu0 0.0
    %3049 = vmatpush1.msra.mxu0 0.0
    %3050 = vmatprep.subr.mxu0 0.0
    %3051 = vmatpush1.msra.mxu0 0.0
    %3052 = vmatprep.subr.mxu0 0.0
    %3053 = vmatpush1.msra.mxu0 0.0
    %3054 = vmatprep.subr.mxu0 0.0
    %3055 = vmatpush1.msra.mxu0 0.0
    %3056 = vmatprep.subr.mxu0 0.0
    %3057 = vmatpush1.msra.mxu0 0.0
    %3058 = vmatprep.mubr.f32.mxu0 0.0
    %3059 = vmatmul.mubr.f32.gmra.mrb[0].mxu0 %v2992
    %v3060 = vpop.f32.mrb[0].mxu0
    %v3061 = vadd.f32 %v148, %v3060
    %v3062 = vpop.f32.mrb[0].mxu0
    %3063 = vdwg.mxu0
    %v3064 = vsel %vm505, %v3061, -inf
    %3065 = vmax.xlane.f32.xlu0 %v3064
    %v3066 = vpop.xlane.xlu0 %3065
    %v3067 = vsub.f32 %v3061, %v3066
    %v3068 = vmul.f32 %v3067, 1.442695
    %v3069 = vpow.pop %v3068
    %v3070 = vsel %vm505, %v3069, 0.0
    %3071 = vadd.xlane.f32.xlu0 %v3070
    %v3072 = vpop.xlane.xlu0 %3071
    %v3073 = vlog2.pop %v3072
    %v3074 = vmul.f32 %v3073, 0.6931472
    %v3075 = vsub.f32 %v3067, %v3074
    %3076 = vrot.lane.b32.xlu0 %v2988, 32
    %v3077 = vpop.permute.xlu0 %3076
    %3079 = vrot.lane.b32.xlu0 %v2809, 96
    %v3080 = vpop.permute.xlu0 %3079
    %v3082 = vsel %vm524, %v3075, %v3077
    %v3083 = vsel %vm526, %v3082, %v3080
    %v3084 = vsel %vm528, %v3083, 0.0
    %3085 = vst [vmem:[#allocation7 + $0x7] sm:$0x1] %v3084
    // Predicated region
    $region46: #{tpu_custom_call.1} parent=1 // pred_check
      _
    $region47: #{tpu_custom_call.1} parent=1 // pred_check_branch
      %3087 = sbr.rel (0) target = $region49
    $region48: #{tpu_custom_call.1} parent=1 // pred_region
      %s3089 = ssub.s32 128, 128
      %3090 = vsyncadd [#allocation6], %s3089
      %s3092 = sshll.u32 [#allocation7], 4
      %s3093 = int_to_ptr.vmem [resolvable:$true] %s3092
      %3095 = dma.vmem_to_hbm [thread:$0]  %s3093, 128, %s11, [#allocation6]
    $region49: #{tpu_custom_call.1} parent=1 // pred_fallthru
      _
    // Predicated region
    $region50: #{tpu_custom_call.1} parent=1 // pred_check
      _
    $region51: #{tpu_custom_call.1} parent=1 // pred_check_branch
      %3097 = sbr.rel (0) target = $region53
    $region52: #{tpu_custom_call.1} parent=1 // pred_region
      %3098 = dma.done [#allocation6], 128
    $region53: #{tpu_custom_call.1} parent=1 // pred_fallthru
      _
    %3099 = vsyncpa [#allocation5], 1
    %3100 = vsyncpa [#allocation6], 1

</llo_original>
